<compile_context>
chip_gen: v7x
topology: tpu7x:2x2x1
jax: 0.10.0
libtpu: 0.0.40
codegen_flags: <defaults>
</compile_context>

<pallas_src>
import jax
import jax.numpy as jnp
import numpy as np
from jax import lax
from jax.experimental import pallas as pl
from jax.experimental.pallas import tpu as pltpu

D_MODEL = 128
NHEAD = 8
HEAD_DIM = D_MODEL // NHEAD
TAU_MIN = 0.01
MASK_NEG = -1e30          # stands in for PyTorch's -inf key_padding_mask fill (f32 ref only)
NORM_EPS = 1e-12
DENOM_EPS = 1e-20


# ----------------------------------------------------------------------------
# Pallas kernel: cosine multi-head self-attention for a batch of WB windows.
# ----------------------------------------------------------------------------
def _cosine_mha_kernel(feat_ref, pos_ref, kmask_ref,
                       wqk_ref, bqk_ref, wv_ref, bv_ref, wo_ref, bo_ref,
                       hred_ref, hbc_ref, stkmask_ref, seg_ref, inv_tau_ref,
                       out_ref):
    # feat_ref/pos_ref: (WB, T, C) bf16 ; kmask_ref: (WB, 1, H*T) f32 {0,1}
    # wqk_ref: (C, 2C) bf16 = in_proj_weight[:2C].T ; bqk_ref: (1, 2C) f32
    # wv_ref : (C, C)  bf16 = in_proj_weight[2C:].T ; bv_ref : (1, C)  f32
    # wo_ref : (C, C)  bf16 = out_proj_weight.T     ; bo_ref : (1, C)  f32
    # hred_ref: (C, H) f32 ones-per-head (sum-of-squares reduce matrix)
    # hbc_ref : (H, C) f32 one-hot head broadcast matrix
    # stkmask_ref: (H*T, C) bf16 head-stacking {0,1} mask
    # seg_ref : (H*T, H) bf16 per-head segment-sum matrix
    # inv_tau_ref: (1, 1) f32 in SMEM, already 1 / max(tau, tau_min)
    WB, T, C = feat_ref.shape
    H = hbc_ref.shape[0]
    HT = stkmask_ref.shape[0]
    M = WB * T
    f32, bf16 = jnp.float32, jnp.bfloat16

    feat_b = feat_ref[...].reshape(M, C)                        # bf16
    pos_b = pos_ref[...].reshape(M, C)                          # bf16
    # q = k input = feat + pos (add in f32, cast once for the MXU).
    qk_in_b = (feat_b.astype(f32) + pos_b.astype(f32)).astype(bf16)

    # Fused Q/K projection and V projection: bf16 MXU operands, f32 accumulation.
    qk = jnp.dot(qk_in_b, wqk_ref[...], preferred_element_type=f32) + bqk_ref[...]
    v = jnp.dot(feat_b, wv_ref[...], preferred_element_type=f32) + bv_ref[...]
    q = qk[:, :C]
    k = qk[:, C:]

    # Per-head L2 normalisation with a narrow (M, H) sum-of-squares tile:
    # reduce via a ones matmul, rsqrt on the EUP there, then broadcast back to
    # (M, C) with a one-hot matmul.  1/tau is folded into the q scale.
    hred = hred_ref[...]                                        # (C, H)
    hbc = hbc_ref[...]                                          # (H, C)
    inv_tau = inv_tau_ref[0, 0]
    ssq = jnp.dot(q * q, hred, preferred_element_type=f32)      # (M, H)
    ssk = jnp.dot(k * k, hred, preferred_element_type=f32)      # (M, H)
    rsq = lax.rsqrt(ssq + NORM_EPS) * inv_tau
    rsk = lax.rsqrt(ssk + NORM_EPS)
    qn = q * jnp.dot(rsq, hbc, preferred_element_type=f32)
    kn = k * jnp.dot(rsk, hbc, preferred_element_type=f32)

    # Head-stacked K / V: (WB, H*T, C); row-block h holds k / v masked to head
    # h's lanes (mask entries are exact {0,1} so bf16 masking is lossless).
    stk_mask = stkmask_ref[...]                                 # (HT, C) bf16
    kn_b3 = kn.astype(bf16).reshape(WB, T, C)
    v_b3 = v.astype(bf16).reshape(WB, T, C)
    kstk = jnp.concatenate([kn_b3] * H, axis=1) * stk_mask      # (WB, HT, C)
    vstk = jnp.concatenate([v_b3] * H, axis=1) * stk_mask       # (WB, HT, C)

    # All-head scores in ONE lane-dense batched matmul: (WB, T, H*T).
    qn_b3 = qn.astype(bf16).reshape(WB, T, C)
    s = jnp.einsum('wqc,wnc->wqn', qn_b3, kstk, preferred_element_type=f32)

    # Softmax: shift by the constant bound 1/tau (|s| <= 1/tau since q, k are
    # unit vectors -> no row-wise max), multiplicative key-padding mask,
    # per-head segment-sum denominator via a ones matmul, exact reciprocal on
    # the tiny (M, H) tile.
    e = jnp.exp(s - inv_tau) * kmask_ref[...]                   # (WB, T, HT) f32
    e_b = e.astype(bf16)
    denom = jnp.dot(e_b.reshape(M, HT), seg_ref[...], preferred_element_type=f32)
    inv_l = 1.0 / (denom + DENOM_EPS)                           # (M, H) exact

    o_un = jnp.einsum('wqn,wnc->wqc', e_b, vstk, preferred_element_type=f32)
    o = o_un.reshape(M, C) * jnp.dot(inv_l, hbc, preferred_element_type=f32)

    # TODO(synk): attention dropout (attn_drop) omitted -- eval-mode forward.
    out = jnp.dot(o.astype(bf16), wo_ref[...], preferred_element_type=f32) + bo_ref[...]
    out_ref[...] = out.reshape(WB, T, C).astype(out_ref.dtype)


def cosine_mha_pallas(feat3d, pos3d, kmask, weights, consts, wb=8):
    """feat3d/pos3d: (W, T, C) bf16; kmask: (W, 1, H*T) f32 keep-mask."""
    W, T, C = feat3d.shape
    wqk_b, bqk, wv_b, bv, wo_b, bo, inv_tau = weights
    hred, hbc, stk_mask, seg = consts
    H = hbc.shape[0]
    HT = stk_mask.shape[0]
    assert W % wb == 0 and T % 8 == 0 and C % 128 == 0 and HT == H * T

    grid_spec = pltpu.PrefetchScalarGridSpec(
        num_scalar_prefetch=0,
        grid=(W // wb,),
        in_specs=[
            pl.BlockSpec((wb, T, C), lambda i: (i, 0, 0)),      # feat (bf16)
            pl.BlockSpec((wb, T, C), lambda i: (i, 0, 0)),      # pos  (bf16)
            pl.BlockSpec((wb, 1, HT), lambda i: (i, 0, 0)),     # key keep-mask
            pl.BlockSpec((C, 2 * C), lambda i: (0, 0)),         # W_qk^T
            pl.BlockSpec((1, 2 * C), lambda i: (0, 0)),         # b_qk
            pl.BlockSpec((C, C), lambda i: (0, 0)),             # W_v^T
            pl.BlockSpec((1, C), lambda i: (0, 0)),             # b_v
            pl.BlockSpec((C, C), lambda i: (0, 0)),             # W_o^T
            pl.BlockSpec((1, C), lambda i: (0, 0)),             # b_o
            pl.BlockSpec((C, H), lambda i: (0, 0)),             # head reduce (ones)
            pl.BlockSpec((H, C), lambda i: (0, 0)),             # head broadcast (one-hot)
            pl.BlockSpec((HT, C), lambda i: (0, 0)),            # head-stacking mask
            pl.BlockSpec((HT, H), lambda i: (0, 0)),            # segment-sum matrix
            pl.BlockSpec(memory_space=pltpu.MemorySpace.SMEM),  # 1/tau scalar
        ],
        out_specs=pl.BlockSpec((wb, T, C), lambda i: (i, 0, 0)),
    )
    return pl.pallas_call(
        _cosine_mha_kernel,
        out_shape=jax.ShapeDtypeStruct((W, T, C), jnp.float32),
        grid_spec=grid_spec,
        compiler_params=pltpu.CompilerParams(
            # "parallel" lets the grid shard across v7x's 2 TensorCores.
            dimension_semantics=("parallel",),
            # Raise scoped VMEM (relevant mainly for v5e's 16 MiB default when
            # sweeping wb up); current usage is only a few MiB.
            vmem_limit_bytes=32 * 1024 * 1024),
    )(feat3d, pos3d, kmask, wqk_b, bqk, wv_b, bv, wo_b, bo,
      hred, hbc, stk_mask, seg, inv_tau)


# ----------------------------------------------------------------------------
# Parameter / constant preprocessing + flat2window / window2flat glue.
# ----------------------------------------------------------------------------
def _prepare_kernel_params(in_proj_w, in_proj_b, out_proj_w, out_proj_b, tau):
    C = D_MODEL
    wqk_b = jnp.transpose(in_proj_w[:2 * C]).astype(jnp.bfloat16)     # (C, 2C)
    bqk = in_proj_b[:2 * C].reshape(1, 2 * C).astype(jnp.float32)
    wv_b = jnp.transpose(in_proj_w[2 * C:]).astype(jnp.bfloat16)      # (C, C)
    bv = in_proj_b[2 * C:].reshape(1, C).astype(jnp.float32)
    wo_b = jnp.transpose(out_proj_w).astype(jnp.bfloat16)             # (C, C)
    bo = out_proj_b.reshape(1, C).astype(jnp.float32)
    inv_tau = (1.0 / jnp.maximum(tau, TAU_MIN)).reshape(1, 1).astype(jnp.float32)
    return (wqk_b, bqk, wv_b, bv, wo_b, bo, inv_tau)


def _head_constants(t_max):
    C, H, Dh = D_MODEL, NHEAD, HEAD_DIM
    head_of_c = np.arange(C) // Dh                                      # (C,)
    hred = (head_of_c[:, None] == np.arange(H)[None, :]).astype(np.float32)   # (C, H)
    hbc = np.ascontiguousarray(hred.T)                                  # (H, C)
    head_of_n = np.repeat(np.arange(H), t_max)                          # (H*T,)
    stk_mask = (head_of_n[:, None] == head_of_c[None, :]).astype(np.float32)  # (HT, C)
    seg = (head_of_n[:, None] == np.arange(H)[None, :]).astype(np.float32)    # (HT, H)
    return (jnp.asarray(hred, jnp.float32), jnp.asarray(hbc, jnp.float32),
            jnp.asarray(stk_mask, jnp.bfloat16), jnp.asarray(seg, jnp.bfloat16))


def flat2window(feat_2d, voxel_inds, slot_inds, W, T):
    C = feat_2d.shape[1]
    buf = jnp.zeros((W * T, C), feat_2d.dtype)
    buf = buf.at[slot_inds].set(feat_2d[voxel_inds])
    return buf.reshape(W, T, C)


def _build_merged_inputs(feat_2d, pos_dict, ind_dict, pad_mask_dict, wb):
    """Scatter all groups into padded (W, t_max, C) windows, merged along W."""
    names = list(ind_dict.keys())
    t_max = max(int(ind_dict[n][3]) for n in names)
    t_max = ((t_max + 7) // 8) * 8

    feats, poss, keeps, metas = [], [], [], []
    w_off = 0
    for name in names:
        v_inds, s_inds, W, T = ind_dict[name]
        f3d = flat2window(feat_2d, v_inds, s_inds, W, T)
        p3d = pos_dict[name]
        keep = (~pad_mask_dict[name]).astype(jnp.float32)               # (W, T)
        if T < t_max:
            f3d = jnp.pad(f3d, ((0, 0), (0, t_max - T), (0, 0)))
            p3d = jnp.pad(p3d, ((0, 0), (0, t_max - T), (0, 0)))
            keep = jnp.pad(keep, ((0, 0), (0, t_max - T)))
        feats.append(f3d)
        poss.append(p3d)
        keeps.append(keep)
        metas.append((name, w_off, W, T, v_inds, s_inds))
        w_off += W

    feat_all = jnp.concatenate(feats, axis=0)
    pos_all = jnp.concatenate(poss, axis=0)
    keep_all = jnp.concatenate(keeps, axis=0)

    # Pad window count to a multiple of wb with fully-masked dummy windows.
    w_total = feat_all.shape[0]
    w_padded = ((w_total + wb - 1) // wb) * wb
    if w_padded != w_total:
        extra = w_padded - w_total
        feat_all = jnp.pad(feat_all, ((0, extra), (0, 0), (0, 0)))
        pos_all = jnp.pad(pos_all, ((0, extra), (0, 0), (0, 0)))
        keep_all = jnp.pad(keep_all, ((0, extra), (0, 0)))

    # bf16 activations in HBM; key keep-mask tiled across heads -> (W, 1, H*T).
    feat_all_b = feat_all.astype(jnp.bfloat16)
    pos_all_b = pos_all.astype(jnp.bfloat16)
    kmask_all = jnp.tile(keep_all[:, None, :], (1, 1, NHEAD))
    return feat_all_b, pos_all_b, kmask_all, keep_all, metas, t_max


def _gather_back(out_all, metas, N, C, dtype):
    results = jnp.zeros((N, C), dtype)
    for _name, w0, W, T, v_inds, s_inds in metas:
        out_g = out_all[w0:w0 + W, :T, :].reshape(W * T, C)
        results = results.at[v_inds].set(out_g[s_inds].astype(dtype))
    return results


def window_attention_forward(feat_2d, pos_dict, ind_dict, pad_mask_dict, params, wb=8):
    """Full WindowAttention.forward: scatter -> merged cosine MHA -> gather."""
    N, C = feat_2d.shape
    weights = _prepare_kernel_params(*params)
    feat_all, pos_all, kmask_all, _keep, metas, t_max = _build_merged_inputs(
        feat_2d, pos_dict, ind_dict, pad_mask_dict, wb)
    consts = _head_constants(t_max)
    out_all = cosine_mha_pallas(feat_all, pos_all, kmask_all, weights, consts, wb=wb)
    return _gather_back(out_all, metas, N, C, feat_2d.dtype)


# ----------------------------------------------------------------------------
# References for correctness checking.
# ----------------------------------------------------------------------------
def _cosine_mha_matched_ref(feat_b, pos_b, keep, weights):
    """Plain-JAX replica of the kernel numerics (same bf16 cast points)."""
    wqk_b, bqk, wv_b, bv, wo_b, bo, inv_tau = weights
    W, T, C = feat_b.shape
    H, Dh = NHEAD, HEAD_DIM
    f32, bf16 = jnp.float32, jnp.bfloat16
    x = feat_b.reshape(-1, C)
    qk_in = (x.astype(f32) + pos_b.reshape(-1, C).astype(f32)).astype(bf16)
    qk = jnp.dot(qk_in, wqk_b, preferred_element_type=f32) + bqk
    v = jnp.dot(x, wv_b, preferred_element_type=f32) + bv
    q, k = qk[:, :C], qk[:, C:]
    ssq = jnp.sum((q * q).reshape(-1, H, Dh), axis=-1)
    ssk = jnp.sum((k * k).reshape(-1, H, Dh), axis=-1)
    rsq = lax.rsqrt(ssq + NORM_EPS) * inv_tau[0, 0]
    rsk = lax.rsqrt(ssk + NORM_EPS)
    qn = q * jnp.repeat(rsq, Dh, axis=-1)
    kn = k * jnp.repeat(rsk, Dh, axis=-1)
    qn_b = qn.astype(bf16).reshape(W, T, H, Dh)
    kn_b = kn.astype(bf16).reshape(W, T, H, Dh)
    v_b = v.astype(bf16).reshape(W, T, H, Dh)
    s = jnp.einsum('wqhd,wkhd->whqk', qn_b, kn_b, preferred_element_type=f32)
    e = jnp.exp(s - inv_tau[0, 0]) * keep[:, None, None, :]
    e_b = e.astype(bf16)
    denom = jnp.sum(e_b.astype(f32), axis=-1)                           # (W, H, Tq)
    o_un = jnp.einsum('whqk,wkhd->wqhd', e_b, v_b, preferred_element_type=f32)
    inv_l = 1.0 / (denom + DENOM_EPS)
    o = o_un * jnp.transpose(inv_l, (0, 2, 1))[..., None]               # (W, Tq, H, Dh)
    out = jnp.dot(o.reshape(-1, C).astype(bf16), wo_b, preferred_element_type=f32) + bo
    return out.reshape(W, T, C)


def _cosine_mha_ref(feat3d, pos3d, pad_mask, params):
    """Exact f32 math, equivalent to the PyTorch cosine MHA forward."""
    in_proj_w, in_proj_b, out_proj_w, out_proj_b, tau = params
    W, T, C = feat3d.shape
    H, Dh = NHEAD, HEAD_DIM
    qk_in = feat3d + pos3d
    q = qk_in @ in_proj_w[:C].T + in_proj_b[:C]
    k = qk_in @ in_proj_w[C:2 * C].T + in_proj_b[C:2 * C]
    v = feat3d @ in_proj_w[2 * C:].T + in_proj_b[2 * C:]
    q = q.reshape(W, T, H, Dh)
    k = k.reshape(W, T, H, Dh)
    v = v.reshape(W, T, H, Dh)
    qn = q * lax.rsqrt(jnp.sum(q * q, -1, keepdims=True) + NORM_EPS)
    kn = k * lax.rsqrt(jnp.sum(k * k, -1, keepdims=True) + NORM_EPS)
    inv_tau = 1.0 / jnp.maximum(tau, TAU_MIN)
    s = jnp.einsum('wqhd,wkhd->whqk', qn, kn) * inv_tau
    s = s + jnp.where(pad_mask, MASK_NEG, 0.0)[:, None, None, :]
    attn = jax.nn.softmax(s, axis=-1)
    o = jnp.einsum('whqk,wkhd->wqhd', attn, v).reshape(W, T, C)
    return o @ out_proj_w.T + out_proj_b


# ----------------------------------------------------------------------------
if __name__ == "__main__":
    key = jax.random.PRNGKey(0)
    ks = jax.random.split(key, 8)
    C = D_MODEL
    WB = 8

    # Two window groups ("names"), as produced by flat2window_v2:
    #   "w16": 10 windows x 16 slots ; "w32": 4 windows x 32 slots
    counts16 = [10, 16, 7, 12, 16, 3, 9, 14, 5, 11]
    counts32 = [20, 32, 17, 25]
    groups_cfg = [("w16", 16, counts16), ("w32", 32, counts32)]

    ind_dict, pad_mask_dict, pos_dict = {}, {}, {}
    vox_start = 0
    for gi, (name, T, counts) in enumerate(groups_cfg):
        W = len(counts)
        v_list, s_list = [], []
        used = np.zeros((W, T), np.bool_)
        for w, cnt in enumerate(counts):
            v_list.append(np.arange(vox_start, vox_start + cnt))
            s_list.append(w * T + np.arange(cnt))
            used[w, :cnt] = True
            vox_start += cnt
        v_inds = jnp.asarray(np.concatenate(v_list), jnp.int32)
        s_inds = jnp.asarray(np.concatenate(s_list), jnp.int32)
        ind_dict[name] = (v_inds, s_inds, W, T)
        pad_mask_dict[name] = jnp.asarray(~used)          # True == padded slot
        pos_dict[name] = jax.random.normal(ks[gi], (W, T, C), jnp.float32)

    N = vox_start                                         # 197 voxels
    feat_2d = jax.random.normal(ks[2], (N, C), jnp.float32)

    # Deterministic synthetic parameters (shapes from nn.MultiheadAttention).
    in_proj_w = 0.1 * jax.random.normal(ks[3], (3 * C, C), jnp.float32)
    in_proj_b = 0.1 * jax.random.normal(ks[4], (3 * C,), jnp.float32)
    out_proj_w = 0.1 * jax.random.normal(ks[5], (C, C), jnp.float32)
    out_proj_b = 0.1 * jax.random.normal(ks[6], (C,), jnp.float32)
    tau = jnp.asarray(0.25, jnp.float32)                  # shared tau
    params = (in_proj_w, in_proj_b, out_proj_w, out_proj_b, tau)

    # Pallas kernel forward.
    out = window_attention_forward(feat_2d, pos_dict, ind_dict, pad_mask_dict,
                                   params, wb=WB)
    out = jax.block_until_ready(out)
    assert bool(jnp.all(jnp.isfinite(out)))

    # Check 1 (tight): numerics-matched JAX reference (same bf16 cast points,
    # same masking / normalisation scheme), gathered the same way.
    weights = _prepare_kernel_params(*params)
    feat_all, pos_all, kmask_all, keep_all, metas, t_max = _build_merged_inputs(
        feat_2d, pos_dict, ind_dict, pad_mask_dict, wb=WB)
    matched_all = _cosine_mha_matched_ref(feat_all, pos_all, keep_all, weights)
    matched = _gather_back(matched_all, metas, N, C, feat_2d.dtype)
    np.testing.assert_allclose(np.asarray(out), np.asarray(matched),
                               rtol=1e-2, atol=3e-3)

    # Check 2 (loose): exact f32 math per group (PyTorch-equivalent forward);
    # the gap is the expected bf16-MXU-operand error.
    ref = jnp.zeros((N, C), jnp.float32)
    for name, (v_inds, s_inds, W, T) in ind_dict.items():
        f3d = flat2window(feat_2d, v_inds, s_inds, W, T)
        o3d = _cosine_mha_ref(f3d, pos_dict[name], pad_mask_dict[name], params)
        ref = ref.at[v_inds].set(o3d.reshape(W * T, C)[s_inds])
    max_abs = float(jnp.max(jnp.abs(out - ref)))
    np.testing.assert_allclose(np.asarray(out), np.asarray(ref),
                               rtol=5e-2, atol=1e-1)
    print(f"max |pallas - f32 ref| = {max_abs:.4e}")
    print("KERNEL_OK")
</pallas_src>

<mosaic_0001>
module attributes {stable_mosaic.version = 11 : i64} {
  func.func @_cosine_mha_kernel(%arg0: i32, %arg1: memref<8x32x128xbf16, #tpu.memory_space<vmem>>, %arg2: memref<8x32x128xbf16, #tpu.memory_space<vmem>>, %arg3: memref<8x1x256xf32, #tpu.memory_space<vmem>>, %arg4: memref<128x256xbf16, #tpu.memory_space<vmem>>, %arg5: memref<1x256xf32, #tpu.memory_space<vmem>>, %arg6: memref<128x128xbf16, #tpu.memory_space<vmem>>, %arg7: memref<1x128xf32, #tpu.memory_space<vmem>>, %arg8: memref<128x128xbf16, #tpu.memory_space<vmem>>, %arg9: memref<1x128xf32, #tpu.memory_space<vmem>>, %arg10: memref<128x8xf32, #tpu.memory_space<vmem>>, %arg11: memref<8x128xf32, #tpu.memory_space<vmem>>, %arg12: memref<256x128xbf16, #tpu.memory_space<vmem>>, %arg13: memref<256x8xbf16, #tpu.memory_space<vmem>>, %arg14: memref<1x1xf32, #tpu.memory_space<smem>>, %arg15: memref<8x32x128xf32, #tpu.memory_space<vmem>>) attributes {dimension_semantics = [#tpu.dimension_semantics<parallel>], iteration_bounds = array<i64: 2>, scalar_prefetch = 0 : i64, scratch_operands = 0 : i64, tpu.core_type = #tpu.core_type<tc>, window_params = [{transform_indices = @transform_0, window_bounds = array<i64: 8, 32, 128>}, {transform_indices = @transform_1, window_bounds = array<i64: 8, 32, 128>}, {transform_indices = @transform_2, window_bounds = array<i64: 8, 1, 256>}, {pipeline_mode = #tpu.pipeline_mode<synchronous>, transform_indices = @transform_3, window_bounds = array<i64: 128, 256>}, {pipeline_mode = #tpu.pipeline_mode<synchronous>, transform_indices = @transform_4, window_bounds = array<i64: 1, 256>}, {pipeline_mode = #tpu.pipeline_mode<synchronous>, transform_indices = @transform_5, window_bounds = array<i64: 128, 128>}, {pipeline_mode = #tpu.pipeline_mode<synchronous>, transform_indices = @transform_6, window_bounds = array<i64: 1, 128>}, {pipeline_mode = #tpu.pipeline_mode<synchronous>, transform_indices = @transform_7, window_bounds = array<i64: 128, 128>}, {pipeline_mode = #tpu.pipeline_mode<synchronous>, transform_indices = @transform_8, window_bounds = array<i64: 1, 128>}, {pipeline_mode = #tpu.pipeline_mode<synchronous>, transform_indices = @transform_9, window_bounds = array<i64: 128, 8>}, {pipeline_mode = #tpu.pipeline_mode<synchronous>, transform_indices = @transform_10, window_bounds = array<i64: 8, 128>}, {pipeline_mode = #tpu.pipeline_mode<synchronous>, transform_indices = @transform_11, window_bounds = array<i64: 256, 128>}, {pipeline_mode = #tpu.pipeline_mode<synchronous>, transform_indices = @transform_12, window_bounds = array<i64: 256, 8>}, {transform_indices = @transform_13, window_bounds = array<i64: 1, 1>}, {transform_indices = @transform_14, window_bounds = array<i64: 8, 32, 128>}]} {
    %c0 = arith.constant 0 : index
    %c0_0 = arith.constant 0 : index
    %c0_1 = arith.constant 0 : index
    %0 = vector.load %arg1[%c0, %c0_0, %c0_1] : memref<8x32x128xbf16, #tpu.memory_space<vmem>>, vector<8x32x128xbf16>
    %1 = vector.shape_cast %0 : vector<8x32x128xbf16> to vector<256x128xbf16>
    %c0_2 = arith.constant 0 : index
    %c0_3 = arith.constant 0 : index
    %c0_4 = arith.constant 0 : index
    %2 = vector.load %arg2[%c0_2, %c0_3, %c0_4] : memref<8x32x128xbf16, #tpu.memory_space<vmem>>, vector<8x32x128xbf16>
    %3 = vector.shape_cast %2 : vector<8x32x128xbf16> to vector<256x128xbf16>
    %4 = arith.extf %1 : vector<256x128xbf16> to vector<256x128xf32>
    %5 = arith.extf %3 : vector<256x128xbf16> to vector<256x128xf32>
    %6 = arith.addf %4, %5 : vector<256x128xf32>
    %7 = arith.truncf %6 : vector<256x128xf32> to vector<256x128xbf16>
    %c0_5 = arith.constant 0 : index
    %c0_6 = arith.constant 0 : index
    %8 = vector.load %arg4[%c0_5, %c0_6] : memref<128x256xbf16, #tpu.memory_space<vmem>>, vector<128x256xbf16>
    %cst = arith.constant dense<0.000000e+00> : vector<256x256xf32>
    %9 = tpu.matmul %7, %8, %cst {dimension_numbers = #tpu.dot_dimension_numbers<[1], [0], [0], [1], [0, 0, 1, 1], [], []>} : vector<256x128xbf16>, vector<128x256xbf16>, vector<256x256xf32> -> vector<256x256xf32>
    %c0_7 = arith.constant 0 : index
    %c0_8 = arith.constant 0 : index
    %10 = vector.load %arg5[%c0_7, %c0_8] : memref<1x256xf32, #tpu.memory_space<vmem>>, vector<1x256xf32>
    %11 = vector.broadcast %10 : vector<1x256xf32> to vector<256x256xf32>
    %12 = arith.addf %9, %11 : vector<256x256xf32>
    %c0_9 = arith.constant 0 : index
    %c0_10 = arith.constant 0 : index
    %13 = vector.load %arg6[%c0_9, %c0_10] : memref<128x128xbf16, #tpu.memory_space<vmem>>, vector<128x128xbf16>
    %cst_11 = arith.constant dense<0.000000e+00> : vector<256x128xf32>
    %14 = tpu.matmul %1, %13, %cst_11 {dimension_numbers = #tpu.dot_dimension_numbers<[1], [0], [0], [1], [0, 0, 1, 1], [], []>} : vector<256x128xbf16>, vector<128x128xbf16>, vector<256x128xf32> -> vector<256x128xf32>
    %c0_12 = arith.constant 0 : index
    %c0_13 = arith.constant 0 : index
    %15 = vector.load %arg7[%c0_12, %c0_13] : memref<1x128xf32, #tpu.memory_space<vmem>>, vector<1x128xf32>
    %16 = vector.broadcast %15 : vector<1x128xf32> to vector<256x128xf32>
    %17 = arith.addf %14, %16 : vector<256x128xf32>
    %18 = vector.extract_strided_slice %12 {offsets = [0, 0], sizes = [256, 128], strides = [1, 1]} : vector<256x256xf32> to vector<256x128xf32>
    %19 = vector.extract_strided_slice %12 {offsets = [0, 128], sizes = [256, 128], strides = [1, 1]} : vector<256x256xf32> to vector<256x128xf32>
    %c0_14 = arith.constant 0 : index
    %c0_15 = arith.constant 0 : index
    %20 = vector.load %arg10[%c0_14, %c0_15] : memref<128x8xf32, #tpu.memory_space<vmem>>, vector<128x8xf32>
    %c0_16 = arith.constant 0 : index
    %c0_17 = arith.constant 0 : index
    %21 = vector.load %arg11[%c0_16, %c0_17] : memref<8x128xf32, #tpu.memory_space<vmem>>, vector<8x128xf32>
    %c0_18 = arith.constant 0 : index
    %c0_19 = arith.constant 0 : index
    %22 = memref.load %arg14[%c0_18, %c0_19] : memref<1x1xf32, #tpu.memory_space<smem>>
    %23 = arith.mulf %18, %18 : vector<256x128xf32>
    %cst_20 = arith.constant dense<0.000000e+00> : vector<256x8xf32>
    %24 = tpu.matmul %23, %20, %cst_20 {dimension_numbers = #tpu.dot_dimension_numbers<[1], [0], [0], [1], [0, 0, 1, 1], [], []>} : vector<256x128xf32>, vector<128x8xf32>, vector<256x8xf32> -> vector<256x8xf32>
    %25 = arith.mulf %19, %19 : vector<256x128xf32>
    %cst_21 = arith.constant dense<0.000000e+00> : vector<256x8xf32>
    %26 = tpu.matmul %25, %20, %cst_21 {dimension_numbers = #tpu.dot_dimension_numbers<[1], [0], [0], [1], [0, 0, 1, 1], [], []>} : vector<256x128xf32>, vector<128x8xf32>, vector<256x8xf32> -> vector<256x8xf32>
    %cst_22 = arith.constant 9.99999996E-13 : f32
    %27 = vector.broadcast %cst_22 : f32 to vector<256x8xf32>
    %28 = arith.addf %24, %27 : vector<256x8xf32>
    %29 = math.rsqrt %28 : vector<256x8xf32>
    %30 = vector.broadcast %22 : f32 to vector<256x8xf32>
    %31 = arith.mulf %29, %30 : vector<256x8xf32>
    %cst_23 = arith.constant 9.99999996E-13 : f32
    %32 = vector.broadcast %cst_23 : f32 to vector<256x8xf32>
    %33 = arith.addf %26, %32 : vector<256x8xf32>
    %34 = math.rsqrt %33 : vector<256x8xf32>
    %cst_24 = arith.constant dense<0.000000e+00> : vector<256x128xf32>
    %35 = tpu.matmul %31, %21, %cst_24 {dimension_numbers = #tpu.dot_dimension_numbers<[1], [0], [0], [1], [0, 0, 1, 1], [], []>} : vector<256x8xf32>, vector<8x128xf32>, vector<256x128xf32> -> vector<256x128xf32>
    %36 = arith.mulf %18, %35 : vector<256x128xf32>
    %cst_25 = arith.constant dense<0.000000e+00> : vector<256x128xf32>
    %37 = tpu.matmul %34, %21, %cst_25 {dimension_numbers = #tpu.dot_dimension_numbers<[1], [0], [0], [1], [0, 0, 1, 1], [], []>} : vector<256x8xf32>, vector<8x128xf32>, vector<256x128xf32> -> vector<256x128xf32>
    %38 = arith.mulf %19, %37 : vector<256x128xf32>
    %c0_26 = arith.constant 0 : index
    %c0_27 = arith.constant 0 : index
    %39 = vector.load %arg12[%c0_26, %c0_27] : memref<256x128xbf16, #tpu.memory_space<vmem>>, vector<256x128xbf16>
    %40 = arith.truncf %38 : vector<256x128xf32> to vector<256x128xbf16>
    %41 = vector.shape_cast %40 : vector<256x128xbf16> to vector<8x32x128xbf16>
    %42 = arith.truncf %17 : vector<256x128xf32> to vector<256x128xbf16>
    %43 = vector.shape_cast %42 : vector<256x128xbf16> to vector<8x32x128xbf16>
    %44 = tpu.concatenate %41, %41, %41, %41, %41, %41, %41, %41 in 1 : vector<8x32x128xbf16>, vector<8x32x128xbf16>, vector<8x32x128xbf16>, vector<8x32x128xbf16>, vector<8x32x128xbf16>, vector<8x32x128xbf16>, vector<8x32x128xbf16>, vector<8x32x128xbf16> -> vector<8x256x128xbf16>
    %45 = vector.shape_cast %39 : vector<256x128xbf16> to vector<1x256x128xbf16>
    %46 = vector.broadcast %45 : vector<1x256x128xbf16> to vector<8x256x128xbf16>
    %47 = arith.mulf %44, %46 : vector<8x256x128xbf16>
    %48 = tpu.concatenate %43, %43, %43, %43, %43, %43, %43, %43 in 1 : vector<8x32x128xbf16>, vector<8x32x128xbf16>, vector<8x32x128xbf16>, vector<8x32x128xbf16>, vector<8x32x128xbf16>, vector<8x32x128xbf16>, vector<8x32x128xbf16>, vector<8x32x128xbf16> -> vector<8x256x128xbf16>
    %49 = vector.shape_cast %39 : vector<256x128xbf16> to vector<1x256x128xbf16>
    %50 = vector.broadcast %49 : vector<1x256x128xbf16> to vector<8x256x128xbf16>
    %51 = arith.mulf %48, %50 : vector<8x256x128xbf16>
    %52 = arith.truncf %36 : vector<256x128xf32> to vector<256x128xbf16>
    %53 = vector.shape_cast %52 : vector<256x128xbf16> to vector<8x32x128xbf16>
    "tpu.trace_start"() <{level = 10 : i32, message = "wqc,wnc->wqn"}> : () -> ()
    %cst_28 = arith.constant dense<0.000000e+00> : vector<8x32x256xf32>
    %54 = tpu.matmul %53, %47, %cst_28 {dimension_numbers = #tpu.dot_dimension_numbers<[2], [2], [1], [1], [0, 0, 0, 1, 1, 1], [0], [0]>} : vector<8x32x128xbf16>, vector<8x256x128xbf16>, vector<8x32x256xf32> -> vector<8x32x256xf32>
    "tpu.trace_stop"() : () -> ()
    %55 = vector.broadcast %22 : f32 to vector<8x32x256xf32>
    %56 = arith.subf %54, %55 : vector<8x32x256xf32>
    %57 = math.exp %56 : vector<8x32x256xf32>
    %c0_29 = arith.constant 0 : index
    %c0_30 = arith.constant 0 : index
    %c0_31 = arith.constant 0 : index
    %58 = vector.load %arg3[%c0_29, %c0_30, %c0_31] : memref<8x1x256xf32, #tpu.memory_space<vmem>>, vector<8x1x256xf32>
    %59 = vector.broadcast %58 : vector<8x1x256xf32> to vector<8x32x256xf32>
    %60 = arith.mulf %57, %59 : vector<8x32x256xf32>
    %61 = arith.truncf %60 : vector<8x32x256xf32> to vector<8x32x256xbf16>
    %62 = vector.shape_cast %61 : vector<8x32x256xbf16> to vector<256x256xbf16>
    %c0_32 = arith.constant 0 : index
    %c0_33 = arith.constant 0 : index
    %63 = vector.load %arg13[%c0_32, %c0_33] : memref<256x8xbf16, #tpu.memory_space<vmem>>, vector<256x8xbf16>
    %cst_34 = arith.constant dense<0.000000e+00> : vector<256x8xf32>
    %64 = tpu.matmul %62, %63, %cst_34 {dimension_numbers = #tpu.dot_dimension_numbers<[1], [0], [0], [1], [0, 0, 1, 1], [], []>} : vector<256x256xbf16>, vector<256x8xbf16>, vector<256x8xf32> -> vector<256x8xf32>
    %cst_35 = arith.constant 9.99999968E-21 : f32
    %65 = vector.broadcast %cst_35 : f32 to vector<256x8xf32>
    %66 = arith.addf %64, %65 : vector<256x8xf32>
    %cst_36 = arith.constant 1.000000e+00 : f32
    %67 = vector.broadcast %cst_36 : f32 to vector<256x8xf32>
    %68 = arith.divf %67, %66 : vector<256x8xf32>
    "tpu.trace_start"() <{level = 10 : i32, message = "wqn,wnc->wqc"}> : () -> ()
    %cst_37 = arith.constant dense<0.000000e+00> : vector<8x32x128xf32>
    %69 = tpu.matmul %61, %51, %cst_37 {dimension_numbers = #tpu.dot_dimension_numbers<[2], [1], [1], [2], [0, 0, 0, 1, 1, 2], [0], [0]>} : vector<8x32x256xbf16>, vector<8x256x128xbf16>, vector<8x32x128xf32> -> vector<8x32x128xf32>
    "tpu.trace_stop"() : () -> ()
    %70 = vector.shape_cast %69 : vector<8x32x128xf32> to vector<256x128xf32>
    %cst_38 = arith.constant dense<0.000000e+00> : vector<256x128xf32>
    %71 = tpu.matmul %68, %21, %cst_38 {dimension_numbers = #tpu.dot_dimension_numbers<[1], [0], [0], [1], [0, 0, 1, 1], [], []>} : vector<256x8xf32>, vector<8x128xf32>, vector<256x128xf32> -> vector<256x128xf32>
    %72 = arith.mulf %70, %71 : vector<256x128xf32>
    %73 = arith.truncf %72 : vector<256x128xf32> to vector<256x128xbf16>
    %c0_39 = arith.constant 0 : index
    %c0_40 = arith.constant 0 : index
    %74 = vector.load %arg8[%c0_39, %c0_40] : memref<128x128xbf16, #tpu.memory_space<vmem>>, vector<128x128xbf16>
    %cst_41 = arith.constant dense<0.000000e+00> : vector<256x128xf32>
    %75 = tpu.matmul %73, %74, %cst_41 {dimension_numbers = #tpu.dot_dimension_numbers<[1], [0], [0], [1], [0, 0, 1, 1], [], []>} : vector<256x128xbf16>, vector<128x128xbf16>, vector<256x128xf32> -> vector<256x128xf32>
    %c0_42 = arith.constant 0 : index
    %c0_43 = arith.constant 0 : index
    %76 = vector.load %arg9[%c0_42, %c0_43] : memref<1x128xf32, #tpu.memory_space<vmem>>, vector<1x128xf32>
    %77 = vector.broadcast %76 : vector<1x128xf32> to vector<256x128xf32>
    %78 = arith.addf %75, %77 : vector<256x128xf32>
    %79 = vector.shape_cast %78 : vector<256x128xf32> to vector<8x32x128xf32>
    %c0_44 = arith.constant 0 : index
    %c0_45 = arith.constant 0 : index
    %c0_46 = arith.constant 0 : index
    %80 = vector.load %arg15[%c0_44, %c0_45, %c0_46] : memref<8x32x128xf32, #tpu.memory_space<vmem>>, vector<8x32x128xf32>
    tpu.vector_store %arg15[%c0_44, %c0_45, %c0_46], %79 {strides = array<i32>} : memref<8x32x128xf32, #tpu.memory_space<vmem>>, vector<8x32x128xf32>,
    return
  }
  func.func @transform_0(%arg0: i32) -> (i32, i32, i32) {
    %c0_i32 = arith.constant 0 : i32
    %c0_i32_0 = arith.constant 0 : i32
    %c0_i32_1 = arith.constant 0 : i32
    return %arg0, %c0_i32, %c0_i32_0 : i32, i32, i32
  }
  func.func @transform_1(%arg0: i32) -> (i32, i32, i32) {
    %c0_i32 = arith.constant 0 : i32
    %c0_i32_0 = arith.constant 0 : i32
    %c0_i32_1 = arith.constant 0 : i32
    return %arg0, %c0_i32, %c0_i32_0 : i32, i32, i32
  }
  func.func @transform_2(%arg0: i32) -> (i32, i32, i32) {
    %c0_i32 = arith.constant 0 : i32
    %c0_i32_0 = arith.constant 0 : i32
    %c0_i32_1 = arith.constant 0 : i32
    return %arg0, %c0_i32, %c0_i32_0 : i32, i32, i32
  }
  func.func @transform_3(%arg0: i32) -> (i32, i32) {
    %c0_i32 = arith.constant 0 : i32
    %c0_i32_0 = arith.constant 0 : i32
    %c0_i32_1 = arith.constant 0 : i32
    return %c0_i32, %c0_i32_0 : i32, i32
  }
  func.func @transform_4(%arg0: i32) -> (i32, i32) {
    %c0_i32 = arith.constant 0 : i32
    %c0_i32_0 = arith.constant 0 : i32
    %c0_i32_1 = arith.constant 0 : i32
    return %c0_i32, %c0_i32_0 : i32, i32
  }
  func.func @transform_5(%arg0: i32) -> (i32, i32) {
    %c0_i32 = arith.constant 0 : i32
    %c0_i32_0 = arith.constant 0 : i32
    %c0_i32_1 = arith.constant 0 : i32
    return %c0_i32, %c0_i32_0 : i32, i32
  }
  func.func @transform_6(%arg0: i32) -> (i32, i32) {
    %c0_i32 = arith.constant 0 : i32
    %c0_i32_0 = arith.constant 0 : i32
    %c0_i32_1 = arith.constant 0 : i32
    return %c0_i32, %c0_i32_0 : i32, i32
  }
  func.func @transform_7(%arg0: i32) -> (i32, i32) {
    %c0_i32 = arith.constant 0 : i32
    %c0_i32_0 = arith.constant 0 : i32
    %c0_i32_1 = arith.constant 0 : i32
    return %c0_i32, %c0_i32_0 : i32, i32
  }
  func.func @transform_8(%arg0: i32) -> (i32, i32) {
    %c0_i32 = arith.constant 0 : i32
    %c0_i32_0 = arith.constant 0 : i32
    %c0_i32_1 = arith.constant 0 : i32
    return %c0_i32, %c0_i32_0 : i32, i32
  }
  func.func @transform_9(%arg0: i32) -> (i32, i32) {
    %c0_i32 = arith.constant 0 : i32
    %c0_i32_0 = arith.constant 0 : i32
    %c0_i32_1 = arith.constant 0 : i32
    return %c0_i32, %c0_i32_0 : i32, i32
  }
  func.func @transform_10(%arg0: i32) -> (i32, i32) {
    %c0_i32 = arith.constant 0 : i32
    %c0_i32_0 = arith.constant 0 : i32
    %c0_i32_1 = arith.constant 0 : i32
    return %c0_i32, %c0_i32_0 : i32, i32
  }
  func.func @transform_11(%arg0: i32) -> (i32, i32) {
    %c0_i32 = arith.constant 0 : i32
    %c0_i32_0 = arith.constant 0 : i32
    %c0_i32_1 = arith.constant 0 : i32
    return %c0_i32, %c0_i32_0 : i32, i32
  }
  func.func @transform_12(%arg0: i32) -> (i32, i32) {
    %c0_i32 = arith.constant 0 : i32
    %c0_i32_0 = arith.constant 0 : i32
    %c0_i32_1 = arith.constant 0 : i32
    return %c0_i32, %c0_i32_0 : i32, i32
  }
  func.func @transform_13(%arg0: i32) -> (i32, i32) {
    %c0_i32 = arith.constant 0 : i32
    %c0_i32_0 = arith.constant 0 : i32
    %c0_i32_1 = arith.constant 0 : i32
    return %c0_i32, %c0_i32_0 : i32, i32
  }
  func.func @transform_14(%arg0: i32) -> (i32, i32, i32) {
    %c0_i32 = arith.constant 0 : i32
    %c0_i32_0 = arith.constant 0 : i32
    %c0_i32_1 = arith.constant 0 : i32
    return %arg0, %c0_i32, %c0_i32_0 : i32, i32, i32
  }
}

</mosaic_0001>

<llo_original>
// kernel: tpu_custom_call.1
$region0: #{tpu_custom_call.1}
  #allocation0 [shape = 'u32[]', space=smem, size = 0x4, offset = 0x4, fixed_abs, tag = 'smem constant byte address 0x4 - core index']
  #allocation1 [shape = 'u32[144,128]{1,0:T(1,128)}', space=vmem, size = 0x12000, scoped, tag = 'internal scratch']
  #allocation2 [shape = 'f32[1,1]{1,0:T(1,128)S(6)}', space=smem, size = 0x200, scoped, tag = 'scoped memory for tpu_custom_call.1']
  %s0 = inlined_call_operand.vmem [shape: bf16[16,32,128], index: 0, kind: input, shape index: {}]
  %s1 = inlined_call_operand.hbm [shape: bf16[16,32,128], index: 1, kind: input, shape index: {}]
  %s2 = inlined_call_operand.hbm [shape: f32[16,1,256], index: 2, kind: input, shape index: {}]
  %s3 = inlined_call_operand.hbm [shape: bf16[128,256], index: 3, kind: input, shape index: {}]
  %s4 = inlined_call_operand.vmem [shape: f32[1,256], index: 4, kind: input, shape index: {}]
  %s5 = inlined_call_operand.hbm [shape: bf16[128,128], index: 5, kind: input, shape index: {}]
  %s6 = inlined_call_operand.vmem [shape: f32[1,128], index: 6, kind: input, shape index: {}]
  %s7 = inlined_call_operand.hbm [shape: bf16[128,128], index: 7, kind: input, shape index: {}]
  %s8 = inlined_call_operand.vmem [shape: f32[1,128], index: 8, kind: input, shape index: {}]
  %s9 = inlined_call_operand.vmem [shape: f32[128,8], index: 9, kind: input, shape index: {}]
  %s10 = inlined_call_operand.vmem [shape: f32[8,128], index: 10, kind: input, shape index: {}]
  %s11 = inlined_call_operand.hbm [shape: bf16[256,128], index: 11, kind: input, shape index: {}]
  %s12 = inlined_call_operand.vmem [shape: bf16[256,8], index: 12, kind: input, shape index: {}]
  %s13 = inlined_call_operand.<no memory space> [shape: f32[1,1], index: 13, kind: input, shape index: {}]
  %s14 = inlined_call_operand.hbm [shape: f32[16,32,128], index: 14, kind: output, shape index: {}]
  %s15 = sld [smem:[#allocation0]]
  $region113: #{tpu_custom_call.1} parent=0
    _
  %s17 = ssub.s32 1, %s15
  %s18 = scalar_select 0, %s17, %s15
  %19 = sst [smem:[#allocation2]] %s13
  $region1: #{tpu_custom_call.1} parent=0
    #allocation3 [shape = 'u8[131072]{0}', space=vmem, size = 0x20000, scoped, tag = 'input window, operand 1']
    #allocation4 [shape = 's32[2]{0}', space=sflag, size = 0x8, scoped, tag = 'scoped memory for tpu_custom_call.1']
    #allocation5 [shape = 's32[2]{0}', space=sflag, size = 0x8, scoped, tag = 'scoped memory for tpu_custom_call.1']
    #allocation6 [shape = 'u8[16384]{0}', space=vmem, size = 0x4000, scoped, tag = 'input window, operand 2']
    #allocation7 [shape = 's32[2]{0}', space=sflag, size = 0x8, scoped, tag = 'scoped memory for tpu_custom_call.1']
    #allocation8 [shape = 'u8[65536]{0}', space=vmem, size = 0x10000, scoped, tag = 'input window, operand 3, single buffered']
    #allocation9 [shape = 'u8[32768]{0}', space=vmem, size = 0x8000, scoped, tag = 'input window, operand 5, single buffered']
    #allocation10 [shape = 's32[1]{0}', space=sflag, size = 0x4, scoped, tag = 'scoped memory for tpu_custom_call.1']
    #allocation11 [shape = 'u8[32768]{0}', space=vmem, size = 0x8000, scoped, tag = 'input window, operand 7, single buffered']
    #allocation12 [shape = 'u8[65536]{0}', space=vmem, size = 0x10000, scoped, tag = 'input window, operand 11, single buffered']
    #allocation13 [shape = 's32[1]{0}', space=sflag, size = 0x4, scoped, tag = 'scoped memory for tpu_custom_call.1']
    #allocation14 [shape = 'u8[262144]{0}', space=vmem, size = 0x40000, scoped, tag = 'output window, operand 0']
    %20 = vsyncpa [#allocation4], 0
    %s21 = scalar_lea.sflag [#allocation4], 1
    %22 = vsyncpa %s21, 0
    %23 = vsyncpa [#allocation7], 0
    %s24 = scalar_lea.sflag [#allocation7], 1
    %25 = vsyncpa %s24, 0
    %26 = vsyncpa [#allocation10], 0
    %27 = vsyncpa [#allocation13], 0
    %28 = vsyncpa [#allocation5], 0
    %s29 = scalar_lea.sflag [#allocation5], 1
    %30 = vsyncpa %s29, 0
    loop: start=0, step=1, limit=4
    $region2: #{tpu_custom_call.1} parent=1 // loop_pre_header
      _
    $region3: #{tpu_custom_call.1} parent=1 // loop_header
      %s32 = sphi 0, %s36
      %p33 = scmp.ge.s32.totalorder %s32, 4
      %s42 = sphi 0, %s44
      %s45 = sphi 0, %s42
      %s46 = sphi 0, %s45
      %s62 = sphi 0, %s46
      %s68 = sphi 0, %s70
      %s71 = sphi 0, %s68
      %s72 = sphi 0, %s71
      %s88 = sphi 0, %s72
      %s94 = sphi 0, %s96
      %s97 = sphi 0, %s94
      %s98 = sphi 0, %s97
      %s114 = sphi 0, %s98
      %s118 = sphi 0, %s118
      %s120 = sphi 0, %s118
      %s121 = sphi 0, %s120
      %s135 = sphi 0, %s121
      %s139 = sphi 0, %s139
      %s141 = sphi 0, %s139
      %s142 = sphi 0, %s141
      %s156 = sphi 0, %s142
      %s160 = sphi 0, %s160
      %s162 = sphi 0, %s160
      %s163 = sphi 0, %s162
      %s177 = sphi 0, %s163
      %s181 = sphi 0, %s181
      %s183 = sphi 0, %s181
      %s184 = sphi 0, %s183
      %s198 = sphi 0, %s184
      %s202 = sphi 0, %s202
      %s204 = sphi 0, %s202
      %s205 = sphi 0, %s204
      %s219 = sphi 0, %s205
      %s223 = sphi 0, %s223
      %s225 = sphi 0, %s223
      %s226 = sphi 0, %s225
      %s240 = sphi 0, %s226
      %s244 = sphi 0, %s244
      %s246 = sphi 0, %s244
      %s247 = sphi 0, %s246
      %s261 = sphi 0, %s247
      %s265 = sphi 0, %s265
      %s267 = sphi 0, %s265
      %s268 = sphi 0, %s267
      %s282 = sphi 0, %s268
      %s286 = sphi 0, %s286
      %s288 = sphi 0, %s286
      %s289 = sphi 0, %s288
      %s303 = sphi 0, %s289
      %s307 = sphi 0, %s307
      %s309 = sphi 0, %s307
      %s310 = sphi 0, %s309
      %s324 = sphi 0, %s310
      %s328 = sphi 0, %s328
      %s330 = sphi 0, %s328
      %s331 = sphi 0, %s330
      %s345 = sphi 0, %s331
      %s351 = sphi 0, %s353
      %s354 = sphi 0, %s351
      %s355 = sphi 0, %s354
      %s371 = sphi 0, %s355
    $region4: #{tpu_custom_call.1} parent=1 // loop_header_branch
      %35 = sbr.rel (%p33) target = $region8
    $region5: #{tpu_custom_call.1} parent=1 // loop_body
      %s37 = ssub.s32 %s32, 1
      %s38 = ssub.s32 %s32, 2
      %s39 = sadd.s32 %s32, 1
      %s40 = ssub.s32 %s32, %s39
      %p41 = scmp.eq.s32.totalorder %s40, 0
      %s43 = sadd.s32 %s42, 1
      %s44 = scalar_select %p41, %s42, %s43
      %p47 = pneg %p41
      %p48 = scmp.eq.s32.totalorder %s32, 1
      %p49 = por %p47, %p48
      %p50 = scmp.ne.s32.totalorder %s42, %s45
      %p51 = scmp.eq.s32.totalorder %s32, 0
      %p52 = por %p50, %p51
      %p53 = scmp.ne.s32.totalorder %s42, %s45
      %p54 = scmp.eq.s32.totalorder %s37, 1
      %p55 = por %p53, %p54
      %p56 = scmp.ne.s32.totalorder %s45, %s46
      %p57 = scmp.eq.s32.totalorder %s37, 0
      %p58 = por %p56, %p57
      %p59 = scmp.ne.s32.totalorder %s45, %s46
      %p60 = scmp.eq.s32.totalorder %s38, 1
      %p61 = por %p59, %p60
      %p63 = scmp.ne.s32.totalorder %s46, %s62
      %p64 = scmp.eq.s32.totalorder %s38, 0
      %p65 = por %p63, %p64
      %s66 = ssub.s32 %s32, %s39
      %p67 = scmp.eq.s32.totalorder %s66, 0
      %s69 = sadd.s32 %s68, 1
      %s70 = scalar_select %p67, %s68, %s69
      %p73 = pneg %p67
      %p74 = scmp.eq.s32.totalorder %s32, 1
      %p75 = por %p73, %p74
      %p76 = scmp.ne.s32.totalorder %s68, %s71
      %p77 = scmp.eq.s32.totalorder %s32, 0
      %p78 = por %p76, %p77
      %p79 = scmp.ne.s32.totalorder %s68, %s71
      %p80 = scmp.eq.s32.totalorder %s37, 1
      %p81 = por %p79, %p80
      %p82 = scmp.ne.s32.totalorder %s71, %s72
      %p83 = scmp.eq.s32.totalorder %s37, 0
      %p84 = por %p82, %p83
      %p85 = scmp.ne.s32.totalorder %s71, %s72
      %p86 = scmp.eq.s32.totalorder %s38, 1
      %p87 = por %p85, %p86
      %p89 = scmp.ne.s32.totalorder %s72, %s88
      %p90 = scmp.eq.s32.totalorder %s38, 0
      %p91 = por %p89, %p90
      %s92 = ssub.s32 %s32, %s39
      %p93 = scmp.eq.s32.totalorder %s92, 0
      %s95 = sadd.s32 %s94, 1
      %s96 = scalar_select %p93, %s94, %s95
      %p99 = pneg %p93
      %p100 = scmp.eq.s32.totalorder %s32, 1
      %p101 = por %p99, %p100
      %p102 = scmp.ne.s32.totalorder %s94, %s97
      %p103 = scmp.eq.s32.totalorder %s32, 0
      %p104 = por %p102, %p103
      %p105 = scmp.ne.s32.totalorder %s94, %s97
      %p106 = scmp.eq.s32.totalorder %s37, 1
      %p107 = por %p105, %p106
      %p108 = scmp.ne.s32.totalorder %s97, %s98
      %p109 = scmp.eq.s32.totalorder %s37, 0
      %p110 = por %p108, %p109
      %p111 = scmp.ne.s32.totalorder %s97, %s98
      %p112 = scmp.eq.s32.totalorder %s38, 1
      %p113 = por %p111, %p112
      %p115 = scmp.ne.s32.totalorder %s98, %s114
      %p116 = scmp.eq.s32.totalorder %s38, 0
      %p117 = por %p115, %p116
      %s119 = sadd.s32 %s118, 1
      %p122 = scmp.eq.s32.totalorder %s32, 1
      %p123 = scmp.ne.s32.totalorder %s118, %s120
      %p124 = scmp.eq.s32.totalorder %s32, 0
      %p125 = por %p123, %p124
      %p126 = scmp.ne.s32.totalorder %s118, %s120
      %p127 = scmp.eq.s32.totalorder %s37, 1
      %p128 = por %p126, %p127
      %p129 = scmp.ne.s32.totalorder %s120, %s121
      %p130 = scmp.eq.s32.totalorder %s37, 0
      %p131 = por %p129, %p130
      %p132 = scmp.ne.s32.totalorder %s120, %s121
      %p133 = scmp.eq.s32.totalorder %s38, 1
      %p134 = por %p132, %p133
      %p136 = scmp.ne.s32.totalorder %s121, %s135
      %p137 = scmp.eq.s32.totalorder %s38, 0
      %p138 = por %p136, %p137
      %s140 = sadd.s32 %s139, 1
      %p143 = scmp.eq.s32.totalorder %s32, 1
      %p144 = scmp.ne.s32.totalorder %s139, %s141
      %p145 = scmp.eq.s32.totalorder %s32, 0
      %p146 = por %p144, %p145
      %p147 = scmp.ne.s32.totalorder %s139, %s141
      %p148 = scmp.eq.s32.totalorder %s37, 1
      %p149 = por %p147, %p148
      %p150 = scmp.ne.s32.totalorder %s141, %s142
      %p151 = scmp.eq.s32.totalorder %s37, 0
      %p152 = por %p150, %p151
      %p153 = scmp.ne.s32.totalorder %s141, %s142
      %p154 = scmp.eq.s32.totalorder %s38, 1
      %p155 = por %p153, %p154
      %p157 = scmp.ne.s32.totalorder %s142, %s156
      %p158 = scmp.eq.s32.totalorder %s38, 0
      %p159 = por %p157, %p158
      %s161 = sadd.s32 %s160, 1
      %p164 = scmp.eq.s32.totalorder %s32, 1
      %p165 = scmp.ne.s32.totalorder %s160, %s162
      %p166 = scmp.eq.s32.totalorder %s32, 0
      %p167 = por %p165, %p166
      %p168 = scmp.ne.s32.totalorder %s160, %s162
      %p169 = scmp.eq.s32.totalorder %s37, 1
      %p170 = por %p168, %p169
      %p171 = scmp.ne.s32.totalorder %s162, %s163
      %p172 = scmp.eq.s32.totalorder %s37, 0
      %p173 = por %p171, %p172
      %p174 = scmp.ne.s32.totalorder %s162, %s163
      %p175 = scmp.eq.s32.totalorder %s38, 1
      %p176 = por %p174, %p175
      %p178 = scmp.ne.s32.totalorder %s163, %s177
      %p179 = scmp.eq.s32.totalorder %s38, 0
      %p180 = por %p178, %p179
      %s182 = sadd.s32 %s181, 1
      %p185 = scmp.eq.s32.totalorder %s32, 1
      %p186 = scmp.ne.s32.totalorder %s181, %s183
      %p187 = scmp.eq.s32.totalorder %s32, 0
      %p188 = por %p186, %p187
      %p189 = scmp.ne.s32.totalorder %s181, %s183
      %p190 = scmp.eq.s32.totalorder %s37, 1
      %p191 = por %p189, %p190
      %p192 = scmp.ne.s32.totalorder %s183, %s184
      %p193 = scmp.eq.s32.totalorder %s37, 0
      %p194 = por %p192, %p193
      %p195 = scmp.ne.s32.totalorder %s183, %s184
      %p196 = scmp.eq.s32.totalorder %s38, 1
      %p197 = por %p195, %p196
      %p199 = scmp.ne.s32.totalorder %s184, %s198
      %p200 = scmp.eq.s32.totalorder %s38, 0
      %p201 = por %p199, %p200
      %s203 = sadd.s32 %s202, 1
      %p206 = scmp.eq.s32.totalorder %s32, 1
      %p207 = scmp.ne.s32.totalorder %s202, %s204
      %p208 = scmp.eq.s32.totalorder %s32, 0
      %p209 = por %p207, %p208
      %p210 = scmp.ne.s32.totalorder %s202, %s204
      %p211 = scmp.eq.s32.totalorder %s37, 1
      %p212 = por %p210, %p211
      %p213 = scmp.ne.s32.totalorder %s204, %s205
      %p214 = scmp.eq.s32.totalorder %s37, 0
      %p215 = por %p213, %p214
      %p216 = scmp.ne.s32.totalorder %s204, %s205
      %p217 = scmp.eq.s32.totalorder %s38, 1
      %p218 = por %p216, %p217
      %p220 = scmp.ne.s32.totalorder %s205, %s219
      %p221 = scmp.eq.s32.totalorder %s38, 0
      %p222 = por %p220, %p221
      %s224 = sadd.s32 %s223, 1
      %p227 = scmp.eq.s32.totalorder %s32, 1
      %p228 = scmp.ne.s32.totalorder %s223, %s225
      %p229 = scmp.eq.s32.totalorder %s32, 0
      %p230 = por %p228, %p229
      %p231 = scmp.ne.s32.totalorder %s223, %s225
      %p232 = scmp.eq.s32.totalorder %s37, 1
      %p233 = por %p231, %p232
      %p234 = scmp.ne.s32.totalorder %s225, %s226
      %p235 = scmp.eq.s32.totalorder %s37, 0
      %p236 = por %p234, %p235
      %p237 = scmp.ne.s32.totalorder %s225, %s226
      %p238 = scmp.eq.s32.totalorder %s38, 1
      %p239 = por %p237, %p238
      %p241 = scmp.ne.s32.totalorder %s226, %s240
      %p242 = scmp.eq.s32.totalorder %s38, 0
      %p243 = por %p241, %p242
      %s245 = sadd.s32 %s244, 1
      %p248 = scmp.eq.s32.totalorder %s32, 1
      %p249 = scmp.ne.s32.totalorder %s244, %s246
      %p250 = scmp.eq.s32.totalorder %s32, 0
      %p251 = por %p249, %p250
      %p252 = scmp.ne.s32.totalorder %s244, %s246
      %p253 = scmp.eq.s32.totalorder %s37, 1
      %p254 = por %p252, %p253
      %p255 = scmp.ne.s32.totalorder %s246, %s247
      %p256 = scmp.eq.s32.totalorder %s37, 0
      %p257 = por %p255, %p256
      %p258 = scmp.ne.s32.totalorder %s246, %s247
      %p259 = scmp.eq.s32.totalorder %s38, 1
      %p260 = por %p258, %p259
      %p262 = scmp.ne.s32.totalorder %s247, %s261
      %p263 = scmp.eq.s32.totalorder %s38, 0
      %p264 = por %p262, %p263
      %s266 = sadd.s32 %s265, 1
      %p269 = scmp.eq.s32.totalorder %s32, 1
      %p270 = scmp.ne.s32.totalorder %s265, %s267
      %p271 = scmp.eq.s32.totalorder %s32, 0
      %p272 = por %p270, %p271
      %p273 = scmp.ne.s32.totalorder %s265, %s267
      %p274 = scmp.eq.s32.totalorder %s37, 1
      %p275 = por %p273, %p274
      %p276 = scmp.ne.s32.totalorder %s267, %s268
      %p277 = scmp.eq.s32.totalorder %s37, 0
      %p278 = por %p276, %p277
      %p279 = scmp.ne.s32.totalorder %s267, %s268
      %p280 = scmp.eq.s32.totalorder %s38, 1
      %p281 = por %p279, %p280
      %p283 = scmp.ne.s32.totalorder %s268, %s282
      %p284 = scmp.eq.s32.totalorder %s38, 0
      %p285 = por %p283, %p284
      %s287 = sadd.s32 %s286, 1
      %p290 = scmp.eq.s32.totalorder %s32, 1
      %p291 = scmp.ne.s32.totalorder %s286, %s288
      %p292 = scmp.eq.s32.totalorder %s32, 0
      %p293 = por %p291, %p292
      %p294 = scmp.ne.s32.totalorder %s286, %s288
      %p295 = scmp.eq.s32.totalorder %s37, 1
      %p296 = por %p294, %p295
      %p297 = scmp.ne.s32.totalorder %s288, %s289
      %p298 = scmp.eq.s32.totalorder %s37, 0
      %p299 = por %p297, %p298
      %p300 = scmp.ne.s32.totalorder %s288, %s289
      %p301 = scmp.eq.s32.totalorder %s38, 1
      %p302 = por %p300, %p301
      %p304 = scmp.ne.s32.totalorder %s289, %s303
      %p305 = scmp.eq.s32.totalorder %s38, 0
      %p306 = por %p304, %p305
      %s308 = sadd.s32 %s307, 1
      %p311 = scmp.eq.s32.totalorder %s32, 1
      %p312 = scmp.ne.s32.totalorder %s307, %s309
      %p313 = scmp.eq.s32.totalorder %s32, 0
      %p314 = por %p312, %p313
      %p315 = scmp.ne.s32.totalorder %s307, %s309
      %p316 = scmp.eq.s32.totalorder %s37, 1
      %p317 = por %p315, %p316
      %p318 = scmp.ne.s32.totalorder %s309, %s310
      %p319 = scmp.eq.s32.totalorder %s37, 0
      %p320 = por %p318, %p319
      %p321 = scmp.ne.s32.totalorder %s309, %s310
      %p322 = scmp.eq.s32.totalorder %s38, 1
      %p323 = por %p321, %p322
      %p325 = scmp.ne.s32.totalorder %s310, %s324
      %p326 = scmp.eq.s32.totalorder %s38, 0
      %p327 = por %p325, %p326
      %s329 = sadd.s32 %s328, 1
      %p332 = scmp.eq.s32.totalorder %s32, 1
      %p333 = scmp.ne.s32.totalorder %s328, %s330
      %p334 = scmp.eq.s32.totalorder %s32, 0
      %p335 = por %p333, %p334
      %p336 = scmp.ne.s32.totalorder %s328, %s330
      %p337 = scmp.eq.s32.totalorder %s37, 1
      %p338 = por %p336, %p337
      %p339 = scmp.ne.s32.totalorder %s330, %s331
      %p340 = scmp.eq.s32.totalorder %s37, 0
      %p341 = por %p339, %p340
      %p342 = scmp.ne.s32.totalorder %s330, %s331
      %p343 = scmp.eq.s32.totalorder %s38, 1
      %p344 = por %p342, %p343
      %p346 = scmp.ne.s32.totalorder %s331, %s345
      %p347 = scmp.eq.s32.totalorder %s38, 0
      %p348 = por %p346, %p347
      %s349 = ssub.s32 %s32, %s39
      %p350 = scmp.eq.s32.totalorder %s349, 0
      %s352 = sadd.s32 %s351, 1
      %s353 = scalar_select %p350, %s351, %s352
      %p356 = pneg %p350
      %p357 = scmp.eq.s32.totalorder %s32, 1
      %p358 = por %p356, %p357
      %p359 = scmp.ne.s32.totalorder %s351, %s354
      %p360 = scmp.eq.s32.totalorder %s32, 0
      %p361 = por %p359, %p360
      %p362 = scmp.ne.s32.totalorder %s351, %s354
      %p363 = scmp.eq.s32.totalorder %s37, 1
      %p364 = por %p362, %p363
      %p365 = scmp.ne.s32.totalorder %s354, %s355
      %p366 = scmp.eq.s32.totalorder %s37, 0
      %p367 = por %p365, %p366
      %p368 = scmp.ne.s32.totalorder %s354, %s355
      %p369 = scmp.eq.s32.totalorder %s38, 1
      %p370 = por %p368, %p369
      %p372 = scmp.ne.s32.totalorder %s355, %s371
      %p373 = scmp.eq.s32.totalorder %s38, 0
      %p374 = por %p372, %p373
      %p375 = scmp.le.s32.totalorder 1, %s32
      %p376 = scmp.lt.s32.totalorder %s32, 3
      %p377 = pnand %p375, %p376
      %p378 = pneg %p377
      // Predicated region
      $region9: #{tpu_custom_call.1} parent=5 // pred_check
        _
      $region10: #{tpu_custom_call.1} parent=5 // pred_check_branch
        %380 = sbr.rel (%p377) target = $region12
      $region11: #{tpu_custom_call.1} parent=5 // pred_region
        %s381 = ssub.s32 %s32, 1
        // Predicated region
        $region13: #{tpu_custom_call.1} parent=11 // pred_check
          %p382 = pneg %p131
        $region14: #{tpu_custom_call.1} parent=11 // pred_check_branch
          %384 = sbr.rel (%p382) target = $region16
        $region15: #{tpu_custom_call.1} parent=11 // pred_region
          %s386 = ssub.s32 2048, 2048
          %387 = vsyncadd [#allocation7], %s386
          %s388 = sshll.u32 [#allocation8], 4
          %s389 = int_to_ptr.vmem [resolvable:$true] %s388
          %394 = dma.hbm_to_vmem [thread:$0]  %s3, 2048, %s389, [#allocation7], 128, 128, 8
        $region16: #{tpu_custom_call.1} parent=11 // pred_fallthru
          _
        // Predicated region
        $region17: #{tpu_custom_call.1} parent=11 // pred_check
          %p395 = pneg %p152
        $region18: #{tpu_custom_call.1} parent=11 // pred_check_branch
          %397 = sbr.rel (%p395) target = $region20
        $region19: #{tpu_custom_call.1} parent=11 // pred_region
          _
        $region20: #{tpu_custom_call.1} parent=11 // pred_fallthru
          _
        // Predicated region
        $region21: #{tpu_custom_call.1} parent=11 // pred_check
          %p398 = pneg %p173
        $region22: #{tpu_custom_call.1} parent=11 // pred_check_branch
          %400 = sbr.rel (%p398) target = $region24
        $region23: #{tpu_custom_call.1} parent=11 // pred_region
          %s402 = ssub.s32 1024, 1024
          %403 = vsyncadd [#allocation10], %s402
          %s404 = sshll.u32 [#allocation9], 4
          %s405 = int_to_ptr.vmem [resolvable:$true] %s404
          %410 = dma.hbm_to_vmem [thread:$0]  %s5, 1024, %s405, [#allocation10], 64, 64, 4
        $region24: #{tpu_custom_call.1} parent=11 // pred_fallthru
          _
        // Predicated region
        $region25: #{tpu_custom_call.1} parent=11 // pred_check
          %p411 = pneg %p194
        $region26: #{tpu_custom_call.1} parent=11 // pred_check_branch
          %413 = sbr.rel (%p411) target = $region28
        $region27: #{tpu_custom_call.1} parent=11 // pred_region
          _
        $region28: #{tpu_custom_call.1} parent=11 // pred_fallthru
          _
        // Predicated region
        $region29: #{tpu_custom_call.1} parent=11 // pred_check
          %p414 = pneg %p215
        $region30: #{tpu_custom_call.1} parent=11 // pred_check_branch
          %416 = sbr.rel (%p414) target = $region32
        $region31: #{tpu_custom_call.1} parent=11 // pred_region
          %s418 = ssub.s32 1024, 1024
          %419 = vsyncadd [#allocation10], %s418
          %s420 = sshll.u32 [#allocation11], 4
          %s421 = int_to_ptr.vmem [resolvable:$true] %s420
          %426 = dma.hbm_to_vmem [thread:$0]  %s7, 1024, %s421, [#allocation10], 64, 64, 4
        $region32: #{tpu_custom_call.1} parent=11 // pred_fallthru
          _
        // Predicated region
        $region33: #{tpu_custom_call.1} parent=11 // pred_check
          %p427 = pneg %p236
        $region34: #{tpu_custom_call.1} parent=11 // pred_check_branch
          %429 = sbr.rel (%p427) target = $region36
        $region35: #{tpu_custom_call.1} parent=11 // pred_region
          _
        $region36: #{tpu_custom_call.1} parent=11 // pred_fallthru
          _
        // Predicated region
        $region37: #{tpu_custom_call.1} parent=11 // pred_check
          %p430 = pneg %p257
        $region38: #{tpu_custom_call.1} parent=11 // pred_check_branch
          %432 = sbr.rel (%p430) target = $region40
        $region39: #{tpu_custom_call.1} parent=11 // pred_region
          _
        $region40: #{tpu_custom_call.1} parent=11 // pred_fallthru
          _
        // Predicated region
        $region41: #{tpu_custom_call.1} parent=11 // pred_check
          %p433 = pneg %p278
        $region42: #{tpu_custom_call.1} parent=11 // pred_check_branch
          %435 = sbr.rel (%p433) target = $region44
        $region43: #{tpu_custom_call.1} parent=11 // pred_region
          _
        $region44: #{tpu_custom_call.1} parent=11 // pred_fallthru
          _
        // Predicated region
        $region45: #{tpu_custom_call.1} parent=11 // pred_check
          %p436 = pneg %p299
        $region46: #{tpu_custom_call.1} parent=11 // pred_check_branch
          %438 = sbr.rel (%p436) target = $region48
        $region47: #{tpu_custom_call.1} parent=11 // pred_region
          %s440 = ssub.s32 2048, 2048
          %441 = vsyncadd [#allocation13], %s440
          %s442 = sshll.u32 [#allocation12], 4
          %s443 = int_to_ptr.vmem [resolvable:$true] %s442
          %448 = dma.hbm_to_vmem [thread:$0]  %s11, 2048, %s443, [#allocation13], 64, 64, 4
        $region48: #{tpu_custom_call.1} parent=11 // pred_fallthru
          _
        // Predicated region
        $region49: #{tpu_custom_call.1} parent=11 // pred_check
          %p449 = pneg %p320
        $region50: #{tpu_custom_call.1} parent=11 // pred_check_branch
          %451 = sbr.rel (%p449) target = $region52
        $region51: #{tpu_custom_call.1} parent=11 // pred_region
          _
        $region52: #{tpu_custom_call.1} parent=11 // pred_fallthru
          _
        // Predicated region
        $region53: #{tpu_custom_call.1} parent=11 // pred_check
          %p452 = pneg %p341
        $region54: #{tpu_custom_call.1} parent=11 // pred_check_branch
          %454 = sbr.rel (%p452) target = $region56
        $region55: #{tpu_custom_call.1} parent=11 // pred_region
          _
        $region56: #{tpu_custom_call.1} parent=11 // pred_fallthru
          _
      $region12: #{tpu_custom_call.1} parent=5 // pred_fallthru
        _
      %p455 = scmp.lt.s32.totalorder %s32, 2
      // Predicated region
      $region57: #{tpu_custom_call.1} parent=5 // pred_check
        %p456 = pneg %p455
      $region58: #{tpu_custom_call.1} parent=5 // pred_check_branch
        %458 = sbr.rel (%p456) target = $region60
      $region59: #{tpu_custom_call.1} parent=5 // pred_region
        // Predicated region
        $region61: #{tpu_custom_call.1} parent=59 // pred_check
          %p459 = pneg %p52
        $region62: #{tpu_custom_call.1} parent=59 // pred_check_branch
          %461 = sbr.rel (%p459) target = $region64
        $region63: #{tpu_custom_call.1} parent=59 // pred_region
          %s462 = smul.u32 8, %s32
          %p463 = scmp.lt.s32.totalorder %s462, 15
          %s464 = scalar_select %p463, %s462, 15
          %s465 = smul.addr %s464, 4
          %s466 = smul.addr %s465, 4
          %s467 = scalar_lea.vmem %s0, %s466
          %s468 = smul.u32 8, %s32
        $region64: #{tpu_custom_call.1} parent=59 // pred_fallthru
          _
        // Predicated region
        $region65: #{tpu_custom_call.1} parent=59 // pred_check
          %p469 = pneg %p78
        $region66: #{tpu_custom_call.1} parent=59 // pred_check_branch
          %471 = sbr.rel (%p469) target = $region68
        $region67: #{tpu_custom_call.1} parent=59 // pred_region
          %s472 = sand.u32 %s68, 1
          %s473 = scalar_lea.sflag [#allocation4], %s472
          %s474 = sand.u32 %s68, 1
          %s475 = smul.addr %s474, 128
          %s476 = scalar_lea.vmem [#allocation3], %s475
          %s477 = smul.u32 8, %s32
          %s479 = ssub.s32 2048, 2048
          %480 = vsyncadd %s473, %s479
          %s481 = smul.addr %s477, 4
          %s482 = smul.addr %s481, 64
          %s483 = scalar_lea.hbm %s1, %s482
          %s484 = sshll.u32 %s476, 4
          %s485 = int_to_ptr.vmem [resolvable:$true] %s484
          %490 = dma.hbm_to_vmem [thread:$0]  %s483, 2048, %s485, %s473, 64, 64, 4
        $region68: #{tpu_custom_call.1} parent=59 // pred_fallthru
          _
        // Predicated region
        $region69: #{tpu_custom_call.1} parent=59 // pred_check
          %p491 = pneg %p104
        $region70: #{tpu_custom_call.1} parent=59 // pred_check_branch
          %493 = sbr.rel (%p491) target = $region72
        $region71: #{tpu_custom_call.1} parent=59 // pred_region
          %s494 = sand.u32 %s32, 1
          %s495 = scalar_lea.sflag [#allocation7], %s494
          %s496 = sand.u32 %s94, 1
          %s497 = smul.addr %s496, 16
          %s498 = scalar_lea.vmem [#allocation6], %s497
          %s499 = smul.u32 8, %s32
          %s501 = ssub.s32 256, 256
          %502 = vsyncadd %s495, %s501
          %s503 = smul.addr %s499, 2
          %s504 = smul.addr %s503, 16
          %s505 = scalar_lea.hbm %s2, %s504
          %s506 = sshll.u32 %s498, 4
          %s507 = int_to_ptr.vmem [resolvable:$true] %s506
          %512 = dma.hbm_to_vmem [thread:$0]  %s505, 256, %s507, %s495, 32, 32, 2
        $region72: #{tpu_custom_call.1} parent=59 // pred_fallthru
          _
      $region60: #{tpu_custom_call.1} parent=5 // pred_fallthru
        _
      %p513 = scmp.le.s32.totalorder 1, %s32
      %p514 = scmp.lt.s32.totalorder %s32, 3
      %p515 = pnand %p513, %p514
      %p516 = pneg %p515
      // Predicated region
      $region73: #{tpu_custom_call.1} parent=5 // pred_check
        _
      $region74: #{tpu_custom_call.1} parent=5 // pred_check_branch
        %518 = sbr.rel (%p515) target = $region76
      $region75: #{tpu_custom_call.1} parent=5 // pred_region
        %s519 = ssub.s32 %s32, 1
        %s520 = sand.u32 %s71, 1
        %s521 = scalar_lea.sflag [#allocation4], %s520
        %s522 = sand.u32 %s71, 1
        %s523 = smul.addr %s522, 128
        %s524 = scalar_lea.vmem [#allocation3], %s523
        // Predicated region
        $region77: #{tpu_custom_call.1} parent=75 // pred_check
          %p525 = pneg %p84
        $region78: #{tpu_custom_call.1} parent=75 // pred_check_branch
          %527 = sbr.rel (%p525) target = $region80
        $region79: #{tpu_custom_call.1} parent=75 // pred_region
          %528 = dma.done %s521, 2048
        $region80: #{tpu_custom_call.1} parent=75 // pred_fallthru
          _
        %s529 = sand.u32 %s37, 1
        %s530 = scalar_lea.sflag [#allocation7], %s529
        %s531 = sand.u32 %s97, 1
        %s532 = smul.addr %s531, 16
        %s533 = scalar_lea.vmem [#allocation6], %s532
        // Predicated region
        $region81: #{tpu_custom_call.1} parent=75 // pred_check
          %p534 = pneg %p110
        $region82: #{tpu_custom_call.1} parent=75 // pred_check_branch
          %536 = sbr.rel (%p534) target = $region84
        $region83: #{tpu_custom_call.1} parent=75 // pred_region
          %537 = dma.done %s530, 256
        $region84: #{tpu_custom_call.1} parent=75 // pred_fallthru
          _
        // Predicated region
        $region85: #{tpu_custom_call.1} parent=75 // pred_check
          %p538 = pneg %p131
        $region86: #{tpu_custom_call.1} parent=75 // pred_check_branch
          %540 = sbr.rel (%p538) target = $region88
        $region87: #{tpu_custom_call.1} parent=75 // pred_region
          %541 = dma.done [#allocation7], 2048
        $region88: #{tpu_custom_call.1} parent=75 // pred_fallthru
          _
        // Predicated region
        $region89: #{tpu_custom_call.1} parent=75 // pred_check
          %p542 = pneg %p173
        $region90: #{tpu_custom_call.1} parent=75 // pred_check_branch
          %544 = sbr.rel (%p542) target = $region92
        $region91: #{tpu_custom_call.1} parent=75 // pred_region
          %545 = dma.done [#allocation10], 1024
        $region92: #{tpu_custom_call.1} parent=75 // pred_fallthru
          _
        // Predicated region
        $region93: #{tpu_custom_call.1} parent=75 // pred_check
          %p546 = pneg %p215
        $region94: #{tpu_custom_call.1} parent=75 // pred_check_branch
          %548 = sbr.rel (%p546) target = $region96
        $region95: #{tpu_custom_call.1} parent=75 // pred_region
          %549 = dma.done [#allocation10], 1024
        $region96: #{tpu_custom_call.1} parent=75 // pred_fallthru
          _
        // Predicated region
        $region97: #{tpu_custom_call.1} parent=75 // pred_check
          %p550 = pneg %p299
        $region98: #{tpu_custom_call.1} parent=75 // pred_check_branch
          %552 = sbr.rel (%p550) target = $region100
        $region99: #{tpu_custom_call.1} parent=75 // pred_region
          %553 = dma.done [#allocation13], 2048
        $region100: #{tpu_custom_call.1} parent=75 // pred_fallthru
          _
        %s554 = smul.u32 8, %s37
        %p555 = scmp.lt.s32.totalorder %s554, 15
        %s556 = scalar_select %p555, %s554, 15
        %s557 = smul.addr %s556, 4
        %s558 = smul.addr %s557, 4
        %s559 = scalar_lea.vmem %s0, %s558
        %p560 = pneg %p58
        %p561 = pneg %p55
        %s562 = sand.u32 %s71, 1
        %s563 = scalar_lea.sflag [#allocation4], %s562
        %s564 = sand.u32 %s71, 1
        %s565 = smul.addr %s564, 128
        %s566 = scalar_lea.vmem [#allocation3], %s565
        %p567 = pneg %p84
        %p568 = pneg %p81
        %s569 = sand.u32 %s37, 1
        %s570 = scalar_lea.sflag [#allocation7], %s569
        %s571 = sand.u32 %s97, 1
        %s572 = smul.addr %s571, 16
        %s573 = scalar_lea.vmem [#allocation6], %s572
        %p574 = pneg %p110
        %p575 = pneg %p107
        %p576 = pneg %p131
        %p577 = pneg %p128
        %p578 = pneg %p152
        %p579 = pneg %p149
        %p580 = pneg %p173
        %p581 = pneg %p170
        %p582 = pneg %p194
        %p583 = pneg %p191
        %p584 = pneg %p215
        %p585 = pneg %p212
        %p586 = pneg %p236
        %p587 = pneg %p233
        %p588 = pneg %p257
        %p589 = pneg %p254
        %p590 = pneg %p278
        %p591 = pneg %p275
        %p592 = pneg %p299
        %p593 = pneg %p296
        %p594 = pneg %p320
        %p595 = pneg %p317
        %p596 = pneg %p341
        %p597 = pneg %p338
        %p598 = pneg %p367
        %p599 = pneg %p364
        %s600 = sand.u32 %s354, 1
        %s601 = scalar_lea.sflag [#allocation5], %s600
        %s602 = sand.u32 %s354, 1
        %s603 = smul.addr %s602, 256
        %s604 = scalar_lea.vmem [#allocation14], %s603
        %s605 = smul.u32 8, %s37
        %p606 = scmp.lt.s32.totalorder %s605, 15
        %s607 = scalar_select %p606, %s605, 15
        %s608 = smul.addr %s607, 4
        %s609 = smul.addr %s608, 4
        %s610 = scalar_lea.vmem %s0, %s609
        %s611 = smul.u32 8, %s37
        %s612 = smul.u32 8, %s37
        %s613 = smul.u32 8, %s37
        %s614 = smul.u32 8, %s37
        %v616 = vld [vmem:[%s610] sm:$0xf]
        %v617 = vld [vmem:[%s610 + $0x4] sm:$0xf]
        %v618 = vld [vmem:[%s610 + $0x8] sm:$0xf]
        %v619 = vld [vmem:[%s610 + $0xc] sm:$0xf]
        %v620 = vld [vmem:[%s610 + $0x10] sm:$0xf]
        %v621 = vld [vmem:[%s610 + $0x14] sm:$0xf]
        %v622 = vld [vmem:[%s610 + $0x18] sm:$0xf]
        %v623 = vld [vmem:[%s610 + $0x1c] sm:$0xf]
        %v624 = vld [vmem:[%s610 + $0x20] sm:$0xf]
        %v625 = vld [vmem:[%s610 + $0x24] sm:$0xf]
        %v626 = vld [vmem:[%s610 + $0x28] sm:$0xf]
        %v627 = vld [vmem:[%s610 + $0x2c] sm:$0xf]
        %v628 = vld [vmem:[%s610 + $0x30] sm:$0xf]
        %v629 = vld [vmem:[%s610 + $0x34] sm:$0xf]
        %v630 = vld [vmem:[%s610 + $0x38] sm:$0xf]
        %v631 = vld [vmem:[%s610 + $0x3c] sm:$0xf]
        %v632 = vld [vmem:[%s610 + $0x40] sm:$0xf]
        %v633 = vld [vmem:[%s610 + $0x44] sm:$0xf]
        %v634 = vld [vmem:[%s610 + $0x48] sm:$0xf]
        %v635 = vld [vmem:[%s610 + $0x4c] sm:$0xf]
        %v636 = vld [vmem:[%s610 + $0x50] sm:$0xf]
        %v637 = vld [vmem:[%s610 + $0x54] sm:$0xf]
        %v638 = vld [vmem:[%s610 + $0x58] sm:$0xf]
        %v639 = vld [vmem:[%s610 + $0x5c] sm:$0xf]
        %v640 = vld [vmem:[%s610 + $0x60] sm:$0xf]
        %v641 = vld [vmem:[%s610 + $0x64] sm:$0xf]
        %v642 = vld [vmem:[%s610 + $0x68] sm:$0xf]
        %v643 = vld [vmem:[%s610 + $0x6c] sm:$0xf]
        %v644 = vld [vmem:[%s610 + $0x70] sm:$0xf]
        %v645 = vld [vmem:[%s610 + $0x74] sm:$0xf]
        %v646 = vld [vmem:[%s610 + $0x78] sm:$0xf]
        %v647 = vld [vmem:[%s610 + $0x7c] sm:$0xf]
        %v648 = vld [vmem:[%s524] sm:$0xf]
        %v649 = vld [vmem:[%s524 + $0x4] sm:$0xf]
        %v650 = vld [vmem:[%s524 + $0x8] sm:$0xf]
        %v651 = vld [vmem:[%s524 + $0xc] sm:$0xf]
        %v652 = vld [vmem:[%s524 + $0x10] sm:$0xf]
        %v653 = vld [vmem:[%s524 + $0x14] sm:$0xf]
        %v654 = vld [vmem:[%s524 + $0x18] sm:$0xf]
        %v655 = vld [vmem:[%s524 + $0x1c] sm:$0xf]
        %v656 = vld [vmem:[%s524 + $0x20] sm:$0xf]
        %v657 = vld [vmem:[%s524 + $0x24] sm:$0xf]
        %v658 = vld [vmem:[%s524 + $0x28] sm:$0xf]
        %v659 = vld [vmem:[%s524 + $0x2c] sm:$0xf]
        %v660 = vld [vmem:[%s524 + $0x30] sm:$0xf]
        %v661 = vld [vmem:[%s524 + $0x34] sm:$0xf]
        %v662 = vld [vmem:[%s524 + $0x38] sm:$0xf]
        %v663 = vld [vmem:[%s524 + $0x3c] sm:$0xf]
        %v664 = vld [vmem:[%s524 + $0x40] sm:$0xf]
        %v665 = vld [vmem:[%s524 + $0x44] sm:$0xf]
        %v666 = vld [vmem:[%s524 + $0x48] sm:$0xf]
        %v667 = vld [vmem:[%s524 + $0x4c] sm:$0xf]
        %v668 = vld [vmem:[%s524 + $0x50] sm:$0xf]
        %v669 = vld [vmem:[%s524 + $0x54] sm:$0xf]
        %v670 = vld [vmem:[%s524 + $0x58] sm:$0xf]
        %v671 = vld [vmem:[%s524 + $0x5c] sm:$0xf]
        %v672 = vld [vmem:[%s524 + $0x60] sm:$0xf]
        %v673 = vld [vmem:[%s524 + $0x64] sm:$0xf]
        %v674 = vld [vmem:[%s524 + $0x68] sm:$0xf]
        %v675 = vld [vmem:[%s524 + $0x6c] sm:$0xf]
        %v676 = vld [vmem:[%s524 + $0x70] sm:$0xf]
        %v677 = vld [vmem:[%s524 + $0x74] sm:$0xf]
        %v678 = vld [vmem:[%s524 + $0x78] sm:$0xf]
        %v679 = vld [vmem:[%s524 + $0x7c] sm:$0xf]
        %v680 = vunpack.c.l.bf16 %v616
        %v681 = vunpack.c.l.bf16 %v617
        %v682 = vunpack.c.l.bf16 %v618
        %v683 = vunpack.c.l.bf16 %v619
        %v684 = vunpack.c.l.bf16 %v620
        %v685 = vunpack.c.l.bf16 %v621
        %v686 = vunpack.c.l.bf16 %v622
        %v687 = vunpack.c.l.bf16 %v623
        %v688 = vunpack.c.l.bf16 %v624
        %v689 = vunpack.c.l.bf16 %v625
        %v690 = vunpack.c.l.bf16 %v626
        %v691 = vunpack.c.l.bf16 %v627
        %v692 = vunpack.c.l.bf16 %v628
        %v693 = vunpack.c.l.bf16 %v629
        %v694 = vunpack.c.l.bf16 %v630
        %v695 = vunpack.c.l.bf16 %v631
        %v696 = vunpack.c.l.bf16 %v632
        %v697 = vunpack.c.l.bf16 %v633
        %v698 = vunpack.c.l.bf16 %v634
        %v699 = vunpack.c.l.bf16 %v635
        %v700 = vunpack.c.l.bf16 %v636
        %v701 = vunpack.c.l.bf16 %v637
        %v702 = vunpack.c.l.bf16 %v638
        %v703 = vunpack.c.l.bf16 %v639
        %v704 = vunpack.c.l.bf16 %v640
        %v705 = vunpack.c.l.bf16 %v641
        %v706 = vunpack.c.l.bf16 %v642
        %v707 = vunpack.c.l.bf16 %v643
        %v708 = vunpack.c.l.bf16 %v644
        %v709 = vunpack.c.l.bf16 %v645
        %v710 = vunpack.c.l.bf16 %v646
        %v711 = vunpack.c.l.bf16 %v647
        %v712 = vunpack.c.l.bf16 %v648
        %v713 = vunpack.c.l.bf16 %v649
        %v714 = vunpack.c.l.bf16 %v650
        %v715 = vunpack.c.l.bf16 %v651
        %v716 = vunpack.c.l.bf16 %v652
        %v717 = vunpack.c.l.bf16 %v653
        %v718 = vunpack.c.l.bf16 %v654
        %v719 = vunpack.c.l.bf16 %v655
        %v720 = vunpack.c.l.bf16 %v656
        %v721 = vunpack.c.l.bf16 %v657
        %v722 = vunpack.c.l.bf16 %v658
        %v723 = vunpack.c.l.bf16 %v659
        %v724 = vunpack.c.l.bf16 %v660
        %v725 = vunpack.c.l.bf16 %v661
        %v726 = vunpack.c.l.bf16 %v662
        %v727 = vunpack.c.l.bf16 %v663
        %v728 = vunpack.c.l.bf16 %v664
        %v729 = vunpack.c.l.bf16 %v665
        %v730 = vunpack.c.l.bf16 %v666
        %v731 = vunpack.c.l.bf16 %v667
        %v732 = vunpack.c.l.bf16 %v668
        %v733 = vunpack.c.l.bf16 %v669
        %v734 = vunpack.c.l.bf16 %v670
        %v735 = vunpack.c.l.bf16 %v671
        %v736 = vunpack.c.l.bf16 %v672
        %v737 = vunpack.c.l.bf16 %v673
        %v738 = vunpack.c.l.bf16 %v674
        %v739 = vunpack.c.l.bf16 %v675
        %v740 = vunpack.c.l.bf16 %v676
        %v741 = vunpack.c.l.bf16 %v677
        %v742 = vunpack.c.l.bf16 %v678
        %v743 = vunpack.c.l.bf16 %v679
        %v744 = vadd.f32 %v680, %v712
        %v745 = vadd.f32 %v681, %v713
        %v746 = vadd.f32 %v682, %v714
        %v747 = vadd.f32 %v683, %v715
        %v748 = vadd.f32 %v684, %v716
        %v749 = vadd.f32 %v685, %v717
        %v750 = vadd.f32 %v686, %v718
        %v751 = vadd.f32 %v687, %v719
        %v752 = vadd.f32 %v688, %v720
        %v753 = vadd.f32 %v689, %v721
        %v754 = vadd.f32 %v690, %v722
        %v755 = vadd.f32 %v691, %v723
        %v756 = vadd.f32 %v692, %v724
        %v757 = vadd.f32 %v693, %v725
        %v758 = vadd.f32 %v694, %v726
        %v759 = vadd.f32 %v695, %v727
        %v760 = vadd.f32 %v696, %v728
        %v761 = vadd.f32 %v697, %v729
        %v762 = vadd.f32 %v698, %v730
        %v763 = vadd.f32 %v699, %v731
        %v764 = vadd.f32 %v700, %v732
        %v765 = vadd.f32 %v701, %v733
        %v766 = vadd.f32 %v702, %v734
        %v767 = vadd.f32 %v703, %v735
        %v768 = vadd.f32 %v704, %v736
        %v769 = vadd.f32 %v705, %v737
        %v770 = vadd.f32 %v706, %v738
        %v771 = vadd.f32 %v707, %v739
        %v772 = vadd.f32 %v708, %v740
        %v773 = vadd.f32 %v709, %v741
        %v774 = vadd.f32 %v710, %v742
        %v775 = vadd.f32 %v711, %v743
        %v776 = vpack.c.bf16 %v745, %v744
        %v777 = vpack.c.bf16 %v747, %v746
        %v778 = vpack.c.bf16 %v749, %v748
        %v779 = vpack.c.bf16 %v751, %v750
        %v780 = vpack.c.bf16 %v753, %v752
        %v781 = vpack.c.bf16 %v755, %v754
        %v782 = vpack.c.bf16 %v757, %v756
        %v783 = vpack.c.bf16 %v759, %v758
        %v784 = vpack.c.bf16 %v761, %v760
        %v785 = vpack.c.bf16 %v763, %v762
        %v786 = vpack.c.bf16 %v765, %v764
        %v787 = vpack.c.bf16 %v767, %v766
        %v788 = vpack.c.bf16 %v769, %v768
        %v789 = vpack.c.bf16 %v771, %v770
        %v790 = vpack.c.bf16 %v773, %v772
        %v791 = vpack.c.bf16 %v775, %v774
        %v792 = vld [vmem:[#allocation8] sm:$0xff]
        %v793 = vld [vmem:[#allocation8 + $0x8] sm:$0xff]
        %v794 = vld [vmem:[#allocation8 + $0x10] sm:$0xff]
        %v795 = vld [vmem:[#allocation8 + $0x18] sm:$0xff]
        %v796 = vld [vmem:[#allocation8 + $0x20] sm:$0xff]
        %v797 = vld [vmem:[#allocation8 + $0x28] sm:$0xff]
        %v798 = vld [vmem:[#allocation8 + $0x30] sm:$0xff]
        %v799 = vld [vmem:[#allocation8 + $0x38] sm:$0xff]
        %v800 = vld [vmem:[#allocation8 + $0x40] sm:$0xff]
        %v801 = vld [vmem:[#allocation8 + $0x48] sm:$0xff]
        %v802 = vld [vmem:[#allocation8 + $0x50] sm:$0xff]
        %v803 = vld [vmem:[#allocation8 + $0x58] sm:$0xff]
        %v804 = vld [vmem:[#allocation8 + $0x60] sm:$0xff]
        %v805 = vld [vmem:[#allocation8 + $0x68] sm:$0xff]
        %v806 = vld [vmem:[#allocation8 + $0x70] sm:$0xff]
        %v807 = vld [vmem:[#allocation8 + $0x78] sm:$0xff]
        %v808 = vld [vmem:[%s4] sm:$0x3]
        %v810 = vlaneseq
        %v811 = vshrl.u32 %v810, 7
        %v812 = vsub.s32 0, %v811
        %v813 = vrot.slane %v808, %v812
        %v814 = vlaneseq
        %v815 = vshrl.u32 %v814, 7
        %v816 = vsub.s32 1, %v815
        %v817 = vrot.slane %v808, %v816
        %v836 = vunpack.c.l.b16 %v792
        %v837 = vunpack.c.h.b16 %v792
        %v838 = vunpack.c.l.b16 %v793
        %v839 = vunpack.c.h.b16 %v793
        %v840 = vunpack.c.l.b16 %v794
        %v841 = vunpack.c.h.b16 %v794
        %v842 = vunpack.c.l.b16 %v795
        %v843 = vunpack.c.h.b16 %v795
        %v844 = vunpack.c.l.b16 %v796
        %v845 = vunpack.c.h.b16 %v796
        %v846 = vunpack.c.l.b16 %v797
        %v847 = vunpack.c.h.b16 %v797
        %v848 = vunpack.c.l.b16 %v798
        %v849 = vunpack.c.h.b16 %v798
        %v850 = vunpack.c.l.b16 %v799
        %v851 = vunpack.c.h.b16 %v799
        %v852 = vunpack.c.l.b16 %v800
        %v853 = vunpack.c.h.b16 %v800
        %v854 = vunpack.c.l.b16 %v801
        %v855 = vunpack.c.h.b16 %v801
        %v856 = vunpack.c.l.b16 %v802
        %v857 = vunpack.c.h.b16 %v802
        %v858 = vunpack.c.l.b16 %v803
        %v859 = vunpack.c.h.b16 %v803
        %v860 = vunpack.c.l.b16 %v804
        %v861 = vunpack.c.h.b16 %v804
        %v862 = vunpack.c.l.b16 %v805
        %v863 = vunpack.c.h.b16 %v805
        %v864 = vunpack.c.l.b16 %v806
        %v865 = vunpack.c.h.b16 %v806
        %v866 = vunpack.c.l.b16 %v807
        %v867 = vunpack.c.h.b16 %v807
        %v868 = vpack.c.b16 %v838, %v836
        %v869 = vpack.c.b16 %v839, %v837
        %v870 = vpack.c.b16 %v842, %v840
        %v871 = vpack.c.b16 %v843, %v841
        %v872 = vpack.c.b16 %v846, %v844
        %v873 = vpack.c.b16 %v847, %v845
        %v874 = vpack.c.b16 %v850, %v848
        %v875 = vpack.c.b16 %v851, %v849
        %v876 = vpack.c.b16 %v854, %v852
        %v877 = vpack.c.b16 %v855, %v853
        %v878 = vpack.c.b16 %v858, %v856
        %v879 = vpack.c.b16 %v859, %v857
        %v880 = vpack.c.b16 %v862, %v860
        %v881 = vpack.c.b16 %v863, %v861
        %v882 = vpack.c.b16 %v866, %v864
        %v883 = vpack.c.b16 %v867, %v865
        %900 = vmatprep.subr.bf16.mxu0 %v869
        %901 = vmatpush1.bf16.msra.mxu0 %v868
        %902 = vmatprep.subr.bf16.mxu0 %v871
        %903 = vmatpush1.bf16.msra.mxu0 %v870
        %904 = vmatprep.subr.bf16.mxu0 %v873
        %905 = vmatpush1.bf16.msra.mxu0 %v872
        %906 = vmatprep.subr.bf16.mxu0 %v875
        %907 = vmatpush1.bf16.msra.mxu0 %v874
        %908 = vmatprep.subr.bf16.mxu0 %v877
        %909 = vmatpush1.bf16.msra.mxu0 %v876
        %910 = vmatprep.subr.bf16.mxu0 %v879
        %911 = vmatpush1.bf16.msra.mxu0 %v878
        %912 = vmatprep.subr.bf16.mxu0 %v881
        %913 = vmatpush1.bf16.msra.mxu0 %v880
        %914 = vmatprep.subr.bf16.mxu0 %v883
        %915 = vmatpush1.bf16.msra.mxu0 %v882
        %916 = vmatprep.subr.bf16.mxu0 0
        %917 = vmatpush1.bf16.msra.mxu0 0
        %918 = vmatprep.subr.bf16.mxu0 0
        %919 = vmatpush1.bf16.msra.mxu0 0
        %920 = vmatprep.subr.bf16.mxu0 0
        %921 = vmatpush1.bf16.msra.mxu0 0
        %922 = vmatprep.subr.bf16.mxu0 0
        %923 = vmatpush1.bf16.msra.mxu0 0
        %924 = vmatprep.subr.bf16.mxu0 0
        %925 = vmatpush1.bf16.msra.mxu0 0
        %926 = vmatprep.subr.bf16.mxu0 0
        %927 = vmatpush1.bf16.msra.mxu0 0
        %928 = vmatprep.subr.bf16.mxu0 0
        %929 = vmatpush1.bf16.msra.mxu0 0
        %930 = vmatprep.subr.bf16.mxu0 0
        %931 = vmatpush1.bf16.msra.mxu0 0
        %932 = vmatprep.mubr.bf16.mxu0 0
        %933 = vmatmul.mubr.bf16.gmra.mrb[0].mxu0 %v776
        %v934 = vpop.f32.mrb[0].mxu0
        %v935 = vadd.f32 %v813, %v934
        %v936 = vpop.f32.mrb[0].mxu0
        %v937 = vadd.f32 %v817, %v936
        %v938 = vpop.f32.mrb[0].mxu0
        %v939 = vadd.f32 %v813, %v938
        %v940 = vpop.f32.mrb[0].mxu0
        %v941 = vadd.f32 %v817, %v940
        %942 = vmatprep.mubr.bf16.mxu0 0
        %943 = vmatmul.mubr.bf16.gmra.mrb[0].mxu0 %v777
        %v944 = vpop.f32.mrb[0].mxu0
        %v945 = vadd.f32 %v813, %v944
        %v946 = vpop.f32.mrb[0].mxu0
        %v947 = vadd.f32 %v817, %v946
        %v948 = vpop.f32.mrb[0].mxu0
        %v949 = vadd.f32 %v813, %v948
        %v950 = vpop.f32.mrb[0].mxu0
        %v951 = vadd.f32 %v817, %v950
        %952 = vmatprep.mubr.bf16.mxu0 0
        %953 = vmatmul.mubr.bf16.gmra.mrb[0].mxu0 %v778
        %v954 = vpop.f32.mrb[0].mxu0
        %v955 = vadd.f32 %v813, %v954
        %v956 = vpop.f32.mrb[0].mxu0
        %v957 = vadd.f32 %v817, %v956
        %v958 = vpop.f32.mrb[0].mxu0
        %v959 = vadd.f32 %v813, %v958
        %v960 = vpop.f32.mrb[0].mxu0
        %v961 = vadd.f32 %v817, %v960
        %962 = vmatprep.mubr.bf16.mxu0 0
        %963 = vmatmul.mubr.bf16.gmra.mrb[0].mxu0 %v779
        %v964 = vpop.f32.mrb[0].mxu0
        %v965 = vadd.f32 %v813, %v964
        %v966 = vpop.f32.mrb[0].mxu0
        %v967 = vadd.f32 %v817, %v966
        %v968 = vpop.f32.mrb[0].mxu0
        %v969 = vadd.f32 %v813, %v968
        %v970 = vpop.f32.mrb[0].mxu0
        %v971 = vadd.f32 %v817, %v970
        %972 = vmatprep.mubr.bf16.mxu0 0
        %973 = vmatmul.mubr.bf16.gmra.mrb[0].mxu0 %v780
        %v974 = vpop.f32.mrb[0].mxu0
        %v975 = vadd.f32 %v813, %v974
        %v976 = vpop.f32.mrb[0].mxu0
        %v977 = vadd.f32 %v817, %v976
        %v978 = vpop.f32.mrb[0].mxu0
        %v979 = vadd.f32 %v813, %v978
        %v980 = vpop.f32.mrb[0].mxu0
        %v981 = vadd.f32 %v817, %v980
        %982 = vmatprep.mubr.bf16.mxu0 0
        %983 = vmatmul.mubr.bf16.gmra.mrb[0].mxu0 %v781
        %v984 = vpop.f32.mrb[0].mxu0
        %v985 = vadd.f32 %v813, %v984
        %v986 = vpop.f32.mrb[0].mxu0
        %v987 = vadd.f32 %v817, %v986
        %v988 = vpop.f32.mrb[0].mxu0
        %v989 = vadd.f32 %v813, %v988
        %v990 = vpop.f32.mrb[0].mxu0
        %v991 = vadd.f32 %v817, %v990
        %992 = vmatprep.mubr.bf16.mxu0 0
        %993 = vmatmul.mubr.bf16.gmra.mrb[0].mxu0 %v782
        %v994 = vpop.f32.mrb[0].mxu0
        %v995 = vadd.f32 %v813, %v994
        %v996 = vpop.f32.mrb[0].mxu0
        %v997 = vadd.f32 %v817, %v996
        %v998 = vpop.f32.mrb[0].mxu0
        %v999 = vadd.f32 %v813, %v998
        %v1000 = vpop.f32.mrb[0].mxu0
        %v1001 = vadd.f32 %v817, %v1000
        %1002 = vmatprep.mubr.bf16.mxu0 0
        %1003 = vmatmul.mubr.bf16.gmra.mrb[0].mxu0 %v783
        %v1004 = vpop.f32.mrb[0].mxu0
        %v1005 = vadd.f32 %v813, %v1004
        %v1006 = vpop.f32.mrb[0].mxu0
        %v1007 = vadd.f32 %v817, %v1006
        %v1008 = vpop.f32.mrb[0].mxu0
        %v1009 = vadd.f32 %v813, %v1008
        %v1010 = vpop.f32.mrb[0].mxu0
        %v1011 = vadd.f32 %v817, %v1010
        %1012 = vmatprep.mubr.bf16.mxu0 0
        %1013 = vmatmul.mubr.bf16.gmra.mrb[0].mxu0 %v784
        %v1014 = vpop.f32.mrb[0].mxu0
        %v1015 = vadd.f32 %v813, %v1014
        %v1016 = vpop.f32.mrb[0].mxu0
        %v1017 = vadd.f32 %v817, %v1016
        %v1018 = vpop.f32.mrb[0].mxu0
        %v1019 = vadd.f32 %v813, %v1018
        %v1020 = vpop.f32.mrb[0].mxu0
        %v1021 = vadd.f32 %v817, %v1020
        %1022 = vmatprep.mubr.bf16.mxu0 0
        %1023 = vmatmul.mubr.bf16.gmra.mrb[0].mxu0 %v785
        %v1024 = vpop.f32.mrb[0].mxu0
        %v1025 = vadd.f32 %v813, %v1024
        %v1026 = vpop.f32.mrb[0].mxu0
        %v1027 = vadd.f32 %v817, %v1026
        %v1028 = vpop.f32.mrb[0].mxu0
        %v1029 = vadd.f32 %v813, %v1028
        %v1030 = vpop.f32.mrb[0].mxu0
        %v1031 = vadd.f32 %v817, %v1030
        %1032 = vmatprep.mubr.bf16.mxu0 0
        %1033 = vmatmul.mubr.bf16.gmra.mrb[0].mxu0 %v786
        %v1034 = vpop.f32.mrb[0].mxu0
        %v1035 = vadd.f32 %v813, %v1034
        %v1036 = vpop.f32.mrb[0].mxu0
        %v1037 = vadd.f32 %v817, %v1036
        %v1038 = vpop.f32.mrb[0].mxu0
        %v1039 = vadd.f32 %v813, %v1038
        %v1040 = vpop.f32.mrb[0].mxu0
        %v1041 = vadd.f32 %v817, %v1040
        %1042 = vmatprep.mubr.bf16.mxu0 0
        %1043 = vmatmul.mubr.bf16.gmra.mrb[0].mxu0 %v787
        %v1044 = vpop.f32.mrb[0].mxu0
        %v1045 = vadd.f32 %v813, %v1044
        %v1046 = vpop.f32.mrb[0].mxu0
        %v1047 = vadd.f32 %v817, %v1046
        %v1048 = vpop.f32.mrb[0].mxu0
        %v1049 = vadd.f32 %v813, %v1048
        %v1050 = vpop.f32.mrb[0].mxu0
        %v1051 = vadd.f32 %v817, %v1050
        %1052 = vmatprep.mubr.bf16.mxu0 0
        %1053 = vmatmul.mubr.bf16.gmra.mrb[0].mxu0 %v788
        %v1054 = vpop.f32.mrb[0].mxu0
        %v1055 = vadd.f32 %v813, %v1054
        %v1056 = vpop.f32.mrb[0].mxu0
        %v1057 = vadd.f32 %v817, %v1056
        %v1058 = vpop.f32.mrb[0].mxu0
        %v1059 = vadd.f32 %v813, %v1058
        %v1060 = vpop.f32.mrb[0].mxu0
        %v1061 = vadd.f32 %v817, %v1060
        %1062 = vmatprep.mubr.bf16.mxu0 0
        %1063 = vmatmul.mubr.bf16.gmra.mrb[0].mxu0 %v789
        %v1064 = vpop.f32.mrb[0].mxu0
        %v1065 = vadd.f32 %v813, %v1064
        %v1066 = vpop.f32.mrb[0].mxu0
        %v1067 = vadd.f32 %v817, %v1066
        %v1068 = vpop.f32.mrb[0].mxu0
        %v1069 = vadd.f32 %v813, %v1068
        %v1070 = vpop.f32.mrb[0].mxu0
        %v1071 = vadd.f32 %v817, %v1070
        %1072 = vmatprep.mubr.bf16.mxu0 0
        %1073 = vmatmul.mubr.bf16.gmra.mrb[0].mxu0 %v790
        %v1074 = vpop.f32.mrb[0].mxu0
        %v1075 = vadd.f32 %v813, %v1074
        %v1076 = vpop.f32.mrb[0].mxu0
        %v1077 = vadd.f32 %v817, %v1076
        %v1078 = vpop.f32.mrb[0].mxu0
        %v1079 = vadd.f32 %v813, %v1078
        %v1080 = vpop.f32.mrb[0].mxu0
        %v1081 = vadd.f32 %v817, %v1080
        %1082 = vmatprep.mubr.bf16.mxu0 0
        %1083 = vmatmul.mubr.bf16.gmra.mrb[0].mxu0 %v791
        %v1084 = vpop.f32.mrb[0].mxu0
        %v1085 = vadd.f32 %v813, %v1084
        %v1086 = vpop.f32.mrb[0].mxu0
        %v1087 = vadd.f32 %v817, %v1086
        %v1088 = vpop.f32.mrb[0].mxu0
        %v1089 = vadd.f32 %v813, %v1088
        %v1090 = vpop.f32.mrb[0].mxu0
        %v1091 = vadd.f32 %v817, %v1090
        %1092 = vdwg.mxu0
        %v1093 = vld [vmem:[#allocation9] sm:$0xf]
        %v1094 = vld [vmem:[#allocation9 + $0x4] sm:$0xf]
        %v1095 = vld [vmem:[#allocation9 + $0x8] sm:$0xf]
        %v1096 = vld [vmem:[#allocation9 + $0xc] sm:$0xf]
        %v1097 = vld [vmem:[#allocation9 + $0x10] sm:$0xf]
        %v1098 = vld [vmem:[#allocation9 + $0x14] sm:$0xf]
        %v1099 = vld [vmem:[#allocation9 + $0x18] sm:$0xf]
        %v1100 = vld [vmem:[#allocation9 + $0x1c] sm:$0xf]
        %v1101 = vld [vmem:[#allocation9 + $0x20] sm:$0xf]
        %v1102 = vld [vmem:[#allocation9 + $0x24] sm:$0xf]
        %v1103 = vld [vmem:[#allocation9 + $0x28] sm:$0xf]
        %v1104 = vld [vmem:[#allocation9 + $0x2c] sm:$0xf]
        %v1105 = vld [vmem:[#allocation9 + $0x30] sm:$0xf]
        %v1106 = vld [vmem:[#allocation9 + $0x34] sm:$0xf]
        %v1107 = vld [vmem:[#allocation9 + $0x38] sm:$0xf]
        %v1108 = vld [vmem:[#allocation9 + $0x3c] sm:$0xf]
        %v1109 = vld [vmem:[%s6] sm:$0x1]
        %v1111 = vlaneseq
        %v1112 = vshrl.u32 %v1111, 7
        %v1113 = vsub.s32 0, %v1112
        %v1114 = vrot.slane %v1109, %v1113
        %v1148 = vunpack.c.l.b16 %v616
        %v1149 = vunpack.c.l.b16 %v617
        %v1150 = vunpack.c.l.b16 %v618
        %v1151 = vunpack.c.l.b16 %v619
        %v1152 = vunpack.c.l.b16 %v620
        %v1153 = vunpack.c.l.b16 %v621
        %v1154 = vunpack.c.l.b16 %v622
        %v1155 = vunpack.c.l.b16 %v623
        %v1156 = vunpack.c.l.b16 %v624
        %v1157 = vunpack.c.l.b16 %v625
        %v1158 = vunpack.c.l.b16 %v626
        %v1159 = vunpack.c.l.b16 %v627
        %v1160 = vunpack.c.l.b16 %v628
        %v1161 = vunpack.c.l.b16 %v629
        %v1162 = vunpack.c.l.b16 %v630
        %v1163 = vunpack.c.l.b16 %v631
        %v1164 = vunpack.c.l.b16 %v632
        %v1165 = vunpack.c.l.b16 %v633
        %v1166 = vunpack.c.l.b16 %v634
        %v1167 = vunpack.c.l.b16 %v635
        %v1168 = vunpack.c.l.b16 %v636
        %v1169 = vunpack.c.l.b16 %v637
        %v1170 = vunpack.c.l.b16 %v638
        %v1171 = vunpack.c.l.b16 %v639
        %v1172 = vunpack.c.l.b16 %v640
        %v1173 = vunpack.c.l.b16 %v641
        %v1174 = vunpack.c.l.b16 %v642
        %v1175 = vunpack.c.l.b16 %v643
        %v1176 = vunpack.c.l.b16 %v644
        %v1177 = vunpack.c.l.b16 %v645
        %v1178 = vunpack.c.l.b16 %v646
        %v1179 = vunpack.c.l.b16 %v647
        %v1180 = vpack.c.b16 %v1149, %v1148
        %v1181 = vpack.c.b16 %v1151, %v1150
        %v1182 = vpack.c.b16 %v1153, %v1152
        %v1183 = vpack.c.b16 %v1155, %v1154
        %v1184 = vpack.c.b16 %v1157, %v1156
        %v1185 = vpack.c.b16 %v1159, %v1158
        %v1186 = vpack.c.b16 %v1161, %v1160
        %v1187 = vpack.c.b16 %v1163, %v1162
        %v1188 = vpack.c.b16 %v1165, %v1164
        %v1189 = vpack.c.b16 %v1167, %v1166
        %v1190 = vpack.c.b16 %v1169, %v1168
        %v1191 = vpack.c.b16 %v1171, %v1170
        %v1192 = vpack.c.b16 %v1173, %v1172
        %v1193 = vpack.c.b16 %v1175, %v1174
        %v1194 = vpack.c.b16 %v1177, %v1176
        %v1195 = vpack.c.b16 %v1179, %v1178
        %v1228 = vunpack.c.l.b16 %v1093
        %v1229 = vunpack.c.l.b16 %v1094
        %v1230 = vunpack.c.l.b16 %v1095
        %v1231 = vunpack.c.l.b16 %v1096
        %v1232 = vunpack.c.l.b16 %v1097
        %v1233 = vunpack.c.l.b16 %v1098
        %v1234 = vunpack.c.l.b16 %v1099
        %v1235 = vunpack.c.l.b16 %v1100
        %v1236 = vunpack.c.l.b16 %v1101
        %v1237 = vunpack.c.l.b16 %v1102
        %v1238 = vunpack.c.l.b16 %v1103
        %v1239 = vunpack.c.l.b16 %v1104
        %v1240 = vunpack.c.l.b16 %v1105
        %v1241 = vunpack.c.l.b16 %v1106
        %v1242 = vunpack.c.l.b16 %v1107
        %v1243 = vunpack.c.l.b16 %v1108
        %v1244 = vpack.c.b16 %v1229, %v1228
        %v1245 = vpack.c.b16 %v1231, %v1230
        %v1246 = vpack.c.b16 %v1233, %v1232
        %v1247 = vpack.c.b16 %v1235, %v1234
        %v1248 = vpack.c.b16 %v1237, %v1236
        %v1249 = vpack.c.b16 %v1239, %v1238
        %v1250 = vpack.c.b16 %v1241, %v1240
        %v1251 = vpack.c.b16 %v1243, %v1242
        %1260 = vmatprep.subr.bf16.mxu0 0
        %1261 = vmatpush1.bf16.msra.mxu0 %v1244
        %1262 = vmatprep.subr.bf16.mxu0 0
        %1263 = vmatpush1.bf16.msra.mxu0 %v1245
        %1264 = vmatprep.subr.bf16.mxu0 0
        %1265 = vmatpush1.bf16.msra.mxu0 %v1246
        %1266 = vmatprep.subr.bf16.mxu0 0
        %1267 = vmatpush1.bf16.msra.mxu0 %v1247
        %1268 = vmatprep.subr.bf16.mxu0 0
        %1269 = vmatpush1.bf16.msra.mxu0 %v1248
        %1270 = vmatprep.subr.bf16.mxu0 0
        %1271 = vmatpush1.bf16.msra.mxu0 %v1249
        %1272 = vmatprep.subr.bf16.mxu0 0
        %1273 = vmatpush1.bf16.msra.mxu0 %v1250
        %1274 = vmatprep.subr.bf16.mxu0 0
        %1275 = vmatpush1.bf16.msra.mxu0 %v1251
        %1276 = vmatprep.subr.bf16.mxu0 0
        %1277 = vmatpush1.bf16.msra.mxu0 0
        %1278 = vmatprep.subr.bf16.mxu0 0
        %1279 = vmatpush1.bf16.msra.mxu0 0
        %1280 = vmatprep.subr.bf16.mxu0 0
        %1281 = vmatpush1.bf16.msra.mxu0 0
        %1282 = vmatprep.subr.bf16.mxu0 0
        %1283 = vmatpush1.bf16.msra.mxu0 0
        %1284 = vmatprep.subr.bf16.mxu0 0
        %1285 = vmatpush1.bf16.msra.mxu0 0
        %1286 = vmatprep.subr.bf16.mxu0 0
        %1287 = vmatpush1.bf16.msra.mxu0 0
        %1288 = vmatprep.subr.bf16.mxu0 0
        %1289 = vmatpush1.bf16.msra.mxu0 0
        %1290 = vmatprep.subr.bf16.mxu0 0
        %1291 = vmatpush1.bf16.msra.mxu0 0
        %1292 = vmatprep.mubr.bf16.mxu0 0
        %1293 = vmatmul.mubr.bf16.gmra.mrb[0].mxu0 %v1180
        %v1294 = vpop.f32.mrb[0].mxu0
        %v1295 = vadd.f32 %v1114, %v1294
        %v1296 = vpop.f32.mrb[0].mxu0
        %v1297 = vpop.f32.mrb[0].mxu0
        %v1298 = vadd.f32 %v1114, %v1297
        %v1299 = vpop.f32.mrb[0].mxu0
        %1300 = vmatprep.mubr.bf16.mxu0 0
        %1301 = vmatmul.mubr.bf16.gmra.mrb[0].mxu0 %v1181
        %v1302 = vpop.f32.mrb[0].mxu0
        %v1303 = vadd.f32 %v1114, %v1302
        %v1304 = vpop.f32.mrb[0].mxu0
        %v1305 = vpop.f32.mrb[0].mxu0
        %v1306 = vadd.f32 %v1114, %v1305
        %v1307 = vpop.f32.mrb[0].mxu0
        %1308 = vmatprep.mubr.bf16.mxu0 0
        %1309 = vmatmul.mubr.bf16.gmra.mrb[0].mxu0 %v1182
        %v1310 = vpop.f32.mrb[0].mxu0
        %v1311 = vadd.f32 %v1114, %v1310
        %v1312 = vpop.f32.mrb[0].mxu0
        %v1313 = vpop.f32.mrb[0].mxu0
        %v1314 = vadd.f32 %v1114, %v1313
        %v1315 = vpop.f32.mrb[0].mxu0
        %1316 = vmatprep.mubr.bf16.mxu0 0
        %1317 = vmatmul.mubr.bf16.gmra.mrb[0].mxu0 %v1183
        %v1318 = vpop.f32.mrb[0].mxu0
        %v1319 = vadd.f32 %v1114, %v1318
        %v1320 = vpop.f32.mrb[0].mxu0
        %v1321 = vpop.f32.mrb[0].mxu0
        %v1322 = vadd.f32 %v1114, %v1321
        %v1323 = vpop.f32.mrb[0].mxu0
        %1324 = vmatprep.mubr.bf16.mxu0 0
        %1325 = vmatmul.mubr.bf16.gmra.mrb[0].mxu0 %v1184
        %v1326 = vpop.f32.mrb[0].mxu0
        %v1327 = vadd.f32 %v1114, %v1326
        %v1328 = vpop.f32.mrb[0].mxu0
        %v1329 = vpop.f32.mrb[0].mxu0
        %v1330 = vadd.f32 %v1114, %v1329
        %v1331 = vpop.f32.mrb[0].mxu0
        %1332 = vmatprep.mubr.bf16.mxu0 0
        %1333 = vmatmul.mubr.bf16.gmra.mrb[0].mxu0 %v1185
        %v1334 = vpop.f32.mrb[0].mxu0
        %v1335 = vadd.f32 %v1114, %v1334
        %v1336 = vpop.f32.mrb[0].mxu0
        %v1337 = vpop.f32.mrb[0].mxu0
        %v1338 = vadd.f32 %v1114, %v1337
        %v1339 = vpop.f32.mrb[0].mxu0
        %1340 = vmatprep.mubr.bf16.mxu0 0
        %1341 = vmatmul.mubr.bf16.gmra.mrb[0].mxu0 %v1186
        %v1342 = vpop.f32.mrb[0].mxu0
        %v1343 = vadd.f32 %v1114, %v1342
        %v1344 = vpop.f32.mrb[0].mxu0
        %v1345 = vpop.f32.mrb[0].mxu0
        %v1346 = vadd.f32 %v1114, %v1345
        %v1347 = vpop.f32.mrb[0].mxu0
        %1348 = vmatprep.mubr.bf16.mxu0 0
        %1349 = vmatmul.mubr.bf16.gmra.mrb[0].mxu0 %v1187
        %v1350 = vpop.f32.mrb[0].mxu0
        %v1351 = vadd.f32 %v1114, %v1350
        %v1352 = vpop.f32.mrb[0].mxu0
        %v1353 = vpop.f32.mrb[0].mxu0
        %v1354 = vadd.f32 %v1114, %v1353
        %v1355 = vpop.f32.mrb[0].mxu0
        %1356 = vmatprep.mubr.bf16.mxu0 0
        %1357 = vmatmul.mubr.bf16.gmra.mrb[0].mxu0 %v1188
        %v1358 = vpop.f32.mrb[0].mxu0
        %v1359 = vadd.f32 %v1114, %v1358
        %v1360 = vpop.f32.mrb[0].mxu0
        %v1361 = vpop.f32.mrb[0].mxu0
        %v1362 = vadd.f32 %v1114, %v1361
        %v1363 = vpop.f32.mrb[0].mxu0
        %1364 = vmatprep.mubr.bf16.mxu0 0
        %1365 = vmatmul.mubr.bf16.gmra.mrb[0].mxu0 %v1189
        %v1366 = vpop.f32.mrb[0].mxu0
        %v1367 = vadd.f32 %v1114, %v1366
        %v1368 = vpop.f32.mrb[0].mxu0
        %v1369 = vpop.f32.mrb[0].mxu0
        %v1370 = vadd.f32 %v1114, %v1369
        %v1371 = vpop.f32.mrb[0].mxu0
        %1372 = vmatprep.mubr.bf16.mxu0 0
        %1373 = vmatmul.mubr.bf16.gmra.mrb[0].mxu0 %v1190
        %v1374 = vpop.f32.mrb[0].mxu0
        %v1375 = vadd.f32 %v1114, %v1374
        %v1376 = vpop.f32.mrb[0].mxu0
        %v1377 = vpop.f32.mrb[0].mxu0
        %v1378 = vadd.f32 %v1114, %v1377
        %v1379 = vpop.f32.mrb[0].mxu0
        %1380 = vmatprep.mubr.bf16.mxu0 0
        %1381 = vmatmul.mubr.bf16.gmra.mrb[0].mxu0 %v1191
        %v1382 = vpop.f32.mrb[0].mxu0
        %v1383 = vadd.f32 %v1114, %v1382
        %v1384 = vpop.f32.mrb[0].mxu0
        %v1385 = vpop.f32.mrb[0].mxu0
        %v1386 = vadd.f32 %v1114, %v1385
        %v1387 = vpop.f32.mrb[0].mxu0
        %1388 = vmatprep.mubr.bf16.mxu0 0
        %1389 = vmatmul.mubr.bf16.gmra.mrb[0].mxu0 %v1192
        %v1390 = vpop.f32.mrb[0].mxu0
        %v1391 = vadd.f32 %v1114, %v1390
        %v1392 = vpop.f32.mrb[0].mxu0
        %v1393 = vpop.f32.mrb[0].mxu0
        %v1394 = vadd.f32 %v1114, %v1393
        %v1395 = vpop.f32.mrb[0].mxu0
        %1396 = vmatprep.mubr.bf16.mxu0 0
        %1397 = vmatmul.mubr.bf16.gmra.mrb[0].mxu0 %v1193
        %v1398 = vpop.f32.mrb[0].mxu0
        %v1399 = vadd.f32 %v1114, %v1398
        %v1400 = vpop.f32.mrb[0].mxu0
        %v1401 = vpop.f32.mrb[0].mxu0
        %v1402 = vadd.f32 %v1114, %v1401
        %v1403 = vpop.f32.mrb[0].mxu0
        %1404 = vmatprep.mubr.bf16.mxu0 0
        %1405 = vmatmul.mubr.bf16.gmra.mrb[0].mxu0 %v1194
        %v1406 = vpop.f32.mrb[0].mxu0
        %v1407 = vadd.f32 %v1114, %v1406
        %v1408 = vpop.f32.mrb[0].mxu0
        %v1409 = vpop.f32.mrb[0].mxu0
        %v1410 = vadd.f32 %v1114, %v1409
        %v1411 = vpop.f32.mrb[0].mxu0
        %1412 = vmatprep.mubr.bf16.mxu0 0
        %1413 = vmatmul.mubr.bf16.gmra.mrb[0].mxu0 %v1195
        %v1414 = vpop.f32.mrb[0].mxu0
        %v1415 = vadd.f32 %v1114, %v1414
        %v1416 = vpop.f32.mrb[0].mxu0
        %v1417 = vpop.f32.mrb[0].mxu0
        %v1418 = vadd.f32 %v1114, %v1417
        %v1419 = vpop.f32.mrb[0].mxu0
        %1420 = vdwg.mxu0
        %v1421 = vld [vmem:[%s9] sm:$0xff]
        %v1422 = vld [vmem:[%s9 + $0x8] sm:$0xff]
        %v1423 = vld [vmem:[%s9 + $0x10] sm:$0xff]
        %v1424 = vld [vmem:[%s9 + $0x18] sm:$0xff]
        %v1425 = vld [vmem:[%s9 + $0x20] sm:$0xff]
        %v1426 = vld [vmem:[%s9 + $0x28] sm:$0xff]
        %v1427 = vld [vmem:[%s9 + $0x30] sm:$0xff]
        %v1428 = vld [vmem:[%s9 + $0x38] sm:$0xff]
        %v1429 = vld [vmem:[%s9 + $0x40] sm:$0xff]
        %v1430 = vld [vmem:[%s9 + $0x48] sm:$0xff]
        %v1431 = vld [vmem:[%s9 + $0x50] sm:$0xff]
        %v1432 = vld [vmem:[%s9 + $0x58] sm:$0xff]
        %v1433 = vld [vmem:[%s9 + $0x60] sm:$0xff]
        %v1434 = vld [vmem:[%s9 + $0x68] sm:$0xff]
        %v1435 = vld [vmem:[%s9 + $0x70] sm:$0xff]
        %v1436 = vld [vmem:[%s9 + $0x78] sm:$0xff]
        %v1437 = vld [vmem:[%s10] sm:$0xff]
        %s1438 = sld [smem:[#allocation2]]
        %v1439 = vmul.f32 %v935, %v935
        %v1440 = vmul.f32 %v939, %v939
        %v1441 = vmul.f32 %v945, %v945
        %v1442 = vmul.f32 %v949, %v949
        %v1443 = vmul.f32 %v955, %v955
        %v1444 = vmul.f32 %v959, %v959
        %v1445 = vmul.f32 %v965, %v965
        %v1446 = vmul.f32 %v969, %v969
        %v1447 = vmul.f32 %v975, %v975
        %v1448 = vmul.f32 %v979, %v979
        %v1449 = vmul.f32 %v985, %v985
        %v1450 = vmul.f32 %v989, %v989
        %v1451 = vmul.f32 %v995, %v995
        %v1452 = vmul.f32 %v999, %v999
        %v1453 = vmul.f32 %v1005, %v1005
        %v1454 = vmul.f32 %v1009, %v1009
        %v1455 = vmul.f32 %v1015, %v1015
        %v1456 = vmul.f32 %v1019, %v1019
        %v1457 = vmul.f32 %v1025, %v1025
        %v1458 = vmul.f32 %v1029, %v1029
        %v1459 = vmul.f32 %v1035, %v1035
        %v1460 = vmul.f32 %v1039, %v1039
        %v1461 = vmul.f32 %v1045, %v1045
        %v1462 = vmul.f32 %v1049, %v1049
        %v1463 = vmul.f32 %v1055, %v1055
        %v1464 = vmul.f32 %v1059, %v1059
        %v1465 = vmul.f32 %v1065, %v1065
        %v1466 = vmul.f32 %v1069, %v1069
        %v1467 = vmul.f32 %v1075, %v1075
        %v1468 = vmul.f32 %v1079, %v1079
        %v1469 = vmul.f32 %v1085, %v1085
        %v1470 = vmul.f32 %v1089, %v1089
        %v1471 = vmul.f32 %v937, %v937
        %v1472 = vmul.f32 %v941, %v941
        %v1473 = vmul.f32 %v947, %v947
        %v1474 = vmul.f32 %v951, %v951
        %v1475 = vmul.f32 %v957, %v957
        %v1476 = vmul.f32 %v961, %v961
        %v1477 = vmul.f32 %v967, %v967
        %v1478 = vmul.f32 %v971, %v971
        %v1479 = vmul.f32 %v977, %v977
        %v1480 = vmul.f32 %v981, %v981
        %v1481 = vmul.f32 %v987, %v987
        %v1482 = vmul.f32 %v991, %v991
        %v1483 = vmul.f32 %v997, %v997
        %v1484 = vmul.f32 %v1001, %v1001
        %v1485 = vmul.f32 %v1007, %v1007
        %v1486 = vmul.f32 %v1011, %v1011
        %v1487 = vmul.f32 %v1017, %v1017
        %v1488 = vmul.f32 %v1021, %v1021
        %v1489 = vmul.f32 %v1027, %v1027
        %v1490 = vmul.f32 %v1031, %v1031
        %v1491 = vmul.f32 %v1037, %v1037
        %v1492 = vmul.f32 %v1041, %v1041
        %v1493 = vmul.f32 %v1047, %v1047
        %v1494 = vmul.f32 %v1051, %v1051
        %v1495 = vmul.f32 %v1057, %v1057
        %v1496 = vmul.f32 %v1061, %v1061
        %v1497 = vmul.f32 %v1067, %v1067
        %v1498 = vmul.f32 %v1071, %v1071
        %v1499 = vmul.f32 %v1077, %v1077
        %v1500 = vmul.f32 %v1081, %v1081
        %v1501 = vmul.f32 %v1087, %v1087
        %v1502 = vmul.f32 %v1091, %v1091
        %1503 = vmatprep.subr.mxu0 0.0
        %1504 = vmatpush1.msra.mxu0 %v1421
        %1505 = vmatprep.subr.mxu0 0.0
        %1506 = vmatpush1.msra.mxu0 %v1422
        %1507 = vmatprep.subr.mxu0 0.0
        %1508 = vmatpush1.msra.mxu0 %v1423
        %1509 = vmatprep.subr.mxu0 0.0
        %1510 = vmatpush1.msra.mxu0 %v1424
        %1511 = vmatprep.subr.mxu0 0.0
        %1512 = vmatpush1.msra.mxu0 %v1425
        %1513 = vmatprep.subr.mxu0 0.0
        %1514 = vmatpush1.msra.mxu0 %v1426
        %1515 = vmatprep.subr.mxu0 0.0
        %1516 = vmatpush1.msra.mxu0 %v1427
        %1517 = vmatprep.subr.mxu0 0.0
        %1518 = vmatpush1.msra.mxu0 %v1428
        %1519 = vmatprep.subr.mxu0 0.0
        %1520 = vmatpush1.msra.mxu0 %v1429
        %1521 = vmatprep.subr.mxu0 0.0
        %1522 = vmatpush1.msra.mxu0 %v1430
        %1523 = vmatprep.subr.mxu0 0.0
        %1524 = vmatpush1.msra.mxu0 %v1431
        %1525 = vmatprep.subr.mxu0 0.0
        %1526 = vmatpush1.msra.mxu0 %v1432
        %1527 = vmatprep.subr.mxu0 0.0
        %1528 = vmatpush1.msra.mxu0 %v1433
        %1529 = vmatprep.subr.mxu0 0.0
        %1530 = vmatpush1.msra.mxu0 %v1434
        %1531 = vmatprep.subr.mxu0 0.0
        %1532 = vmatpush1.msra.mxu0 %v1435
        %1533 = vmatprep.subr.mxu0 0.0
        %1534 = vmatpush1.msra.mxu0 %v1436
        %1535 = vmatprep.subr.mxu0 0.0
        %1536 = vmatpush1.msra.mxu0 0.0
        %1537 = vmatprep.subr.mxu0 0.0
        %1538 = vmatpush1.msra.mxu0 0.0
        %1539 = vmatprep.subr.mxu0 0.0
        %1540 = vmatpush1.msra.mxu0 0.0
        %1541 = vmatprep.subr.mxu0 0.0
        %1542 = vmatpush1.msra.mxu0 0.0
        %1543 = vmatprep.subr.mxu0 0.0
        %1544 = vmatpush1.msra.mxu0 0.0
        %1545 = vmatprep.subr.mxu0 0.0
        %1546 = vmatpush1.msra.mxu0 0.0
        %1547 = vmatprep.subr.mxu0 0.0
        %1548 = vmatpush1.msra.mxu0 0.0
        %1549 = vmatprep.subr.mxu0 0.0
        %1550 = vmatpush1.msra.mxu0 0.0
        %1551 = vmatprep.subr.mxu0 0.0
        %1552 = vmatpush1.msra.mxu0 0.0
        %1553 = vmatprep.subr.mxu0 0.0
        %1554 = vmatpush1.msra.mxu0 0.0
        %1555 = vmatprep.subr.mxu0 0.0
        %1556 = vmatpush1.msra.mxu0 0.0
        %1557 = vmatprep.subr.mxu0 0.0
        %1558 = vmatpush1.msra.mxu0 0.0
        %1559 = vmatprep.subr.mxu0 0.0
        %1560 = vmatpush1.msra.mxu0 0.0
        %1561 = vmatprep.subr.mxu0 0.0
        %1562 = vmatpush1.msra.mxu0 0.0
        %1563 = vmatprep.subr.mxu0 0.0
        %1564 = vmatpush1.msra.mxu0 0.0
        %1565 = vmatprep.subr.mxu0 0.0
        %1566 = vmatpush1.msra.mxu0 0.0
        %1567 = vmatprep.mubr.f32.mxu0 0.0
        %1568 = vmatmul.mubr.f32.gmra.mrb[0].mxu0 %v1439
        %v1569 = vpop.f32.mrb[0].mxu0
        %v1570 = vadd.f32 1e-12, %v1569
        %v1571 = vpop.f32.mrb[0].mxu0
        %1572 = vmatprep.mubr.f32.mxu0 0.0
        %1573 = vmatmul.mubr.f32.gmra.mrb[0].mxu0 %v1440
        %v1574 = vpop.f32.mrb[0].mxu0
        %v1575 = vadd.f32 1e-12, %v1574
        %v1576 = vpop.f32.mrb[0].mxu0
        %1577 = vmatprep.mubr.f32.mxu0 0.0
        %1578 = vmatmul.mubr.f32.gmra.mrb[0].mxu0 %v1441
        %v1579 = vpop.f32.mrb[0].mxu0
        %v1580 = vadd.f32 1e-12, %v1579
        %v1581 = vpop.f32.mrb[0].mxu0
        %1582 = vmatprep.mubr.f32.mxu0 0.0
        %1583 = vmatmul.mubr.f32.gmra.mrb[0].mxu0 %v1442
        %v1584 = vpop.f32.mrb[0].mxu0
        %v1585 = vadd.f32 1e-12, %v1584
        %v1586 = vpop.f32.mrb[0].mxu0
        %1587 = vmatprep.mubr.f32.mxu0 0.0
        %1588 = vmatmul.mubr.f32.gmra.mrb[0].mxu0 %v1443
        %v1589 = vpop.f32.mrb[0].mxu0
        %v1590 = vadd.f32 1e-12, %v1589
        %v1591 = vpop.f32.mrb[0].mxu0
        %1592 = vmatprep.mubr.f32.mxu0 0.0
        %1593 = vmatmul.mubr.f32.gmra.mrb[0].mxu0 %v1444
        %v1594 = vpop.f32.mrb[0].mxu0
        %v1595 = vadd.f32 1e-12, %v1594
        %v1596 = vpop.f32.mrb[0].mxu0
        %1597 = vmatprep.mubr.f32.mxu0 0.0
        %1598 = vmatmul.mubr.f32.gmra.mrb[0].mxu0 %v1445
        %v1599 = vpop.f32.mrb[0].mxu0
        %v1600 = vadd.f32 1e-12, %v1599
        %v1601 = vpop.f32.mrb[0].mxu0
        %1602 = vmatprep.mubr.f32.mxu0 0.0
        %1603 = vmatmul.mubr.f32.gmra.mrb[0].mxu0 %v1446
        %v1604 = vpop.f32.mrb[0].mxu0
        %v1605 = vadd.f32 1e-12, %v1604
        %v1606 = vpop.f32.mrb[0].mxu0
        %1607 = vmatprep.mubr.f32.mxu0 0.0
        %1608 = vmatmul.mubr.f32.gmra.mrb[0].mxu0 %v1447
        %v1609 = vpop.f32.mrb[0].mxu0
        %v1610 = vadd.f32 1e-12, %v1609
        %v1611 = vpop.f32.mrb[0].mxu0
        %1612 = vmatprep.mubr.f32.mxu0 0.0
        %1613 = vmatmul.mubr.f32.gmra.mrb[0].mxu0 %v1448
        %v1614 = vpop.f32.mrb[0].mxu0
        %v1615 = vadd.f32 1e-12, %v1614
        %v1616 = vpop.f32.mrb[0].mxu0
        %1617 = vmatprep.mubr.f32.mxu0 0.0
        %1618 = vmatmul.mubr.f32.gmra.mrb[0].mxu0 %v1449
        %v1619 = vpop.f32.mrb[0].mxu0
        %v1620 = vadd.f32 1e-12, %v1619
        %v1621 = vpop.f32.mrb[0].mxu0
        %1622 = vmatprep.mubr.f32.mxu0 0.0
        %1623 = vmatmul.mubr.f32.gmra.mrb[0].mxu0 %v1450
        %v1624 = vpop.f32.mrb[0].mxu0
        %v1625 = vadd.f32 1e-12, %v1624
        %v1626 = vpop.f32.mrb[0].mxu0
        %1627 = vmatprep.mubr.f32.mxu0 0.0
        %1628 = vmatmul.mubr.f32.gmra.mrb[0].mxu0 %v1451
        %v1629 = vpop.f32.mrb[0].mxu0
        %v1630 = vadd.f32 1e-12, %v1629
        %v1631 = vpop.f32.mrb[0].mxu0
        %1632 = vmatprep.mubr.f32.mxu0 0.0
        %1633 = vmatmul.mubr.f32.gmra.mrb[0].mxu0 %v1452
        %v1634 = vpop.f32.mrb[0].mxu0
        %v1635 = vadd.f32 1e-12, %v1634
        %v1636 = vpop.f32.mrb[0].mxu0
        %1637 = vmatprep.mubr.f32.mxu0 0.0
        %1638 = vmatmul.mubr.f32.gmra.mrb[0].mxu0 %v1453
        %v1639 = vpop.f32.mrb[0].mxu0
        %v1640 = vadd.f32 1e-12, %v1639
        %v1641 = vpop.f32.mrb[0].mxu0
        %1642 = vmatprep.mubr.f32.mxu0 0.0
        %1643 = vmatmul.mubr.f32.gmra.mrb[0].mxu0 %v1454
        %v1644 = vpop.f32.mrb[0].mxu0
        %v1645 = vadd.f32 1e-12, %v1644
        %v1646 = vpop.f32.mrb[0].mxu0
        %1647 = vmatprep.mubr.f32.mxu0 0.0
        %1648 = vmatmul.mubr.f32.gmra.mrb[0].mxu0 %v1455
        %v1649 = vpop.f32.mrb[0].mxu0
        %v1650 = vadd.f32 1e-12, %v1649
        %v1651 = vpop.f32.mrb[0].mxu0
        %1652 = vmatprep.mubr.f32.mxu0 0.0
        %1653 = vmatmul.mubr.f32.gmra.mrb[0].mxu0 %v1456
        %v1654 = vpop.f32.mrb[0].mxu0
        %v1655 = vadd.f32 1e-12, %v1654
        %v1656 = vpop.f32.mrb[0].mxu0
        %1657 = vmatprep.mubr.f32.mxu0 0.0
        %1658 = vmatmul.mubr.f32.gmra.mrb[0].mxu0 %v1457
        %v1659 = vpop.f32.mrb[0].mxu0
        %v1660 = vadd.f32 1e-12, %v1659
        %v1661 = vpop.f32.mrb[0].mxu0
        %1662 = vmatprep.mubr.f32.mxu0 0.0
        %1663 = vmatmul.mubr.f32.gmra.mrb[0].mxu0 %v1458
        %v1664 = vpop.f32.mrb[0].mxu0
        %v1665 = vadd.f32 1e-12, %v1664
        %v1666 = vpop.f32.mrb[0].mxu0
        %1667 = vmatprep.mubr.f32.mxu0 0.0
        %1668 = vmatmul.mubr.f32.gmra.mrb[0].mxu0 %v1459
        %v1669 = vpop.f32.mrb[0].mxu0
        %v1670 = vadd.f32 1e-12, %v1669
        %v1671 = vpop.f32.mrb[0].mxu0
        %1672 = vmatprep.mubr.f32.mxu0 0.0
        %1673 = vmatmul.mubr.f32.gmra.mrb[0].mxu0 %v1460
        %v1674 = vpop.f32.mrb[0].mxu0
        %v1675 = vadd.f32 1e-12, %v1674
        %v1676 = vpop.f32.mrb[0].mxu0
        %1677 = vmatprep.mubr.f32.mxu0 0.0
        %1678 = vmatmul.mubr.f32.gmra.mrb[0].mxu0 %v1461
        %v1679 = vpop.f32.mrb[0].mxu0
        %v1680 = vadd.f32 1e-12, %v1679
        %v1681 = vpop.f32.mrb[0].mxu0
        %1682 = vmatprep.mubr.f32.mxu0 0.0
        %1683 = vmatmul.mubr.f32.gmra.mrb[0].mxu0 %v1462
        %v1684 = vpop.f32.mrb[0].mxu0
        %v1685 = vadd.f32 1e-12, %v1684
        %v1686 = vpop.f32.mrb[0].mxu0
        %1687 = vmatprep.mubr.f32.mxu0 0.0
        %1688 = vmatmul.mubr.f32.gmra.mrb[0].mxu0 %v1463
        %v1689 = vpop.f32.mrb[0].mxu0
        %v1690 = vadd.f32 1e-12, %v1689
        %v1691 = vpop.f32.mrb[0].mxu0
        %1692 = vmatprep.mubr.f32.mxu0 0.0
        %1693 = vmatmul.mubr.f32.gmra.mrb[0].mxu0 %v1464
        %v1694 = vpop.f32.mrb[0].mxu0
        %v1695 = vadd.f32 1e-12, %v1694
        %v1696 = vpop.f32.mrb[0].mxu0
        %1697 = vmatprep.mubr.f32.mxu0 0.0
        %1698 = vmatmul.mubr.f32.gmra.mrb[0].mxu0 %v1465
        %v1699 = vpop.f32.mrb[0].mxu0
        %v1700 = vadd.f32 1e-12, %v1699
        %v1701 = vpop.f32.mrb[0].mxu0
        %1702 = vmatprep.mubr.f32.mxu0 0.0
        %1703 = vmatmul.mubr.f32.gmra.mrb[0].mxu0 %v1466
        %v1704 = vpop.f32.mrb[0].mxu0
        %v1705 = vadd.f32 1e-12, %v1704
        %v1706 = vpop.f32.mrb[0].mxu0
        %1707 = vmatprep.mubr.f32.mxu0 0.0
        %1708 = vmatmul.mubr.f32.gmra.mrb[0].mxu0 %v1467
        %v1709 = vpop.f32.mrb[0].mxu0
        %v1710 = vadd.f32 1e-12, %v1709
        %v1711 = vpop.f32.mrb[0].mxu0
        %1712 = vmatprep.mubr.f32.mxu0 0.0
        %1713 = vmatmul.mubr.f32.gmra.mrb[0].mxu0 %v1468
        %v1714 = vpop.f32.mrb[0].mxu0
        %v1715 = vadd.f32 1e-12, %v1714
        %v1716 = vpop.f32.mrb[0].mxu0
        %1717 = vmatprep.mubr.f32.mxu0 0.0
        %1718 = vmatmul.mubr.f32.gmra.mrb[0].mxu0 %v1469
        %v1719 = vpop.f32.mrb[0].mxu0
        %v1720 = vadd.f32 1e-12, %v1719
        %v1721 = vpop.f32.mrb[0].mxu0
        %1722 = vmatprep.mubr.f32.mxu0 0.0
        %1723 = vmatmul.mubr.f32.gmra.mrb[0].mxu0 %v1470
        %v1724 = vpop.f32.mrb[0].mxu0
        %v1725 = vadd.f32 1e-12, %v1724
        %v1726 = vpop.f32.mrb[0].mxu0
        %1727 = vdwg.mxu0
        %v1728 = vrsqrt.pop %v1570
        %v1729 = vrsqrt.pop %v1575
        %v1730 = vrsqrt.pop %v1580
        %v1731 = vrsqrt.pop %v1585
        %v1732 = vrsqrt.pop %v1590
        %v1733 = vrsqrt.pop %v1595
        %v1734 = vrsqrt.pop %v1600
        %v1735 = vrsqrt.pop %v1605
        %v1736 = vrsqrt.pop %v1610
        %v1737 = vrsqrt.pop %v1615
        %v1738 = vrsqrt.pop %v1620
        %v1739 = vrsqrt.pop %v1625
        %v1740 = vrsqrt.pop %v1630
        %v1741 = vrsqrt.pop %v1635
        %v1742 = vrsqrt.pop %v1640
        %v1743 = vrsqrt.pop %v1645
        %v1744 = vrsqrt.pop %v1650
        %v1745 = vrsqrt.pop %v1655
        %v1746 = vrsqrt.pop %v1660
        %v1747 = vrsqrt.pop %v1665
        %v1748 = vrsqrt.pop %v1670
        %v1749 = vrsqrt.pop %v1675
        %v1750 = vrsqrt.pop %v1680
        %v1751 = vrsqrt.pop %v1685
        %v1752 = vrsqrt.pop %v1690
        %v1753 = vrsqrt.pop %v1695
        %v1754 = vrsqrt.pop %v1700
        %v1755 = vrsqrt.pop %v1705
        %v1756 = vrsqrt.pop %v1710
        %v1757 = vrsqrt.pop %v1715
        %v1758 = vrsqrt.pop %v1720
        %v1759 = vrsqrt.pop %v1725
        %v1760 = vstv %s1438
        %v1761 = vmul.f32 %v1728, %v1760
        %v1762 = vmul.f32 %v1729, %v1760
        %v1763 = vmul.f32 %v1730, %v1760
        %v1764 = vmul.f32 %v1731, %v1760
        %v1765 = vmul.f32 %v1732, %v1760
        %v1766 = vmul.f32 %v1733, %v1760
        %v1767 = vmul.f32 %v1734, %v1760
        %v1768 = vmul.f32 %v1735, %v1760
        %v1769 = vmul.f32 %v1736, %v1760
        %v1770 = vmul.f32 %v1737, %v1760
        %v1771 = vmul.f32 %v1738, %v1760
        %v1772 = vmul.f32 %v1739, %v1760
        %v1773 = vmul.f32 %v1740, %v1760
        %v1774 = vmul.f32 %v1741, %v1760
        %v1775 = vmul.f32 %v1742, %v1760
        %v1776 = vmul.f32 %v1743, %v1760
        %v1777 = vmul.f32 %v1744, %v1760
        %v1778 = vmul.f32 %v1745, %v1760
        %v1779 = vmul.f32 %v1746, %v1760
        %v1780 = vmul.f32 %v1747, %v1760
        %v1781 = vmul.f32 %v1748, %v1760
        %v1782 = vmul.f32 %v1749, %v1760
        %v1783 = vmul.f32 %v1750, %v1760
        %v1784 = vmul.f32 %v1751, %v1760
        %v1785 = vmul.f32 %v1752, %v1760
        %v1786 = vmul.f32 %v1753, %v1760
        %v1787 = vmul.f32 %v1754, %v1760
        %v1788 = vmul.f32 %v1755, %v1760
        %v1789 = vmul.f32 %v1756, %v1760
        %v1790 = vmul.f32 %v1757, %v1760
        %v1791 = vmul.f32 %v1758, %v1760
        %v1792 = vmul.f32 %v1759, %v1760
        %1793 = vmatprep.subr.mxu0 0.0
        %1794 = vmatpush1.msra.mxu0 %v1421
        %1795 = vmatprep.subr.mxu0 0.0
        %1796 = vmatpush1.msra.mxu0 %v1422
        %1797 = vmatprep.subr.mxu0 0.0
        %1798 = vmatpush1.msra.mxu0 %v1423
        %1799 = vmatprep.subr.mxu0 0.0
        %1800 = vmatpush1.msra.mxu0 %v1424
        %1801 = vmatprep.subr.mxu0 0.0
        %1802 = vmatpush1.msra.mxu0 %v1425
        %1803 = vmatprep.subr.mxu0 0.0
        %1804 = vmatpush1.msra.mxu0 %v1426
        %1805 = vmatprep.subr.mxu0 0.0
        %1806 = vmatpush1.msra.mxu0 %v1427
        %1807 = vmatprep.subr.mxu0 0.0
        %1808 = vmatpush1.msra.mxu0 %v1428
        %1809 = vmatprep.subr.mxu0 0.0
        %1810 = vmatpush1.msra.mxu0 %v1429
        %1811 = vmatprep.subr.mxu0 0.0
        %1812 = vmatpush1.msra.mxu0 %v1430
        %1813 = vmatprep.subr.mxu0 0.0
        %1814 = vmatpush1.msra.mxu0 %v1431
        %1815 = vmatprep.subr.mxu0 0.0
        %1816 = vmatpush1.msra.mxu0 %v1432
        %1817 = vmatprep.subr.mxu0 0.0
        %1818 = vmatpush1.msra.mxu0 %v1433
        %1819 = vmatprep.subr.mxu0 0.0
        %1820 = vmatpush1.msra.mxu0 %v1434
        %1821 = vmatprep.subr.mxu0 0.0
        %1822 = vmatpush1.msra.mxu0 %v1435
        %1823 = vmatprep.subr.mxu0 0.0
        %1824 = vmatpush1.msra.mxu0 %v1436
        %1825 = vmatprep.subr.mxu0 0.0
        %1826 = vmatpush1.msra.mxu0 0.0
        %1827 = vmatprep.subr.mxu0 0.0
        %1828 = vmatpush1.msra.mxu0 0.0
        %1829 = vmatprep.subr.mxu0 0.0
        %1830 = vmatpush1.msra.mxu0 0.0
        %1831 = vmatprep.subr.mxu0 0.0
        %1832 = vmatpush1.msra.mxu0 0.0
        %1833 = vmatprep.subr.mxu0 0.0
        %1834 = vmatpush1.msra.mxu0 0.0
        %1835 = vmatprep.subr.mxu0 0.0
        %1836 = vmatpush1.msra.mxu0 0.0
        %1837 = vmatprep.subr.mxu0 0.0
        %1838 = vmatpush1.msra.mxu0 0.0
        %1839 = vmatprep.subr.mxu0 0.0
        %1840 = vmatpush1.msra.mxu0 0.0
        %1841 = vmatprep.subr.mxu0 0.0
        %1842 = vmatpush1.msra.mxu0 0.0
        %1843 = vmatprep.subr.mxu0 0.0
        %1844 = vmatpush1.msra.mxu0 0.0
        %1845 = vmatprep.subr.mxu0 0.0
        %1846 = vmatpush1.msra.mxu0 0.0
        %1847 = vmatprep.subr.mxu0 0.0
        %1848 = vmatpush1.msra.mxu0 0.0
        %1849 = vmatprep.subr.mxu0 0.0
        %1850 = vmatpush1.msra.mxu0 0.0
        %1851 = vmatprep.subr.mxu0 0.0
        %1852 = vmatpush1.msra.mxu0 0.0
        %1853 = vmatprep.subr.mxu0 0.0
        %1854 = vmatpush1.msra.mxu0 0.0
        %1855 = vmatprep.subr.mxu0 0.0
        %1856 = vmatpush1.msra.mxu0 0.0
        %1857 = vmatprep.mubr.f32.mxu0 0.0
        %1858 = vmatmul.mubr.f32.gmra.mrb[0].mxu0 %v1471
        %v1859 = vpop.f32.mrb[0].mxu0
        %v1860 = vadd.f32 1e-12, %v1859
        %v1861 = vpop.f32.mrb[0].mxu0
        %1862 = vmatprep.mubr.f32.mxu0 0.0
        %1863 = vmatmul.mubr.f32.gmra.mrb[0].mxu0 %v1472
        %v1864 = vpop.f32.mrb[0].mxu0
        %v1865 = vadd.f32 1e-12, %v1864
        %v1866 = vpop.f32.mrb[0].mxu0
        %1867 = vmatprep.mubr.f32.mxu0 0.0
        %1868 = vmatmul.mubr.f32.gmra.mrb[0].mxu0 %v1473
        %v1869 = vpop.f32.mrb[0].mxu0
        %v1870 = vadd.f32 1e-12, %v1869
        %v1871 = vpop.f32.mrb[0].mxu0
        %1872 = vmatprep.mubr.f32.mxu0 0.0
        %1873 = vmatmul.mubr.f32.gmra.mrb[0].mxu0 %v1474
        %v1874 = vpop.f32.mrb[0].mxu0
        %v1875 = vadd.f32 1e-12, %v1874
        %v1876 = vpop.f32.mrb[0].mxu0
        %1877 = vmatprep.mubr.f32.mxu0 0.0
        %1878 = vmatmul.mubr.f32.gmra.mrb[0].mxu0 %v1475
        %v1879 = vpop.f32.mrb[0].mxu0
        %v1880 = vadd.f32 1e-12, %v1879
        %v1881 = vpop.f32.mrb[0].mxu0
        %1882 = vmatprep.mubr.f32.mxu0 0.0
        %1883 = vmatmul.mubr.f32.gmra.mrb[0].mxu0 %v1476
        %v1884 = vpop.f32.mrb[0].mxu0
        %v1885 = vadd.f32 1e-12, %v1884
        %v1886 = vpop.f32.mrb[0].mxu0
        %1887 = vmatprep.mubr.f32.mxu0 0.0
        %1888 = vmatmul.mubr.f32.gmra.mrb[0].mxu0 %v1477
        %v1889 = vpop.f32.mrb[0].mxu0
        %v1890 = vadd.f32 1e-12, %v1889
        %v1891 = vpop.f32.mrb[0].mxu0
        %1892 = vmatprep.mubr.f32.mxu0 0.0
        %1893 = vmatmul.mubr.f32.gmra.mrb[0].mxu0 %v1478
        %v1894 = vpop.f32.mrb[0].mxu0
        %v1895 = vadd.f32 1e-12, %v1894
        %v1896 = vpop.f32.mrb[0].mxu0
        %1897 = vmatprep.mubr.f32.mxu0 0.0
        %1898 = vmatmul.mubr.f32.gmra.mrb[0].mxu0 %v1479
        %v1899 = vpop.f32.mrb[0].mxu0
        %v1900 = vadd.f32 1e-12, %v1899
        %v1901 = vpop.f32.mrb[0].mxu0
        %1902 = vmatprep.mubr.f32.mxu0 0.0
        %1903 = vmatmul.mubr.f32.gmra.mrb[0].mxu0 %v1480
        %v1904 = vpop.f32.mrb[0].mxu0
        %v1905 = vadd.f32 1e-12, %v1904
        %v1906 = vpop.f32.mrb[0].mxu0
        %1907 = vmatprep.mubr.f32.mxu0 0.0
        %1908 = vmatmul.mubr.f32.gmra.mrb[0].mxu0 %v1481
        %v1909 = vpop.f32.mrb[0].mxu0
        %v1910 = vadd.f32 1e-12, %v1909
        %v1911 = vpop.f32.mrb[0].mxu0
        %1912 = vmatprep.mubr.f32.mxu0 0.0
        %1913 = vmatmul.mubr.f32.gmra.mrb[0].mxu0 %v1482
        %v1914 = vpop.f32.mrb[0].mxu0
        %v1915 = vadd.f32 1e-12, %v1914
        %v1916 = vpop.f32.mrb[0].mxu0
        %1917 = vmatprep.mubr.f32.mxu0 0.0
        %1918 = vmatmul.mubr.f32.gmra.mrb[0].mxu0 %v1483
        %v1919 = vpop.f32.mrb[0].mxu0
        %v1920 = vadd.f32 1e-12, %v1919
        %v1921 = vpop.f32.mrb[0].mxu0
        %1922 = vmatprep.mubr.f32.mxu0 0.0
        %1923 = vmatmul.mubr.f32.gmra.mrb[0].mxu0 %v1484
        %v1924 = vpop.f32.mrb[0].mxu0
        %v1925 = vadd.f32 1e-12, %v1924
        %v1926 = vpop.f32.mrb[0].mxu0
        %1927 = vmatprep.mubr.f32.mxu0 0.0
        %1928 = vmatmul.mubr.f32.gmra.mrb[0].mxu0 %v1485
        %v1929 = vpop.f32.mrb[0].mxu0
        %v1930 = vadd.f32 1e-12, %v1929
        %v1931 = vpop.f32.mrb[0].mxu0
        %1932 = vmatprep.mubr.f32.mxu0 0.0
        %1933 = vmatmul.mubr.f32.gmra.mrb[0].mxu0 %v1486
        %v1934 = vpop.f32.mrb[0].mxu0
        %v1935 = vadd.f32 1e-12, %v1934
        %v1936 = vpop.f32.mrb[0].mxu0
        %1937 = vmatprep.mubr.f32.mxu0 0.0
        %1938 = vmatmul.mubr.f32.gmra.mrb[0].mxu0 %v1487
        %v1939 = vpop.f32.mrb[0].mxu0
        %v1940 = vadd.f32 1e-12, %v1939
        %v1941 = vpop.f32.mrb[0].mxu0
        %1942 = vmatprep.mubr.f32.mxu0 0.0
        %1943 = vmatmul.mubr.f32.gmra.mrb[0].mxu0 %v1488
        %v1944 = vpop.f32.mrb[0].mxu0
        %v1945 = vadd.f32 1e-12, %v1944
        %v1946 = vpop.f32.mrb[0].mxu0
        %1947 = vmatprep.mubr.f32.mxu0 0.0
        %1948 = vmatmul.mubr.f32.gmra.mrb[0].mxu0 %v1489
        %v1949 = vpop.f32.mrb[0].mxu0
        %v1950 = vadd.f32 1e-12, %v1949
        %v1951 = vpop.f32.mrb[0].mxu0
        %1952 = vmatprep.mubr.f32.mxu0 0.0
        %1953 = vmatmul.mubr.f32.gmra.mrb[0].mxu0 %v1490
        %v1954 = vpop.f32.mrb[0].mxu0
        %v1955 = vadd.f32 1e-12, %v1954
        %v1956 = vpop.f32.mrb[0].mxu0
        %1957 = vmatprep.mubr.f32.mxu0 0.0
        %1958 = vmatmul.mubr.f32.gmra.mrb[0].mxu0 %v1491
        %v1959 = vpop.f32.mrb[0].mxu0
        %v1960 = vadd.f32 1e-12, %v1959
        %v1961 = vpop.f32.mrb[0].mxu0
        %1962 = vmatprep.mubr.f32.mxu0 0.0
        %1963 = vmatmul.mubr.f32.gmra.mrb[0].mxu0 %v1492
        %v1964 = vpop.f32.mrb[0].mxu0
        %v1965 = vadd.f32 1e-12, %v1964
        %v1966 = vpop.f32.mrb[0].mxu0
        %1967 = vmatprep.mubr.f32.mxu0 0.0
        %1968 = vmatmul.mubr.f32.gmra.mrb[0].mxu0 %v1493
        %v1969 = vpop.f32.mrb[0].mxu0
        %v1970 = vadd.f32 1e-12, %v1969
        %v1971 = vpop.f32.mrb[0].mxu0
        %1972 = vmatprep.mubr.f32.mxu0 0.0
        %1973 = vmatmul.mubr.f32.gmra.mrb[0].mxu0 %v1494
        %v1974 = vpop.f32.mrb[0].mxu0
        %v1975 = vadd.f32 1e-12, %v1974
        %v1976 = vpop.f32.mrb[0].mxu0
        %1977 = vmatprep.mubr.f32.mxu0 0.0
        %1978 = vmatmul.mubr.f32.gmra.mrb[0].mxu0 %v1495
        %v1979 = vpop.f32.mrb[0].mxu0
        %v1980 = vadd.f32 1e-12, %v1979
        %v1981 = vpop.f32.mrb[0].mxu0
        %1982 = vmatprep.mubr.f32.mxu0 0.0
        %1983 = vmatmul.mubr.f32.gmra.mrb[0].mxu0 %v1496
        %v1984 = vpop.f32.mrb[0].mxu0
        %v1985 = vadd.f32 1e-12, %v1984
        %v1986 = vpop.f32.mrb[0].mxu0
        %1987 = vmatprep.mubr.f32.mxu0 0.0
        %1988 = vmatmul.mubr.f32.gmra.mrb[0].mxu0 %v1497
        %v1989 = vpop.f32.mrb[0].mxu0
        %v1990 = vadd.f32 1e-12, %v1989
        %v1991 = vpop.f32.mrb[0].mxu0
        %1992 = vmatprep.mubr.f32.mxu0 0.0
        %1993 = vmatmul.mubr.f32.gmra.mrb[0].mxu0 %v1498
        %v1994 = vpop.f32.mrb[0].mxu0
        %v1995 = vadd.f32 1e-12, %v1994
        %v1996 = vpop.f32.mrb[0].mxu0
        %1997 = vmatprep.mubr.f32.mxu0 0.0
        %1998 = vmatmul.mubr.f32.gmra.mrb[0].mxu0 %v1499
        %v1999 = vpop.f32.mrb[0].mxu0
        %v2000 = vadd.f32 1e-12, %v1999
        %v2001 = vpop.f32.mrb[0].mxu0
        %2002 = vmatprep.mubr.f32.mxu0 0.0
        %2003 = vmatmul.mubr.f32.gmra.mrb[0].mxu0 %v1500
        %v2004 = vpop.f32.mrb[0].mxu0
        %v2005 = vadd.f32 1e-12, %v2004
        %v2006 = vpop.f32.mrb[0].mxu0
        %2007 = vmatprep.mubr.f32.mxu0 0.0
        %2008 = vmatmul.mubr.f32.gmra.mrb[0].mxu0 %v1501
        %v2009 = vpop.f32.mrb[0].mxu0
        %v2010 = vadd.f32 1e-12, %v2009
        %v2011 = vpop.f32.mrb[0].mxu0
        %2012 = vmatprep.mubr.f32.mxu0 0.0
        %2013 = vmatmul.mubr.f32.gmra.mrb[0].mxu0 %v1502
        %v2014 = vpop.f32.mrb[0].mxu0
        %v2015 = vadd.f32 1e-12, %v2014
        %v2016 = vpop.f32.mrb[0].mxu0
        %2017 = vdwg.mxu0
        %v2018 = vrsqrt.pop %v1860
        %v2019 = vrsqrt.pop %v1865
        %v2020 = vrsqrt.pop %v1870
        %v2021 = vrsqrt.pop %v1875
        %v2022 = vrsqrt.pop %v1880
        %v2023 = vrsqrt.pop %v1885
        %v2024 = vrsqrt.pop %v1890
        %v2025 = vrsqrt.pop %v1895
        %v2026 = vrsqrt.pop %v1900
        %v2027 = vrsqrt.pop %v1905
        %v2028 = vrsqrt.pop %v1910
        %v2029 = vrsqrt.pop %v1915
        %v2030 = vrsqrt.pop %v1920
        %v2031 = vrsqrt.pop %v1925
        %v2032 = vrsqrt.pop %v1930
        %v2033 = vrsqrt.pop %v1935
        %v2034 = vrsqrt.pop %v1940
        %v2035 = vrsqrt.pop %v1945
        %v2036 = vrsqrt.pop %v1950
        %v2037 = vrsqrt.pop %v1955
        %v2038 = vrsqrt.pop %v1960
        %v2039 = vrsqrt.pop %v1965
        %v2040 = vrsqrt.pop %v1970
        %v2041 = vrsqrt.pop %v1975
        %v2042 = vrsqrt.pop %v1980
        %v2043 = vrsqrt.pop %v1985
        %v2044 = vrsqrt.pop %v1990
        %v2045 = vrsqrt.pop %v1995
        %v2046 = vrsqrt.pop %v2000
        %v2047 = vrsqrt.pop %v2005
        %v2048 = vrsqrt.pop %v2010
        %v2049 = vrsqrt.pop %v2015
        %vm2050 = vcmask 64512
        %v2052 = vsel %vm2050, %v1761, 0
        %v2055 = vsel %vm2050, %v1762, 0
        %v2058 = vsel %vm2050, %v1763, 0
        %v2061 = vsel %vm2050, %v1764, 0
        %v2064 = vsel %vm2050, %v1765, 0
        %v2067 = vsel %vm2050, %v1766, 0
        %v2070 = vsel %vm2050, %v1767, 0
        %v2073 = vsel %vm2050, %v1768, 0
        %v2076 = vsel %vm2050, %v1769, 0
        %v2079 = vsel %vm2050, %v1770, 0
        %v2082 = vsel %vm2050, %v1771, 0
        %v2085 = vsel %vm2050, %v1772, 0
        %v2088 = vsel %vm2050, %v1773, 0
        %v2091 = vsel %vm2050, %v1774, 0
        %v2094 = vsel %vm2050, %v1775, 0
        %v2097 = vsel %vm2050, %v1776, 0
        %v2100 = vsel %vm2050, %v1777, 0
        %v2103 = vsel %vm2050, %v1778, 0
        %v2106 = vsel %vm2050, %v1779, 0
        %v2109 = vsel %vm2050, %v1780, 0
        %v2112 = vsel %vm2050, %v1781, 0
        %v2115 = vsel %vm2050, %v1782, 0
        %v2118 = vsel %vm2050, %v1783, 0
        %v2121 = vsel %vm2050, %v1784, 0
        %v2124 = vsel %vm2050, %v1785, 0
        %v2127 = vsel %vm2050, %v1786, 0
        %v2130 = vsel %vm2050, %v1787, 0
        %v2133 = vsel %vm2050, %v1788, 0
        %v2136 = vsel %vm2050, %v1789, 0
        %v2139 = vsel %vm2050, %v1790, 0
        %v2142 = vsel %vm2050, %v1791, 0
        %v2145 = vsel %vm2050, %v1792, 0
        %2147 = vmatprep.subr.mxu0 0.0
        %2148 = vmatpush1.msra.mxu0 %v1437
        %2149 = vmatprep.subr.mxu0 0.0
        %2150 = vmatpush1.msra.mxu0 0.0
        %2151 = vmatprep.subr.mxu0 0.0
        %2152 = vmatpush1.msra.mxu0 0.0
        %2153 = vmatprep.subr.mxu0 0.0
        %2154 = vmatpush1.msra.mxu0 0.0
        %2155 = vmatprep.subr.mxu0 0.0
        %2156 = vmatpush1.msra.mxu0 0.0
        %2157 = vmatprep.subr.mxu0 0.0
        %2158 = vmatpush1.msra.mxu0 0.0
        %2159 = vmatprep.subr.mxu0 0.0
        %2160 = vmatpush1.msra.mxu0 0.0
        %2161 = vmatprep.subr.mxu0 0.0
        %2162 = vmatpush1.msra.mxu0 0.0
        %2163 = vmatprep.subr.mxu0 0.0
        %2164 = vmatpush1.msra.mxu0 0.0
        %2165 = vmatprep.subr.mxu0 0.0
        %2166 = vmatpush1.msra.mxu0 0.0
        %2167 = vmatprep.subr.mxu0 0.0
        %2168 = vmatpush1.msra.mxu0 0.0
        %2169 = vmatprep.subr.mxu0 0.0
        %2170 = vmatpush1.msra.mxu0 0.0
        %2171 = vmatprep.subr.mxu0 0.0
        %2172 = vmatpush1.msra.mxu0 0.0
        %2173 = vmatprep.subr.mxu0 0.0
        %2174 = vmatpush1.msra.mxu0 0.0
        %2175 = vmatprep.subr.mxu0 0.0
        %2176 = vmatpush1.msra.mxu0 0.0
        %2177 = vmatprep.subr.mxu0 0.0
        %2178 = vmatpush1.msra.mxu0 0.0
        %2179 = vmatprep.subr.mxu0 0.0
        %2180 = vmatpush1.msra.mxu0 0.0
        %2181 = vmatprep.subr.mxu0 0.0
        %2182 = vmatpush1.msra.mxu0 0.0
        %2183 = vmatprep.subr.mxu0 0.0
        %2184 = vmatpush1.msra.mxu0 0.0
        %2185 = vmatprep.subr.mxu0 0.0
        %2186 = vmatpush1.msra.mxu0 0.0
        %2187 = vmatprep.subr.mxu0 0.0
        %2188 = vmatpush1.msra.mxu0 0.0
        %2189 = vmatprep.subr.mxu0 0.0
        %2190 = vmatpush1.msra.mxu0 0.0
        %2191 = vmatprep.subr.mxu0 0.0
        %2192 = vmatpush1.msra.mxu0 0.0
        %2193 = vmatprep.subr.mxu0 0.0
        %2194 = vmatpush1.msra.mxu0 0.0
        %2195 = vmatprep.subr.mxu0 0.0
        %2196 = vmatpush1.msra.mxu0 0.0
        %2197 = vmatprep.subr.mxu0 0.0
        %2198 = vmatpush1.msra.mxu0 0.0
        %2199 = vmatprep.subr.mxu0 0.0
        %2200 = vmatpush1.msra.mxu0 0.0
        %2201 = vmatprep.subr.mxu0 0.0
        %2202 = vmatpush1.msra.mxu0 0.0
        %2203 = vmatprep.subr.mxu0 0.0
        %2204 = vmatpush1.msra.mxu0 0.0
        %2205 = vmatprep.subr.mxu0 0.0
        %2206 = vmatpush1.msra.mxu0 0.0
        %2207 = vmatprep.subr.mxu0 0.0
        %2208 = vmatpush1.msra.mxu0 0.0
        %2209 = vmatprep.subr.mxu0 0.0
        %2210 = vmatpush1.msra.mxu0 0.0
        %2211 = vmatprep.mubr.f32.mxu0 0.0
        %2212 = vmatmul.mubr.f32.gmra.mrb[0].mxu0 %v2052
        %v2213 = vpop.f32.mrb[0].mxu0
        %v2214 = vadd.f32 0.0, %v2213
        %v2215 = vpop.f32.mrb[0].mxu0
        %2216 = vmatprep.mubr.f32.mxu0 0.0
        %2217 = vmatmul.mubr.f32.gmra.mrb[0].mxu0 %v2055
        %v2218 = vpop.f32.mrb[0].mxu0
        %v2219 = vadd.f32 0.0, %v2218
        %v2220 = vpop.f32.mrb[0].mxu0
        %2221 = vmatprep.mubr.f32.mxu0 0.0
        %2222 = vmatmul.mubr.f32.gmra.mrb[0].mxu0 %v2058
        %v2223 = vpop.f32.mrb[0].mxu0
        %v2224 = vadd.f32 0.0, %v2223
        %v2225 = vpop.f32.mrb[0].mxu0
        %2226 = vmatprep.mubr.f32.mxu0 0.0
        %2227 = vmatmul.mubr.f32.gmra.mrb[0].mxu0 %v2061
        %v2228 = vpop.f32.mrb[0].mxu0
        %v2229 = vadd.f32 0.0, %v2228
        %v2230 = vpop.f32.mrb[0].mxu0
        %2231 = vmatprep.mubr.f32.mxu0 0.0
        %2232 = vmatmul.mubr.f32.gmra.mrb[0].mxu0 %v2064
        %v2233 = vpop.f32.mrb[0].mxu0
        %v2234 = vadd.f32 0.0, %v2233
        %v2235 = vpop.f32.mrb[0].mxu0
        %2236 = vmatprep.mubr.f32.mxu0 0.0
        %2237 = vmatmul.mubr.f32.gmra.mrb[0].mxu0 %v2067
        %v2238 = vpop.f32.mrb[0].mxu0
        %v2239 = vadd.f32 0.0, %v2238
        %v2240 = vpop.f32.mrb[0].mxu0
        %2241 = vmatprep.mubr.f32.mxu0 0.0
        %2242 = vmatmul.mubr.f32.gmra.mrb[0].mxu0 %v2070
        %v2243 = vpop.f32.mrb[0].mxu0
        %v2244 = vadd.f32 0.0, %v2243
        %v2245 = vpop.f32.mrb[0].mxu0
        %2246 = vmatprep.mubr.f32.mxu0 0.0
        %2247 = vmatmul.mubr.f32.gmra.mrb[0].mxu0 %v2073
        %v2248 = vpop.f32.mrb[0].mxu0
        %v2249 = vadd.f32 0.0, %v2248
        %v2250 = vpop.f32.mrb[0].mxu0
        %2251 = vmatprep.mubr.f32.mxu0 0.0
        %2252 = vmatmul.mubr.f32.gmra.mrb[0].mxu0 %v2076
        %v2253 = vpop.f32.mrb[0].mxu0
        %v2254 = vadd.f32 0.0, %v2253
        %v2255 = vpop.f32.mrb[0].mxu0
        %2256 = vmatprep.mubr.f32.mxu0 0.0
        %2257 = vmatmul.mubr.f32.gmra.mrb[0].mxu0 %v2079
        %v2258 = vpop.f32.mrb[0].mxu0
        %v2259 = vadd.f32 0.0, %v2258
        %v2260 = vpop.f32.mrb[0].mxu0
        %2261 = vmatprep.mubr.f32.mxu0 0.0
        %2262 = vmatmul.mubr.f32.gmra.mrb[0].mxu0 %v2082
        %v2263 = vpop.f32.mrb[0].mxu0
        %v2264 = vadd.f32 0.0, %v2263
        %v2265 = vpop.f32.mrb[0].mxu0
        %2266 = vmatprep.mubr.f32.mxu0 0.0
        %2267 = vmatmul.mubr.f32.gmra.mrb[0].mxu0 %v2085
        %v2268 = vpop.f32.mrb[0].mxu0
        %v2269 = vadd.f32 0.0, %v2268
        %v2270 = vpop.f32.mrb[0].mxu0
        %2271 = vmatprep.mubr.f32.mxu0 0.0
        %2272 = vmatmul.mubr.f32.gmra.mrb[0].mxu0 %v2088
        %v2273 = vpop.f32.mrb[0].mxu0
        %v2274 = vadd.f32 0.0, %v2273
        %v2275 = vpop.f32.mrb[0].mxu0
        %2276 = vmatprep.mubr.f32.mxu0 0.0
        %2277 = vmatmul.mubr.f32.gmra.mrb[0].mxu0 %v2091
        %v2278 = vpop.f32.mrb[0].mxu0
        %v2279 = vadd.f32 0.0, %v2278
        %v2280 = vpop.f32.mrb[0].mxu0
        %2281 = vmatprep.mubr.f32.mxu0 0.0
        %2282 = vmatmul.mubr.f32.gmra.mrb[0].mxu0 %v2094
        %v2283 = vpop.f32.mrb[0].mxu0
        %v2284 = vadd.f32 0.0, %v2283
        %v2285 = vpop.f32.mrb[0].mxu0
        %2286 = vmatprep.mubr.f32.mxu0 0.0
        %2287 = vmatmul.mubr.f32.gmra.mrb[0].mxu0 %v2097
        %v2288 = vpop.f32.mrb[0].mxu0
        %v2289 = vadd.f32 0.0, %v2288
        %v2290 = vpop.f32.mrb[0].mxu0
        %2291 = vmatprep.mubr.f32.mxu0 0.0
        %2292 = vmatmul.mubr.f32.gmra.mrb[0].mxu0 %v2100
        %v2293 = vpop.f32.mrb[0].mxu0
        %v2294 = vadd.f32 0.0, %v2293
        %v2295 = vpop.f32.mrb[0].mxu0
        %2296 = vmatprep.mubr.f32.mxu0 0.0
        %2297 = vmatmul.mubr.f32.gmra.mrb[0].mxu0 %v2103
        %v2298 = vpop.f32.mrb[0].mxu0
        %v2299 = vadd.f32 0.0, %v2298
        %v2300 = vpop.f32.mrb[0].mxu0
        %2301 = vmatprep.mubr.f32.mxu0 0.0
        %2302 = vmatmul.mubr.f32.gmra.mrb[0].mxu0 %v2106
        %v2303 = vpop.f32.mrb[0].mxu0
        %v2304 = vadd.f32 0.0, %v2303
        %v2305 = vpop.f32.mrb[0].mxu0
        %2306 = vmatprep.mubr.f32.mxu0 0.0
        %2307 = vmatmul.mubr.f32.gmra.mrb[0].mxu0 %v2109
        %v2308 = vpop.f32.mrb[0].mxu0
        %v2309 = vadd.f32 0.0, %v2308
        %v2310 = vpop.f32.mrb[0].mxu0
        %2311 = vmatprep.mubr.f32.mxu0 0.0
        %2312 = vmatmul.mubr.f32.gmra.mrb[0].mxu0 %v2112
        %v2313 = vpop.f32.mrb[0].mxu0
        %v2314 = vadd.f32 0.0, %v2313
        %v2315 = vpop.f32.mrb[0].mxu0
        %2316 = vmatprep.mubr.f32.mxu0 0.0
        %2317 = vmatmul.mubr.f32.gmra.mrb[0].mxu0 %v2115
        %v2318 = vpop.f32.mrb[0].mxu0
        %v2319 = vadd.f32 0.0, %v2318
        %v2320 = vpop.f32.mrb[0].mxu0
        %2321 = vmatprep.mubr.f32.mxu0 0.0
        %2322 = vmatmul.mubr.f32.gmra.mrb[0].mxu0 %v2118
        %v2323 = vpop.f32.mrb[0].mxu0
        %v2324 = vadd.f32 0.0, %v2323
        %v2325 = vpop.f32.mrb[0].mxu0
        %2326 = vmatprep.mubr.f32.mxu0 0.0
        %2327 = vmatmul.mubr.f32.gmra.mrb[0].mxu0 %v2121
        %v2328 = vpop.f32.mrb[0].mxu0
        %v2329 = vadd.f32 0.0, %v2328
        %v2330 = vpop.f32.mrb[0].mxu0
        %2331 = vmatprep.mubr.f32.mxu0 0.0
        %2332 = vmatmul.mubr.f32.gmra.mrb[0].mxu0 %v2124
        %v2333 = vpop.f32.mrb[0].mxu0
        %v2334 = vadd.f32 0.0, %v2333
        %v2335 = vpop.f32.mrb[0].mxu0
        %2336 = vmatprep.mubr.f32.mxu0 0.0
        %2337 = vmatmul.mubr.f32.gmra.mrb[0].mxu0 %v2127
        %v2338 = vpop.f32.mrb[0].mxu0
        %v2339 = vadd.f32 0.0, %v2338
        %v2340 = vpop.f32.mrb[0].mxu0
        %2341 = vmatprep.mubr.f32.mxu0 0.0
        %2342 = vmatmul.mubr.f32.gmra.mrb[0].mxu0 %v2130
        %v2343 = vpop.f32.mrb[0].mxu0
        %v2344 = vadd.f32 0.0, %v2343
        %v2345 = vpop.f32.mrb[0].mxu0
        %2346 = vmatprep.mubr.f32.mxu0 0.0
        %2347 = vmatmul.mubr.f32.gmra.mrb[0].mxu0 %v2133
        %v2348 = vpop.f32.mrb[0].mxu0
        %v2349 = vadd.f32 0.0, %v2348
        %v2350 = vpop.f32.mrb[0].mxu0
        %2351 = vmatprep.mubr.f32.mxu0 0.0
        %2352 = vmatmul.mubr.f32.gmra.mrb[0].mxu0 %v2136
        %v2353 = vpop.f32.mrb[0].mxu0
        %v2354 = vadd.f32 0.0, %v2353
        %v2355 = vpop.f32.mrb[0].mxu0
        %2356 = vmatprep.mubr.f32.mxu0 0.0
        %2357 = vmatmul.mubr.f32.gmra.mrb[0].mxu0 %v2139
        %v2358 = vpop.f32.mrb[0].mxu0
        %v2359 = vadd.f32 0.0, %v2358
        %v2360 = vpop.f32.mrb[0].mxu0
        %2361 = vmatprep.mubr.f32.mxu0 0.0
        %2362 = vmatmul.mubr.f32.gmra.mrb[0].mxu0 %v2142
        %v2363 = vpop.f32.mrb[0].mxu0
        %v2364 = vadd.f32 0.0, %v2363
        %v2365 = vpop.f32.mrb[0].mxu0
        %2366 = vmatprep.mubr.f32.mxu0 0.0
        %2367 = vmatmul.mubr.f32.gmra.mrb[0].mxu0 %v2145
        %v2368 = vpop.f32.mrb[0].mxu0
        %v2369 = vadd.f32 0.0, %v2368
        %v2370 = vpop.f32.mrb[0].mxu0
        %2371 = vdwg.mxu0
        %v2372 = vmul.f32 %v935, %v2214
        %v2373 = vmul.f32 %v939, %v2219
        %v2374 = vmul.f32 %v945, %v2224
        %v2375 = vmul.f32 %v949, %v2229
        %v2376 = vmul.f32 %v955, %v2234
        %v2377 = vmul.f32 %v959, %v2239
        %v2378 = vmul.f32 %v965, %v2244
        %v2379 = vmul.f32 %v969, %v2249
        %v2380 = vmul.f32 %v975, %v2254
        %v2381 = vmul.f32 %v979, %v2259
        %v2382 = vmul.f32 %v985, %v2264
        %v2383 = vmul.f32 %v989, %v2269
        %v2384 = vmul.f32 %v995, %v2274
        %v2385 = vmul.f32 %v999, %v2279
        %v2386 = vmul.f32 %v1005, %v2284
        %v2387 = vmul.f32 %v1009, %v2289
        %v2388 = vmul.f32 %v1015, %v2294
        %v2389 = vmul.f32 %v1019, %v2299
        %v2390 = vmul.f32 %v1025, %v2304
        %v2391 = vmul.f32 %v1029, %v2309
        %v2392 = vmul.f32 %v1035, %v2314
        %v2393 = vmul.f32 %v1039, %v2319
        %v2394 = vmul.f32 %v1045, %v2324
        %v2395 = vmul.f32 %v1049, %v2329
        %v2396 = vmul.f32 %v1055, %v2334
        %v2397 = vmul.f32 %v1059, %v2339
        %v2398 = vmul.f32 %v1065, %v2344
        %v2399 = vmul.f32 %v1069, %v2349
        %v2400 = vmul.f32 %v1075, %v2354
        %v2401 = vmul.f32 %v1079, %v2359
        %v2402 = vmul.f32 %v1085, %v2364
        %v2403 = vmul.f32 %v1089, %v2369
        %v2405 = vsel %vm2050, %v2018, 0
        %v2408 = vsel %vm2050, %v2019, 0
        %v2411 = vsel %vm2050, %v2020, 0
        %v2414 = vsel %vm2050, %v2021, 0
        %v2417 = vsel %vm2050, %v2022, 0
        %v2420 = vsel %vm2050, %v2023, 0
        %v2423 = vsel %vm2050, %v2024, 0
        %v2426 = vsel %vm2050, %v2025, 0
        %v2429 = vsel %vm2050, %v2026, 0
        %v2432 = vsel %vm2050, %v2027, 0
        %v2435 = vsel %vm2050, %v2028, 0
        %v2438 = vsel %vm2050, %v2029, 0
        %v2441 = vsel %vm2050, %v2030, 0
        %v2444 = vsel %vm2050, %v2031, 0
        %v2447 = vsel %vm2050, %v2032, 0
        %v2450 = vsel %vm2050, %v2033, 0
        %v2453 = vsel %vm2050, %v2034, 0
        %v2456 = vsel %vm2050, %v2035, 0
        %v2459 = vsel %vm2050, %v2036, 0
        %v2462 = vsel %vm2050, %v2037, 0
        %v2465 = vsel %vm2050, %v2038, 0
        %v2468 = vsel %vm2050, %v2039, 0
        %v2471 = vsel %vm2050, %v2040, 0
        %v2474 = vsel %vm2050, %v2041, 0
        %v2477 = vsel %vm2050, %v2042, 0
        %v2480 = vsel %vm2050, %v2043, 0
        %v2483 = vsel %vm2050, %v2044, 0
        %v2486 = vsel %vm2050, %v2045, 0
        %v2489 = vsel %vm2050, %v2046, 0
        %v2492 = vsel %vm2050, %v2047, 0
        %v2495 = vsel %vm2050, %v2048, 0
        %v2498 = vsel %vm2050, %v2049, 0
        %2500 = vmatprep.subr.mxu0 0.0
        %2501 = vmatpush1.msra.mxu0 %v1437
        %2502 = vmatprep.subr.mxu0 0.0
        %2503 = vmatpush1.msra.mxu0 0.0
        %2504 = vmatprep.subr.mxu0 0.0
        %2505 = vmatpush1.msra.mxu0 0.0
        %2506 = vmatprep.subr.mxu0 0.0
        %2507 = vmatpush1.msra.mxu0 0.0
        %2508 = vmatprep.subr.mxu0 0.0
        %2509 = vmatpush1.msra.mxu0 0.0
        %2510 = vmatprep.subr.mxu0 0.0
        %2511 = vmatpush1.msra.mxu0 0.0
        %2512 = vmatprep.subr.mxu0 0.0
        %2513 = vmatpush1.msra.mxu0 0.0
        %2514 = vmatprep.subr.mxu0 0.0
        %2515 = vmatpush1.msra.mxu0 0.0
        %2516 = vmatprep.subr.mxu0 0.0
        %2517 = vmatpush1.msra.mxu0 0.0
        %2518 = vmatprep.subr.mxu0 0.0
        %2519 = vmatpush1.msra.mxu0 0.0
        %2520 = vmatprep.subr.mxu0 0.0
        %2521 = vmatpush1.msra.mxu0 0.0
        %2522 = vmatprep.subr.mxu0 0.0
        %2523 = vmatpush1.msra.mxu0 0.0
        %2524 = vmatprep.subr.mxu0 0.0
        %2525 = vmatpush1.msra.mxu0 0.0
        %2526 = vmatprep.subr.mxu0 0.0
        %2527 = vmatpush1.msra.mxu0 0.0
        %2528 = vmatprep.subr.mxu0 0.0
        %2529 = vmatpush1.msra.mxu0 0.0
        %2530 = vmatprep.subr.mxu0 0.0
        %2531 = vmatpush1.msra.mxu0 0.0
        %2532 = vmatprep.subr.mxu0 0.0
        %2533 = vmatpush1.msra.mxu0 0.0
        %2534 = vmatprep.subr.mxu0 0.0
        %2535 = vmatpush1.msra.mxu0 0.0
        %2536 = vmatprep.subr.mxu0 0.0
        %2537 = vmatpush1.msra.mxu0 0.0
        %2538 = vmatprep.subr.mxu0 0.0
        %2539 = vmatpush1.msra.mxu0 0.0
        %2540 = vmatprep.subr.mxu0 0.0
        %2541 = vmatpush1.msra.mxu0 0.0
        %2542 = vmatprep.subr.mxu0 0.0
        %2543 = vmatpush1.msra.mxu0 0.0
        %2544 = vmatprep.subr.mxu0 0.0
        %2545 = vmatpush1.msra.mxu0 0.0
        %2546 = vmatprep.subr.mxu0 0.0
        %2547 = vmatpush1.msra.mxu0 0.0
        %2548 = vmatprep.subr.mxu0 0.0
        %2549 = vmatpush1.msra.mxu0 0.0
        %2550 = vmatprep.subr.mxu0 0.0
        %2551 = vmatpush1.msra.mxu0 0.0
        %2552 = vmatprep.subr.mxu0 0.0
        %2553 = vmatpush1.msra.mxu0 0.0
        %2554 = vmatprep.subr.mxu0 0.0
        %2555 = vmatpush1.msra.mxu0 0.0
        %2556 = vmatprep.subr.mxu0 0.0
        %2557 = vmatpush1.msra.mxu0 0.0
        %2558 = vmatprep.subr.mxu0 0.0
        %2559 = vmatpush1.msra.mxu0 0.0
        %2560 = vmatprep.subr.mxu0 0.0
        %2561 = vmatpush1.msra.mxu0 0.0
        %2562 = vmatprep.subr.mxu0 0.0
        %2563 = vmatpush1.msra.mxu0 0.0
        %2564 = vmatprep.mubr.f32.mxu0 0.0
        %2565 = vmatmul.mubr.f32.gmra.mrb[0].mxu0 %v2405
        %v2566 = vpop.f32.mrb[0].mxu0
        %v2567 = vadd.f32 0.0, %v2566
        %v2568 = vpop.f32.mrb[0].mxu0
        %2569 = vmatprep.mubr.f32.mxu0 0.0
        %2570 = vmatmul.mubr.f32.gmra.mrb[0].mxu0 %v2408
        %v2571 = vpop.f32.mrb[0].mxu0
        %v2572 = vadd.f32 0.0, %v2571
        %v2573 = vpop.f32.mrb[0].mxu0
        %2574 = vmatprep.mubr.f32.mxu0 0.0
        %2575 = vmatmul.mubr.f32.gmra.mrb[0].mxu0 %v2411
        %v2576 = vpop.f32.mrb[0].mxu0
        %v2577 = vadd.f32 0.0, %v2576
        %v2578 = vpop.f32.mrb[0].mxu0
        %2579 = vmatprep.mubr.f32.mxu0 0.0
        %2580 = vmatmul.mubr.f32.gmra.mrb[0].mxu0 %v2414
        %v2581 = vpop.f32.mrb[0].mxu0
        %v2582 = vadd.f32 0.0, %v2581
        %v2583 = vpop.f32.mrb[0].mxu0
        %2584 = vmatprep.mubr.f32.mxu0 0.0
        %2585 = vmatmul.mubr.f32.gmra.mrb[0].mxu0 %v2417
        %v2586 = vpop.f32.mrb[0].mxu0
        %v2587 = vadd.f32 0.0, %v2586
        %v2588 = vpop.f32.mrb[0].mxu0
        %2589 = vmatprep.mubr.f32.mxu0 0.0
        %2590 = vmatmul.mubr.f32.gmra.mrb[0].mxu0 %v2420
        %v2591 = vpop.f32.mrb[0].mxu0
        %v2592 = vadd.f32 0.0, %v2591
        %v2593 = vpop.f32.mrb[0].mxu0
        %2594 = vmatprep.mubr.f32.mxu0 0.0
        %2595 = vmatmul.mubr.f32.gmra.mrb[0].mxu0 %v2423
        %v2596 = vpop.f32.mrb[0].mxu0
        %v2597 = vadd.f32 0.0, %v2596
        %v2598 = vpop.f32.mrb[0].mxu0
        %2599 = vmatprep.mubr.f32.mxu0 0.0
        %2600 = vmatmul.mubr.f32.gmra.mrb[0].mxu0 %v2426
        %v2601 = vpop.f32.mrb[0].mxu0
        %v2602 = vadd.f32 0.0, %v2601
        %v2603 = vpop.f32.mrb[0].mxu0
        %2604 = vmatprep.mubr.f32.mxu0 0.0
        %2605 = vmatmul.mubr.f32.gmra.mrb[0].mxu0 %v2429
        %v2606 = vpop.f32.mrb[0].mxu0
        %v2607 = vadd.f32 0.0, %v2606
        %v2608 = vpop.f32.mrb[0].mxu0
        %2609 = vmatprep.mubr.f32.mxu0 0.0
        %2610 = vmatmul.mubr.f32.gmra.mrb[0].mxu0 %v2432
        %v2611 = vpop.f32.mrb[0].mxu0
        %v2612 = vadd.f32 0.0, %v2611
        %v2613 = vpop.f32.mrb[0].mxu0
        %2614 = vmatprep.mubr.f32.mxu0 0.0
        %2615 = vmatmul.mubr.f32.gmra.mrb[0].mxu0 %v2435
        %v2616 = vpop.f32.mrb[0].mxu0
        %v2617 = vadd.f32 0.0, %v2616
        %v2618 = vpop.f32.mrb[0].mxu0
        %2619 = vmatprep.mubr.f32.mxu0 0.0
        %2620 = vmatmul.mubr.f32.gmra.mrb[0].mxu0 %v2438
        %v2621 = vpop.f32.mrb[0].mxu0
        %v2622 = vadd.f32 0.0, %v2621
        %v2623 = vpop.f32.mrb[0].mxu0
        %2624 = vmatprep.mubr.f32.mxu0 0.0
        %2625 = vmatmul.mubr.f32.gmra.mrb[0].mxu0 %v2441
        %v2626 = vpop.f32.mrb[0].mxu0
        %v2627 = vadd.f32 0.0, %v2626
        %v2628 = vpop.f32.mrb[0].mxu0
        %2629 = vmatprep.mubr.f32.mxu0 0.0
        %2630 = vmatmul.mubr.f32.gmra.mrb[0].mxu0 %v2444
        %v2631 = vpop.f32.mrb[0].mxu0
        %v2632 = vadd.f32 0.0, %v2631
        %v2633 = vpop.f32.mrb[0].mxu0
        %2634 = vmatprep.mubr.f32.mxu0 0.0
        %2635 = vmatmul.mubr.f32.gmra.mrb[0].mxu0 %v2447
        %v2636 = vpop.f32.mrb[0].mxu0
        %v2637 = vadd.f32 0.0, %v2636
        %v2638 = vpop.f32.mrb[0].mxu0
        %2639 = vmatprep.mubr.f32.mxu0 0.0
        %2640 = vmatmul.mubr.f32.gmra.mrb[0].mxu0 %v2450
        %v2641 = vpop.f32.mrb[0].mxu0
        %v2642 = vadd.f32 0.0, %v2641
        %v2643 = vpop.f32.mrb[0].mxu0
        %2644 = vmatprep.mubr.f32.mxu0 0.0
        %2645 = vmatmul.mubr.f32.gmra.mrb[0].mxu0 %v2453
        %v2646 = vpop.f32.mrb[0].mxu0
        %v2647 = vadd.f32 0.0, %v2646
        %v2648 = vpop.f32.mrb[0].mxu0
        %2649 = vmatprep.mubr.f32.mxu0 0.0
        %2650 = vmatmul.mubr.f32.gmra.mrb[0].mxu0 %v2456
        %v2651 = vpop.f32.mrb[0].mxu0
        %v2652 = vadd.f32 0.0, %v2651
        %v2653 = vpop.f32.mrb[0].mxu0
        %2654 = vmatprep.mubr.f32.mxu0 0.0
        %2655 = vmatmul.mubr.f32.gmra.mrb[0].mxu0 %v2459
        %v2656 = vpop.f32.mrb[0].mxu0
        %v2657 = vadd.f32 0.0, %v2656
        %v2658 = vpop.f32.mrb[0].mxu0
        %2659 = vmatprep.mubr.f32.mxu0 0.0
        %2660 = vmatmul.mubr.f32.gmra.mrb[0].mxu0 %v2462
        %v2661 = vpop.f32.mrb[0].mxu0
        %v2662 = vadd.f32 0.0, %v2661
        %v2663 = vpop.f32.mrb[0].mxu0
        %2664 = vmatprep.mubr.f32.mxu0 0.0
        %2665 = vmatmul.mubr.f32.gmra.mrb[0].mxu0 %v2465
        %v2666 = vpop.f32.mrb[0].mxu0
        %v2667 = vadd.f32 0.0, %v2666
        %v2668 = vpop.f32.mrb[0].mxu0
        %2669 = vmatprep.mubr.f32.mxu0 0.0
        %2670 = vmatmul.mubr.f32.gmra.mrb[0].mxu0 %v2468
        %v2671 = vpop.f32.mrb[0].mxu0
        %v2672 = vadd.f32 0.0, %v2671
        %v2673 = vpop.f32.mrb[0].mxu0
        %2674 = vmatprep.mubr.f32.mxu0 0.0
        %2675 = vmatmul.mubr.f32.gmra.mrb[0].mxu0 %v2471
        %v2676 = vpop.f32.mrb[0].mxu0
        %v2677 = vadd.f32 0.0, %v2676
        %v2678 = vpop.f32.mrb[0].mxu0
        %2679 = vmatprep.mubr.f32.mxu0 0.0
        %2680 = vmatmul.mubr.f32.gmra.mrb[0].mxu0 %v2474
        %v2681 = vpop.f32.mrb[0].mxu0
        %v2682 = vadd.f32 0.0, %v2681
        %v2683 = vpop.f32.mrb[0].mxu0
        %2684 = vmatprep.mubr.f32.mxu0 0.0
        %2685 = vmatmul.mubr.f32.gmra.mrb[0].mxu0 %v2477
        %v2686 = vpop.f32.mrb[0].mxu0
        %v2687 = vadd.f32 0.0, %v2686
        %v2688 = vpop.f32.mrb[0].mxu0
        %2689 = vmatprep.mubr.f32.mxu0 0.0
        %2690 = vmatmul.mubr.f32.gmra.mrb[0].mxu0 %v2480
        %v2691 = vpop.f32.mrb[0].mxu0
        %v2692 = vadd.f32 0.0, %v2691
        %v2693 = vpop.f32.mrb[0].mxu0
        %2694 = vmatprep.mubr.f32.mxu0 0.0
        %2695 = vmatmul.mubr.f32.gmra.mrb[0].mxu0 %v2483
        %v2696 = vpop.f32.mrb[0].mxu0
        %v2697 = vadd.f32 0.0, %v2696
        %v2698 = vpop.f32.mrb[0].mxu0
        %2699 = vmatprep.mubr.f32.mxu0 0.0
        %2700 = vmatmul.mubr.f32.gmra.mrb[0].mxu0 %v2486
        %v2701 = vpop.f32.mrb[0].mxu0
        %v2702 = vadd.f32 0.0, %v2701
        %v2703 = vpop.f32.mrb[0].mxu0
        %2704 = vmatprep.mubr.f32.mxu0 0.0
        %2705 = vmatmul.mubr.f32.gmra.mrb[0].mxu0 %v2489
        %v2706 = vpop.f32.mrb[0].mxu0
        %v2707 = vadd.f32 0.0, %v2706
        %v2708 = vpop.f32.mrb[0].mxu0
        %2709 = vmatprep.mubr.f32.mxu0 0.0
        %2710 = vmatmul.mubr.f32.gmra.mrb[0].mxu0 %v2492
        %v2711 = vpop.f32.mrb[0].mxu0
        %v2712 = vadd.f32 0.0, %v2711
        %v2713 = vpop.f32.mrb[0].mxu0
        %2714 = vmatprep.mubr.f32.mxu0 0.0
        %2715 = vmatmul.mubr.f32.gmra.mrb[0].mxu0 %v2495
        %v2716 = vpop.f32.mrb[0].mxu0
        %v2717 = vadd.f32 0.0, %v2716
        %v2718 = vpop.f32.mrb[0].mxu0
        %2719 = vmatprep.mubr.f32.mxu0 0.0
        %2720 = vmatmul.mubr.f32.gmra.mrb[0].mxu0 %v2498
        %v2721 = vpop.f32.mrb[0].mxu0
        %v2722 = vadd.f32 0.0, %v2721
        %v2723 = vpop.f32.mrb[0].mxu0
        %2724 = vdwg.mxu0
        %v2725 = vmul.f32 %v937, %v2567
        %v2726 = vmul.f32 %v941, %v2572
        %v2727 = vmul.f32 %v947, %v2577
        %v2728 = vmul.f32 %v951, %v2582
        %v2729 = vmul.f32 %v957, %v2587
        %v2730 = vmul.f32 %v961, %v2592
        %v2731 = vmul.f32 %v967, %v2597
        %v2732 = vmul.f32 %v971, %v2602
        %v2733 = vmul.f32 %v977, %v2607
        %v2734 = vmul.f32 %v981, %v2612
        %v2735 = vmul.f32 %v987, %v2617
        %v2736 = vmul.f32 %v991, %v2622
        %v2737 = vmul.f32 %v997, %v2627
        %v2738 = vmul.f32 %v1001, %v2632
        %v2739 = vmul.f32 %v1007, %v2637
        %v2740 = vmul.f32 %v1011, %v2642
        %v2741 = vmul.f32 %v1017, %v2647
        %v2742 = vmul.f32 %v1021, %v2652
        %v2743 = vmul.f32 %v1027, %v2657
        %v2744 = vmul.f32 %v1031, %v2662
        %v2745 = vmul.f32 %v1037, %v2667
        %v2746 = vmul.f32 %v1041, %v2672
        %v2747 = vmul.f32 %v1047, %v2677
        %v2748 = vmul.f32 %v1051, %v2682
        %v2749 = vmul.f32 %v1057, %v2687
        %v2750 = vmul.f32 %v1061, %v2692
        %v2751 = vmul.f32 %v1067, %v2697
        %v2752 = vmul.f32 %v1071, %v2702
        %v2753 = vmul.f32 %v1077, %v2707
        %v2754 = vmul.f32 %v1081, %v2712
        %v2755 = vmul.f32 %v1087, %v2717
        %v2756 = vmul.f32 %v1091, %v2722
        %v2757 = vld [vmem:[#allocation12] sm:$0xf]
        %v2758 = vld [vmem:[#allocation12 + $0x4] sm:$0xf]
        %v2759 = vld [vmem:[#allocation12 + $0x8] sm:$0xf]
        %v2760 = vld [vmem:[#allocation12 + $0xc] sm:$0xf]
        %v2761 = vld [vmem:[#allocation12 + $0x10] sm:$0xf]
        %v2762 = vld [vmem:[#allocation12 + $0x14] sm:$0xf]
        %v2763 = vld [vmem:[#allocation12 + $0x18] sm:$0xf]
        %v2764 = vld [vmem:[#allocation12 + $0x1c] sm:$0xf]
        %v2765 = vld [vmem:[#allocation12 + $0x20] sm:$0xf]
        %v2766 = vld [vmem:[#allocation12 + $0x24] sm:$0xf]
        %v2767 = vld [vmem:[#allocation12 + $0x28] sm:$0xf]
        %v2768 = vld [vmem:[#allocation12 + $0x2c] sm:$0xf]
        %v2769 = vld [vmem:[#allocation12 + $0x30] sm:$0xf]
        %v2770 = vld [vmem:[#allocation12 + $0x34] sm:$0xf]
        %v2771 = vld [vmem:[#allocation12 + $0x38] sm:$0xf]
        %v2772 = vld [vmem:[#allocation12 + $0x3c] sm:$0xf]
        %v2773 = vld [vmem:[#allocation12 + $0x40] sm:$0xf]
        %v2774 = vld [vmem:[#allocation12 + $0x44] sm:$0xf]
        %v2775 = vld [vmem:[#allocation12 + $0x48] sm:$0xf]
        %v2776 = vld [vmem:[#allocation12 + $0x4c] sm:$0xf]
        %v2777 = vld [vmem:[#allocation12 + $0x50] sm:$0xf]
        %v2778 = vld [vmem:[#allocation12 + $0x54] sm:$0xf]
        %v2779 = vld [vmem:[#allocation12 + $0x58] sm:$0xf]
        %v2780 = vld [vmem:[#allocation12 + $0x5c] sm:$0xf]
        %v2781 = vld [vmem:[#allocation12 + $0x60] sm:$0xf]
        %v2782 = vld [vmem:[#allocation12 + $0x64] sm:$0xf]
        %v2783 = vld [vmem:[#allocation12 + $0x68] sm:$0xf]
        %v2784 = vld [vmem:[#allocation12 + $0x6c] sm:$0xf]
        %v2785 = vld [vmem:[#allocation12 + $0x70] sm:$0xf]
        %v2786 = vld [vmem:[#allocation12 + $0x74] sm:$0xf]
        %v2787 = vld [vmem:[#allocation12 + $0x78] sm:$0xf]
        %v2788 = vld [vmem:[#allocation12 + $0x7c] sm:$0xf]
        %v2789 = vpack.c.bf16 %v2726, %v2725
        %v2790 = vpack.c.bf16 %v2728, %v2727
        %v2791 = vpack.c.bf16 %v2730, %v2729
        %v2792 = vpack.c.bf16 %v2732, %v2731
        %v2793 = vpack.c.bf16 %v2734, %v2733
        %v2794 = vpack.c.bf16 %v2736, %v2735
        %v2795 = vpack.c.bf16 %v2738, %v2737
        %v2796 = vpack.c.bf16 %v2740, %v2739
        %v2797 = vpack.c.bf16 %v2742, %v2741
        %v2798 = vpack.c.bf16 %v2744, %v2743
        %v2799 = vpack.c.bf16 %v2746, %v2745
        %v2800 = vpack.c.bf16 %v2748, %v2747
        %v2801 = vpack.c.bf16 %v2750, %v2749
        %v2802 = vpack.c.bf16 %v2752, %v2751
        %v2803 = vpack.c.bf16 %v2754, %v2753
        %v2804 = vpack.c.bf16 %v2756, %v2755
        %v2805 = vpack.c.bf16 %v1298, %v1295
        %v2806 = vpack.c.bf16 %v1306, %v1303
        %v2807 = vpack.c.bf16 %v1314, %v1311
        %v2808 = vpack.c.bf16 %v1322, %v1319
        %v2809 = vpack.c.bf16 %v1330, %v1327
        %v2810 = vpack.c.bf16 %v1338, %v1335
        %v2811 = vpack.c.bf16 %v1346, %v1343
        %v2812 = vpack.c.bf16 %v1354, %v1351
        %v2813 = vpack.c.bf16 %v1362, %v1359
        %v2814 = vpack.c.bf16 %v1370, %v1367
        %v2815 = vpack.c.bf16 %v1378, %v1375
        %v2816 = vpack.c.bf16 %v1386, %v1383
        %v2817 = vpack.c.bf16 %v1394, %v1391
        %v2818 = vpack.c.bf16 %v1402, %v1399
        %v2819 = vpack.c.bf16 %v1410, %v1407
        %v2820 = vpack.c.bf16 %v1418, %v1415
        %v2853 = vunpack.c.l.b16 %v2757
        %v2854 = vunpack.c.l.b16 %v2758
        %v2855 = vunpack.c.l.b16 %v2759
        %v2856 = vunpack.c.l.b16 %v2760
        %v2857 = vunpack.c.l.b16 %v2761
        %v2858 = vunpack.c.l.b16 %v2762
        %v2859 = vunpack.c.l.b16 %v2763
        %v2860 = vunpack.c.l.b16 %v2764
        %v2861 = vunpack.c.l.b16 %v2765
        %v2862 = vunpack.c.l.b16 %v2766
        %v2863 = vunpack.c.l.b16 %v2767
        %v2864 = vunpack.c.l.b16 %v2768
        %v2865 = vunpack.c.l.b16 %v2769
        %v2866 = vunpack.c.l.b16 %v2770
        %v2867 = vunpack.c.l.b16 %v2771
        %v2868 = vunpack.c.l.b16 %v2772
        %v2869 = vunpack.c.l.b16 %v2773
        %v2870 = vunpack.c.l.b16 %v2774
        %v2871 = vunpack.c.l.b16 %v2775
        %v2872 = vunpack.c.l.b16 %v2776
        %v2873 = vunpack.c.l.b16 %v2777
        %v2874 = vunpack.c.l.b16 %v2778
        %v2875 = vunpack.c.l.b16 %v2779
        %v2876 = vunpack.c.l.b16 %v2780
        %v2877 = vunpack.c.l.b16 %v2781
        %v2878 = vunpack.c.l.b16 %v2782
        %v2879 = vunpack.c.l.b16 %v2783
        %v2880 = vunpack.c.l.b16 %v2784
        %v2881 = vunpack.c.l.b16 %v2785
        %v2882 = vunpack.c.l.b16 %v2786
        %v2883 = vunpack.c.l.b16 %v2787
        %v2884 = vunpack.c.l.b16 %v2788
        %v2885 = vpack.c.b16 %v2854, %v2853
        %v2886 = vpack.c.b16 %v2856, %v2855
        %v2887 = vpack.c.b16 %v2858, %v2857
        %v2888 = vpack.c.b16 %v2860, %v2859
        %v2889 = vpack.c.b16 %v2862, %v2861
        %v2890 = vpack.c.b16 %v2864, %v2863
        %v2891 = vpack.c.b16 %v2866, %v2865
        %v2892 = vpack.c.b16 %v2868, %v2867
        %v2893 = vpack.c.b16 %v2870, %v2869
        %v2894 = vpack.c.b16 %v2872, %v2871
        %v2895 = vpack.c.b16 %v2874, %v2873
        %v2896 = vpack.c.b16 %v2876, %v2875
        %v2897 = vpack.c.b16 %v2878, %v2877
        %v2898 = vpack.c.b16 %v2880, %v2879
        %v2899 = vpack.c.b16 %v2882, %v2881
        %v2900 = vpack.c.b16 %v2884, %v2883
        %v2917 = vmul.bf16 %v2789, %v2885
        %v2918 = vmul.bf16 %v2790, %v2886
        %v2919 = vmul.bf16 %v2789, %v2887
        %v2920 = vmul.bf16 %v2790, %v2888
        %v2921 = vmul.bf16 %v2789, %v2889
        %v2922 = vmul.bf16 %v2790, %v2890
        %v2923 = vmul.bf16 %v2789, %v2891
        %v2924 = vmul.bf16 %v2790, %v2892
        %v2925 = vmul.bf16 %v2789, %v2893
        %v2926 = vmul.bf16 %v2790, %v2894
        %v2927 = vmul.bf16 %v2789, %v2895
        %v2928 = vmul.bf16 %v2790, %v2896
        %v2929 = vmul.bf16 %v2789, %v2897
        %v2930 = vmul.bf16 %v2790, %v2898
        %v2931 = vmul.bf16 %v2789, %v2899
        %v2932 = vmul.bf16 %v2790, %v2900
        %v2933 = vmul.bf16 %v2791, %v2885
        %v2934 = vmul.bf16 %v2792, %v2886
        %v2935 = vmul.bf16 %v2791, %v2887
        %v2936 = vmul.bf16 %v2792, %v2888
        %v2937 = vmul.bf16 %v2791, %v2889
        %v2938 = vmul.bf16 %v2792, %v2890
        %v2939 = vmul.bf16 %v2791, %v2891
        %v2940 = vmul.bf16 %v2792, %v2892
        %v2941 = vmul.bf16 %v2791, %v2893
        %v2942 = vmul.bf16 %v2792, %v2894
        %v2943 = vmul.bf16 %v2791, %v2895
        %v2944 = vmul.bf16 %v2792, %v2896
        %v2945 = vmul.bf16 %v2791, %v2897
        %v2946 = vmul.bf16 %v2792, %v2898
        %v2947 = vmul.bf16 %v2791, %v2899
        %v2948 = vmul.bf16 %v2792, %v2900
        %v2949 = vmul.bf16 %v2793, %v2885
        %v2950 = vmul.bf16 %v2794, %v2886
        %v2951 = vmul.bf16 %v2793, %v2887
        %v2952 = vmul.bf16 %v2794, %v2888
        %v2953 = vmul.bf16 %v2793, %v2889
        %v2954 = vmul.bf16 %v2794, %v2890
        %v2955 = vmul.bf16 %v2793, %v2891
        %v2956 = vmul.bf16 %v2794, %v2892
        %v2957 = vmul.bf16 %v2793, %v2893
        %v2958 = vmul.bf16 %v2794, %v2894
        %v2959 = vmul.bf16 %v2793, %v2895
        %v2960 = vmul.bf16 %v2794, %v2896
        %v2961 = vmul.bf16 %v2793, %v2897
        %v2962 = vmul.bf16 %v2794, %v2898
        %v2963 = vmul.bf16 %v2793, %v2899
        %v2964 = vmul.bf16 %v2794, %v2900
        %v2965 = vmul.bf16 %v2795, %v2885
        %v2966 = vmul.bf16 %v2796, %v2886
        %v2967 = vmul.bf16 %v2795, %v2887
        %v2968 = vmul.bf16 %v2796, %v2888
        %v2969 = vmul.bf16 %v2795, %v2889
        %v2970 = vmul.bf16 %v2796, %v2890
        %v2971 = vmul.bf16 %v2795, %v2891
        %v2972 = vmul.bf16 %v2796, %v2892
        %v2973 = vmul.bf16 %v2795, %v2893
        %v2974 = vmul.bf16 %v2796, %v2894
        %v2975 = vmul.bf16 %v2795, %v2895
        %v2976 = vmul.bf16 %v2796, %v2896
        %v2977 = vmul.bf16 %v2795, %v2897
        %v2978 = vmul.bf16 %v2796, %v2898
        %v2979 = vmul.bf16 %v2795, %v2899
        %v2980 = vmul.bf16 %v2796, %v2900
        %v2981 = vmul.bf16 %v2797, %v2885
        %v2982 = vmul.bf16 %v2798, %v2886
        %v2983 = vmul.bf16 %v2797, %v2887
        %v2984 = vmul.bf16 %v2798, %v2888
        %v2985 = vmul.bf16 %v2797, %v2889
        %v2986 = vmul.bf16 %v2798, %v2890
        %v2987 = vmul.bf16 %v2797, %v2891
        %v2988 = vmul.bf16 %v2798, %v2892
        %v2989 = vmul.bf16 %v2797, %v2893
        %v2990 = vmul.bf16 %v2798, %v2894
        %v2991 = vmul.bf16 %v2797, %v2895
        %v2992 = vmul.bf16 %v2798, %v2896
        %v2993 = vmul.bf16 %v2797, %v2897
        %v2994 = vmul.bf16 %v2798, %v2898
        %v2995 = vmul.bf16 %v2797, %v2899
        %v2996 = vmul.bf16 %v2798, %v2900
        %v2997 = vmul.bf16 %v2799, %v2885
        %v2998 = vmul.bf16 %v2800, %v2886
        %v2999 = vmul.bf16 %v2799, %v2887
        %v3000 = vmul.bf16 %v2800, %v2888
        %v3001 = vmul.bf16 %v2799, %v2889
        %v3002 = vmul.bf16 %v2800, %v2890
        %v3003 = vmul.bf16 %v2799, %v2891
        %v3004 = vmul.bf16 %v2800, %v2892
        %v3005 = vmul.bf16 %v2799, %v2893
        %v3006 = vmul.bf16 %v2800, %v2894
        %v3007 = vmul.bf16 %v2799, %v2895
        %v3008 = vmul.bf16 %v2800, %v2896
        %v3009 = vmul.bf16 %v2799, %v2897
        %v3010 = vmul.bf16 %v2800, %v2898
        %v3011 = vmul.bf16 %v2799, %v2899
        %v3012 = vmul.bf16 %v2800, %v2900
        %v3013 = vmul.bf16 %v2801, %v2885
        %v3014 = vmul.bf16 %v2802, %v2886
        %v3015 = vmul.bf16 %v2801, %v2887
        %v3016 = vmul.bf16 %v2802, %v2888
        %v3017 = vmul.bf16 %v2801, %v2889
        %v3018 = vmul.bf16 %v2802, %v2890
        %v3019 = vmul.bf16 %v2801, %v2891
        %v3020 = vmul.bf16 %v2802, %v2892
        %v3021 = vmul.bf16 %v2801, %v2893
        %v3022 = vmul.bf16 %v2802, %v2894
        %v3023 = vmul.bf16 %v2801, %v2895
        %v3024 = vmul.bf16 %v2802, %v2896
        %v3025 = vmul.bf16 %v2801, %v2897
        %v3026 = vmul.bf16 %v2802, %v2898
        %v3027 = vmul.bf16 %v2801, %v2899
        %v3028 = vmul.bf16 %v2802, %v2900
        %v3029 = vmul.bf16 %v2803, %v2885
        %v3030 = vmul.bf16 %v2804, %v2886
        %v3031 = vmul.bf16 %v2803, %v2887
        %v3032 = vmul.bf16 %v2804, %v2888
        %v3033 = vmul.bf16 %v2803, %v2889
        %v3034 = vmul.bf16 %v2804, %v2890
        %v3035 = vmul.bf16 %v2803, %v2891
        %v3036 = vmul.bf16 %v2804, %v2892
        %v3037 = vmul.bf16 %v2803, %v2893
        %v3038 = vmul.bf16 %v2804, %v2894
        %v3039 = vmul.bf16 %v2803, %v2895
        %v3040 = vmul.bf16 %v2804, %v2896
        %v3041 = vmul.bf16 %v2803, %v2897
        %v3042 = vmul.bf16 %v2804, %v2898
        %v3043 = vmul.bf16 %v2803, %v2899
        %v3044 = vmul.bf16 %v2804, %v2900
        %v3045 = vmul.bf16 %v2805, %v2885
        %v3046 = vmul.bf16 %v2806, %v2886
        %v3047 = vmul.bf16 %v2805, %v2887
        %v3048 = vmul.bf16 %v2806, %v2888
        %v3049 = vmul.bf16 %v2805, %v2889
        %v3050 = vmul.bf16 %v2806, %v2890
        %v3051 = vmul.bf16 %v2805, %v2891
        %v3052 = vmul.bf16 %v2806, %v2892
        %v3053 = vmul.bf16 %v2805, %v2893
        %v3054 = vmul.bf16 %v2806, %v2894
        %v3055 = vmul.bf16 %v2805, %v2895
        %v3056 = vmul.bf16 %v2806, %v2896
        %v3057 = vmul.bf16 %v2805, %v2897
        %v3058 = vmul.bf16 %v2806, %v2898
        %v3059 = vmul.bf16 %v2805, %v2899
        %v3060 = vmul.bf16 %v2806, %v2900
        %v3061 = vmul.bf16 %v2807, %v2885
        %v3062 = vmul.bf16 %v2808, %v2886
        %v3063 = vmul.bf16 %v2807, %v2887
        %v3064 = vmul.bf16 %v2808, %v2888
        %v3065 = vmul.bf16 %v2807, %v2889
        %v3066 = vmul.bf16 %v2808, %v2890
        %v3067 = vmul.bf16 %v2807, %v2891
        %v3068 = vmul.bf16 %v2808, %v2892
        %v3069 = vmul.bf16 %v2807, %v2893
        %v3070 = vmul.bf16 %v2808, %v2894
        %v3071 = vmul.bf16 %v2807, %v2895
        %v3072 = vmul.bf16 %v2808, %v2896
        %v3073 = vmul.bf16 %v2807, %v2897
        %v3074 = vmul.bf16 %v2808, %v2898
        %v3075 = vmul.bf16 %v2807, %v2899
        %v3076 = vmul.bf16 %v2808, %v2900
        %v3077 = vmul.bf16 %v2809, %v2885
        %v3078 = vmul.bf16 %v2810, %v2886
        %v3079 = vmul.bf16 %v2809, %v2887
        %v3080 = vmul.bf16 %v2810, %v2888
        %v3081 = vmul.bf16 %v2809, %v2889
        %v3082 = vmul.bf16 %v2810, %v2890
        %v3083 = vmul.bf16 %v2809, %v2891
        %v3084 = vmul.bf16 %v2810, %v2892
        %v3085 = vmul.bf16 %v2809, %v2893
        %v3086 = vmul.bf16 %v2810, %v2894
        %v3087 = vmul.bf16 %v2809, %v2895
        %v3088 = vmul.bf16 %v2810, %v2896
        %v3089 = vmul.bf16 %v2809, %v2897
        %v3090 = vmul.bf16 %v2810, %v2898
        %v3091 = vmul.bf16 %v2809, %v2899
        %v3092 = vmul.bf16 %v2810, %v2900
        %v3093 = vmul.bf16 %v2811, %v2885
        %v3094 = vmul.bf16 %v2812, %v2886
        %v3095 = vmul.bf16 %v2811, %v2887
        %v3096 = vmul.bf16 %v2812, %v2888
        %v3097 = vmul.bf16 %v2811, %v2889
        %v3098 = vmul.bf16 %v2812, %v2890
        %v3099 = vmul.bf16 %v2811, %v2891
        %v3100 = vmul.bf16 %v2812, %v2892
        %v3101 = vmul.bf16 %v2811, %v2893
        %v3102 = vmul.bf16 %v2812, %v2894
        %v3103 = vmul.bf16 %v2811, %v2895
        %v3104 = vmul.bf16 %v2812, %v2896
        %v3105 = vmul.bf16 %v2811, %v2897
        %v3106 = vmul.bf16 %v2812, %v2898
        %v3107 = vmul.bf16 %v2811, %v2899
        %v3108 = vmul.bf16 %v2812, %v2900
        %v3109 = vmul.bf16 %v2813, %v2885
        %v3110 = vmul.bf16 %v2814, %v2886
        %v3111 = vmul.bf16 %v2813, %v2887
        %v3112 = vmul.bf16 %v2814, %v2888
        %v3113 = vmul.bf16 %v2813, %v2889
        %v3114 = vmul.bf16 %v2814, %v2890
        %v3115 = vmul.bf16 %v2813, %v2891
        %v3116 = vmul.bf16 %v2814, %v2892
        %v3117 = vmul.bf16 %v2813, %v2893
        %v3118 = vmul.bf16 %v2814, %v2894
        %v3119 = vmul.bf16 %v2813, %v2895
        %v3120 = vmul.bf16 %v2814, %v2896
        %v3121 = vmul.bf16 %v2813, %v2897
        %v3122 = vmul.bf16 %v2814, %v2898
        %v3123 = vmul.bf16 %v2813, %v2899
        %v3124 = vmul.bf16 %v2814, %v2900
        %v3125 = vmul.bf16 %v2815, %v2885
        %v3126 = vmul.bf16 %v2816, %v2886
        %v3127 = vmul.bf16 %v2815, %v2887
        %v3128 = vmul.bf16 %v2816, %v2888
        %v3129 = vmul.bf16 %v2815, %v2889
        %v3130 = vmul.bf16 %v2816, %v2890
        %v3131 = vmul.bf16 %v2815, %v2891
        %v3132 = vmul.bf16 %v2816, %v2892
        %v3133 = vmul.bf16 %v2815, %v2893
        %v3134 = vmul.bf16 %v2816, %v2894
        %v3135 = vmul.bf16 %v2815, %v2895
        %v3136 = vmul.bf16 %v2816, %v2896
        %v3137 = vmul.bf16 %v2815, %v2897
        %v3138 = vmul.bf16 %v2816, %v2898
        %v3139 = vmul.bf16 %v2815, %v2899
        %v3140 = vmul.bf16 %v2816, %v2900
        %v3141 = vmul.bf16 %v2817, %v2885
        %v3142 = vmul.bf16 %v2818, %v2886
        %v3143 = vmul.bf16 %v2817, %v2887
        %v3144 = vmul.bf16 %v2818, %v2888
        %v3145 = vmul.bf16 %v2817, %v2889
        %v3146 = vmul.bf16 %v2818, %v2890
        %v3147 = vmul.bf16 %v2817, %v2891
        %v3148 = vmul.bf16 %v2818, %v2892
        %v3149 = vmul.bf16 %v2817, %v2893
        %v3150 = vmul.bf16 %v2818, %v2894
        %v3151 = vmul.bf16 %v2817, %v2895
        %v3152 = vmul.bf16 %v2818, %v2896
        %v3153 = vmul.bf16 %v2817, %v2897
        %v3154 = vmul.bf16 %v2818, %v2898
        %v3155 = vmul.bf16 %v2817, %v2899
        %v3156 = vmul.bf16 %v2818, %v2900
        %v3157 = vmul.bf16 %v2819, %v2885
        %v3158 = vmul.bf16 %v2820, %v2886
        %v3159 = vmul.bf16 %v2819, %v2887
        %v3160 = vmul.bf16 %v2820, %v2888
        %v3161 = vmul.bf16 %v2819, %v2889
        %v3162 = vmul.bf16 %v2820, %v2890
        %v3163 = vmul.bf16 %v2819, %v2891
        %v3164 = vmul.bf16 %v2820, %v2892
        %v3165 = vmul.bf16 %v2819, %v2893
        %v3166 = vmul.bf16 %v2820, %v2894
        %v3167 = vmul.bf16 %v2819, %v2895
        %v3168 = vmul.bf16 %v2820, %v2896
        %v3169 = vmul.bf16 %v2819, %v2897
        %v3170 = vmul.bf16 %v2820, %v2898
        %v3171 = vmul.bf16 %v2819, %v2899
        %v3172 = vmul.bf16 %v2820, %v2900
        %v3173 = vpack.c.bf16 %v2373, %v2372
        %v3174 = vpack.c.bf16 %v2375, %v2374
        %v3175 = vpack.c.bf16 %v2377, %v2376
        %v3176 = vpack.c.bf16 %v2379, %v2378
        %v3177 = vpack.c.bf16 %v2381, %v2380
        %v3178 = vpack.c.bf16 %v2383, %v2382
        %v3179 = vpack.c.bf16 %v2385, %v2384
        %v3180 = vpack.c.bf16 %v2387, %v2386
        %v3181 = vpack.c.bf16 %v2389, %v2388
        %v3182 = vpack.c.bf16 %v2391, %v2390
        %v3183 = vpack.c.bf16 %v2393, %v2392
        %v3184 = vpack.c.bf16 %v2395, %v2394
        %v3185 = vpack.c.bf16 %v2397, %v2396
        %v3186 = vpack.c.bf16 %v2399, %v2398
        %v3187 = vpack.c.bf16 %v2401, %v2400
        %v3188 = vpack.c.bf16 %v2403, %v2402
        %3189 = vmatprep.subr.bf16.mxu0 0
        %3190 = vmatpush1.bf16.xpose.msra.mxu0 %v2917
        %3191 = vmatprep.subr.bf16.mxu0 0
        %3192 = vmatpush1.bf16.xpose.msra.mxu0 %v2918
        %3193 = vmatprep.subr.bf16.mxu0 0
        %3194 = vmatpush1.bf16.xpose.msra.mxu0 %v2919
        %3195 = vmatprep.subr.bf16.mxu0 0
        %3196 = vmatpush1.bf16.xpose.msra.mxu0 %v2920
        %3197 = vmatprep.subr.bf16.mxu0 0
        %3198 = vmatpush1.bf16.xpose.msra.mxu0 %v2921
        %3199 = vmatprep.subr.bf16.mxu0 0
        %3200 = vmatpush1.bf16.xpose.msra.mxu0 %v2922
        %3201 = vmatprep.subr.bf16.mxu0 0
        %3202 = vmatpush1.bf16.xpose.msra.mxu0 %v2923
        %3203 = vmatprep.subr.bf16.mxu0 0
        %3204 = vmatpush1.bf16.xpose.msra.mxu0 %v2924
        %3205 = vmatprep.subr.bf16.mxu0 0
        %3206 = vmatpush1.bf16.xpose.msra.mxu0 %v2925
        %3207 = vmatprep.subr.bf16.mxu0 0
        %3208 = vmatpush1.bf16.xpose.msra.mxu0 %v2926
        %3209 = vmatprep.subr.bf16.mxu0 0
        %3210 = vmatpush1.bf16.xpose.msra.mxu0 %v2927
        %3211 = vmatprep.subr.bf16.mxu0 0
        %3212 = vmatpush1.bf16.xpose.msra.mxu0 %v2928
        %3213 = vmatprep.subr.bf16.mxu0 0
        %3214 = vmatpush1.bf16.xpose.msra.mxu0 %v2929
        %3215 = vmatprep.subr.bf16.mxu0 0
        %3216 = vmatpush1.bf16.xpose.msra.mxu0 %v2930
        %3217 = vmatprep.subr.bf16.mxu0 0
        %3218 = vmatpush1.bf16.xpose.msra.mxu0 %v2931
        %3219 = vmatprep.subr.bf16.mxu0 0
        %3220 = vmatpush1.bf16.xpose.msra.mxu0 %v2932
        %3221 = vmatprep.mubr.bf16.mxu0 0
        %3222 = vmatmul.mubr.bf16.gmra.mrb[0].mxu0 %v3173
        %v3223 = vpop.f32.mrb[0].mxu0
        %v3224 = vadd.f32 0.0, %v3223
        %v3225 = vpop.f32.mrb[0].mxu0
        %v3226 = vadd.f32 0.0, %v3225
        %v3227 = vpop.f32.mrb[0].mxu0
        %v3228 = vadd.f32 0.0, %v3227
        %v3229 = vpop.f32.mrb[0].mxu0
        %v3230 = vadd.f32 0.0, %v3229
        %3231 = vmatprep.mubr.bf16.mxu0 0
        %3232 = vmatmul.mubr.bf16.gmra.mrb[0].mxu0 %v3174
        %v3233 = vpop.f32.mrb[0].mxu0
        %v3234 = vadd.f32 0.0, %v3233
        %v3235 = vpop.f32.mrb[0].mxu0
        %v3236 = vadd.f32 0.0, %v3235
        %v3237 = vpop.f32.mrb[0].mxu0
        %v3238 = vadd.f32 0.0, %v3237
        %v3239 = vpop.f32.mrb[0].mxu0
        %v3240 = vadd.f32 0.0, %v3239
        %3241 = vdwg.mxu0
        %3242 = vmatprep.subr.bf16.mxu0 0
        %3243 = vmatpush1.bf16.xpose.msra.mxu0 %v2933
        %3244 = vmatprep.subr.bf16.mxu0 0
        %3245 = vmatpush1.bf16.xpose.msra.mxu0 %v2934
        %3246 = vmatprep.subr.bf16.mxu0 0
        %3247 = vmatpush1.bf16.xpose.msra.mxu0 %v2935
        %3248 = vmatprep.subr.bf16.mxu0 0
        %3249 = vmatpush1.bf16.xpose.msra.mxu0 %v2936
        %3250 = vmatprep.subr.bf16.mxu0 0
        %3251 = vmatpush1.bf16.xpose.msra.mxu0 %v2937
        %3252 = vmatprep.subr.bf16.mxu0 0
        %3253 = vmatpush1.bf16.xpose.msra.mxu0 %v2938
        %3254 = vmatprep.subr.bf16.mxu0 0
        %3255 = vmatpush1.bf16.xpose.msra.mxu0 %v2939
        %3256 = vmatprep.subr.bf16.mxu0 0
        %3257 = vmatpush1.bf16.xpose.msra.mxu0 %v2940
        %3258 = vmatprep.subr.bf16.mxu0 0
        %3259 = vmatpush1.bf16.xpose.msra.mxu0 %v2941
        %3260 = vmatprep.subr.bf16.mxu0 0
        %3261 = vmatpush1.bf16.xpose.msra.mxu0 %v2942
        %3262 = vmatprep.subr.bf16.mxu0 0
        %3263 = vmatpush1.bf16.xpose.msra.mxu0 %v2943
        %3264 = vmatprep.subr.bf16.mxu0 0
        %3265 = vmatpush1.bf16.xpose.msra.mxu0 %v2944
        %3266 = vmatprep.subr.bf16.mxu0 0
        %3267 = vmatpush1.bf16.xpose.msra.mxu0 %v2945
        %3268 = vmatprep.subr.bf16.mxu0 0
        %3269 = vmatpush1.bf16.xpose.msra.mxu0 %v2946
        %3270 = vmatprep.subr.bf16.mxu0 0
        %3271 = vmatpush1.bf16.xpose.msra.mxu0 %v2947
        %3272 = vmatprep.subr.bf16.mxu0 0
        %3273 = vmatpush1.bf16.xpose.msra.mxu0 %v2948
        %3274 = vmatprep.mubr.bf16.mxu0 0
        %3275 = vmatmul.mubr.bf16.gmra.mrb[0].mxu0 %v3175
        %v3276 = vpop.f32.mrb[0].mxu0
        %v3277 = vadd.f32 0.0, %v3276
        %v3278 = vpop.f32.mrb[0].mxu0
        %v3279 = vadd.f32 0.0, %v3278
        %v3280 = vpop.f32.mrb[0].mxu0
        %v3281 = vadd.f32 0.0, %v3280
        %v3282 = vpop.f32.mrb[0].mxu0
        %v3283 = vadd.f32 0.0, %v3282
        %3284 = vmatprep.mubr.bf16.mxu0 0
        %3285 = vmatmul.mubr.bf16.gmra.mrb[0].mxu0 %v3176
        %v3286 = vpop.f32.mrb[0].mxu0
        %v3287 = vadd.f32 0.0, %v3286
        %v3288 = vpop.f32.mrb[0].mxu0
        %v3289 = vadd.f32 0.0, %v3288
        %v3290 = vpop.f32.mrb[0].mxu0
        %v3291 = vadd.f32 0.0, %v3290
        %v3292 = vpop.f32.mrb[0].mxu0
        %v3293 = vadd.f32 0.0, %v3292
        %3294 = vdwg.mxu0
        %3295 = vmatprep.subr.bf16.mxu0 0
        %3296 = vmatpush1.bf16.xpose.msra.mxu0 %v2949
        %3297 = vmatprep.subr.bf16.mxu0 0
        %3298 = vmatpush1.bf16.xpose.msra.mxu0 %v2950
        %3299 = vmatprep.subr.bf16.mxu0 0
        %3300 = vmatpush1.bf16.xpose.msra.mxu0 %v2951
        %3301 = vmatprep.subr.bf16.mxu0 0
        %3302 = vmatpush1.bf16.xpose.msra.mxu0 %v2952
        %3303 = vmatprep.subr.bf16.mxu0 0
        %3304 = vmatpush1.bf16.xpose.msra.mxu0 %v2953
        %3305 = vmatprep.subr.bf16.mxu0 0
        %3306 = vmatpush1.bf16.xpose.msra.mxu0 %v2954
        %3307 = vmatprep.subr.bf16.mxu0 0
        %3308 = vmatpush1.bf16.xpose.msra.mxu0 %v2955
        %3309 = vmatprep.subr.bf16.mxu0 0
        %3310 = vmatpush1.bf16.xpose.msra.mxu0 %v2956
        %3311 = vmatprep.subr.bf16.mxu0 0
        %3312 = vmatpush1.bf16.xpose.msra.mxu0 %v2957
        %3313 = vmatprep.subr.bf16.mxu0 0
        %3314 = vmatpush1.bf16.xpose.msra.mxu0 %v2958
        %3315 = vmatprep.subr.bf16.mxu0 0
        %3316 = vmatpush1.bf16.xpose.msra.mxu0 %v2959
        %3317 = vmatprep.subr.bf16.mxu0 0
        %3318 = vmatpush1.bf16.xpose.msra.mxu0 %v2960
        %3319 = vmatprep.subr.bf16.mxu0 0
        %3320 = vmatpush1.bf16.xpose.msra.mxu0 %v2961
        %3321 = vmatprep.subr.bf16.mxu0 0
        %3322 = vmatpush1.bf16.xpose.msra.mxu0 %v2962
        %3323 = vmatprep.subr.bf16.mxu0 0
        %3324 = vmatpush1.bf16.xpose.msra.mxu0 %v2963
        %3325 = vmatprep.subr.bf16.mxu0 0
        %3326 = vmatpush1.bf16.xpose.msra.mxu0 %v2964
        %3327 = vmatprep.mubr.bf16.mxu0 0
        %3328 = vmatmul.mubr.bf16.gmra.mrb[0].mxu0 %v3177
        %v3329 = vpop.f32.mrb[0].mxu0
        %v3330 = vadd.f32 0.0, %v3329
        %v3331 = vpop.f32.mrb[0].mxu0
        %v3332 = vadd.f32 0.0, %v3331
        %v3333 = vpop.f32.mrb[0].mxu0
        %v3334 = vadd.f32 0.0, %v3333
        %v3335 = vpop.f32.mrb[0].mxu0
        %v3336 = vadd.f32 0.0, %v3335
        %3337 = vmatprep.mubr.bf16.mxu0 0
        %3338 = vmatmul.mubr.bf16.gmra.mrb[0].mxu0 %v3178
        %v3339 = vpop.f32.mrb[0].mxu0
        %v3340 = vadd.f32 0.0, %v3339
        %v3341 = vpop.f32.mrb[0].mxu0
        %v3342 = vadd.f32 0.0, %v3341
        %v3343 = vpop.f32.mrb[0].mxu0
        %v3344 = vadd.f32 0.0, %v3343
        %v3345 = vpop.f32.mrb[0].mxu0
        %v3346 = vadd.f32 0.0, %v3345
        %3347 = vdwg.mxu0
        %3348 = vmatprep.subr.bf16.mxu0 0
        %3349 = vmatpush1.bf16.xpose.msra.mxu0 %v2965
        %3350 = vmatprep.subr.bf16.mxu0 0
        %3351 = vmatpush1.bf16.xpose.msra.mxu0 %v2966
        %3352 = vmatprep.subr.bf16.mxu0 0
        %3353 = vmatpush1.bf16.xpose.msra.mxu0 %v2967
        %3354 = vmatprep.subr.bf16.mxu0 0
        %3355 = vmatpush1.bf16.xpose.msra.mxu0 %v2968
        %3356 = vmatprep.subr.bf16.mxu0 0
        %3357 = vmatpush1.bf16.xpose.msra.mxu0 %v2969
        %3358 = vmatprep.subr.bf16.mxu0 0
        %3359 = vmatpush1.bf16.xpose.msra.mxu0 %v2970
        %3360 = vmatprep.subr.bf16.mxu0 0
        %3361 = vmatpush1.bf16.xpose.msra.mxu0 %v2971
        %3362 = vmatprep.subr.bf16.mxu0 0
        %3363 = vmatpush1.bf16.xpose.msra.mxu0 %v2972
        %3364 = vmatprep.subr.bf16.mxu0 0
        %3365 = vmatpush1.bf16.xpose.msra.mxu0 %v2973
        %3366 = vmatprep.subr.bf16.mxu0 0
        %3367 = vmatpush1.bf16.xpose.msra.mxu0 %v2974
        %3368 = vmatprep.subr.bf16.mxu0 0
        %3369 = vmatpush1.bf16.xpose.msra.mxu0 %v2975
        %3370 = vmatprep.subr.bf16.mxu0 0
        %3371 = vmatpush1.bf16.xpose.msra.mxu0 %v2976
        %3372 = vmatprep.subr.bf16.mxu0 0
        %3373 = vmatpush1.bf16.xpose.msra.mxu0 %v2977
        %3374 = vmatprep.subr.bf16.mxu0 0
        %3375 = vmatpush1.bf16.xpose.msra.mxu0 %v2978
        %3376 = vmatprep.subr.bf16.mxu0 0
        %3377 = vmatpush1.bf16.xpose.msra.mxu0 %v2979
        %3378 = vmatprep.subr.bf16.mxu0 0
        %3379 = vmatpush1.bf16.xpose.msra.mxu0 %v2980
        %3380 = vmatprep.mubr.bf16.mxu0 0
        %3381 = vmatmul.mubr.bf16.gmra.mrb[0].mxu0 %v3179
        %v3382 = vpop.f32.mrb[0].mxu0
        %v3383 = vadd.f32 0.0, %v3382
        %v3384 = vpop.f32.mrb[0].mxu0
        %v3385 = vadd.f32 0.0, %v3384
        %v3386 = vpop.f32.mrb[0].mxu0
        %v3387 = vadd.f32 0.0, %v3386
        %v3388 = vpop.f32.mrb[0].mxu0
        %v3389 = vadd.f32 0.0, %v3388
        %3390 = vmatprep.mubr.bf16.mxu0 0
        %3391 = vmatmul.mubr.bf16.gmra.mrb[0].mxu0 %v3180
        %v3392 = vpop.f32.mrb[0].mxu0
        %v3393 = vadd.f32 0.0, %v3392
        %v3394 = vpop.f32.mrb[0].mxu0
        %v3395 = vadd.f32 0.0, %v3394
        %v3396 = vpop.f32.mrb[0].mxu0
        %v3397 = vadd.f32 0.0, %v3396
        %v3398 = vpop.f32.mrb[0].mxu0
        %v3399 = vadd.f32 0.0, %v3398
        %3400 = vdwg.mxu0
        %3401 = vmatprep.subr.bf16.mxu0 0
        %3402 = vmatpush1.bf16.xpose.msra.mxu0 %v2981
        %3403 = vmatprep.subr.bf16.mxu0 0
        %3404 = vmatpush1.bf16.xpose.msra.mxu0 %v2982
        %3405 = vmatprep.subr.bf16.mxu0 0
        %3406 = vmatpush1.bf16.xpose.msra.mxu0 %v2983
        %3407 = vmatprep.subr.bf16.mxu0 0
        %3408 = vmatpush1.bf16.xpose.msra.mxu0 %v2984
        %3409 = vmatprep.subr.bf16.mxu0 0
        %3410 = vmatpush1.bf16.xpose.msra.mxu0 %v2985
        %3411 = vmatprep.subr.bf16.mxu0 0
        %3412 = vmatpush1.bf16.xpose.msra.mxu0 %v2986
        %3413 = vmatprep.subr.bf16.mxu0 0
        %3414 = vmatpush1.bf16.xpose.msra.mxu0 %v2987
        %3415 = vmatprep.subr.bf16.mxu0 0
        %3416 = vmatpush1.bf16.xpose.msra.mxu0 %v2988
        %3417 = vmatprep.subr.bf16.mxu0 0
        %3418 = vmatpush1.bf16.xpose.msra.mxu0 %v2989
        %3419 = vmatprep.subr.bf16.mxu0 0
        %3420 = vmatpush1.bf16.xpose.msra.mxu0 %v2990
        %3421 = vmatprep.subr.bf16.mxu0 0
        %3422 = vmatpush1.bf16.xpose.msra.mxu0 %v2991
        %3423 = vmatprep.subr.bf16.mxu0 0
        %3424 = vmatpush1.bf16.xpose.msra.mxu0 %v2992
        %3425 = vmatprep.subr.bf16.mxu0 0
        %3426 = vmatpush1.bf16.xpose.msra.mxu0 %v2993
        %3427 = vmatprep.subr.bf16.mxu0 0
        %3428 = vmatpush1.bf16.xpose.msra.mxu0 %v2994
        %3429 = vmatprep.subr.bf16.mxu0 0
        %3430 = vmatpush1.bf16.xpose.msra.mxu0 %v2995
        %3431 = vmatprep.subr.bf16.mxu0 0
        %3432 = vmatpush1.bf16.xpose.msra.mxu0 %v2996
        %3433 = vmatprep.mubr.bf16.mxu0 0
        %3434 = vmatmul.mubr.bf16.gmra.mrb[0].mxu0 %v3181
        %v3435 = vpop.f32.mrb[0].mxu0
        %v3436 = vadd.f32 0.0, %v3435
        %v3437 = vpop.f32.mrb[0].mxu0
        %v3438 = vadd.f32 0.0, %v3437
        %v3439 = vpop.f32.mrb[0].mxu0
        %v3440 = vadd.f32 0.0, %v3439
        %v3441 = vpop.f32.mrb[0].mxu0
        %v3442 = vadd.f32 0.0, %v3441
        %3443 = vmatprep.mubr.bf16.mxu0 0
        %3444 = vmatmul.mubr.bf16.gmra.mrb[0].mxu0 %v3182
        %v3445 = vpop.f32.mrb[0].mxu0
        %v3446 = vadd.f32 0.0, %v3445
        %v3447 = vpop.f32.mrb[0].mxu0
        %v3448 = vadd.f32 0.0, %v3447
        %v3449 = vpop.f32.mrb[0].mxu0
        %v3450 = vadd.f32 0.0, %v3449
        %v3451 = vpop.f32.mrb[0].mxu0
        %v3452 = vadd.f32 0.0, %v3451
        %3453 = vdwg.mxu0
        %3454 = vmatprep.subr.bf16.mxu0 0
        %3455 = vmatpush1.bf16.xpose.msra.mxu0 %v2997
        %3456 = vmatprep.subr.bf16.mxu0 0
        %3457 = vmatpush1.bf16.xpose.msra.mxu0 %v2998
        %3458 = vmatprep.subr.bf16.mxu0 0
        %3459 = vmatpush1.bf16.xpose.msra.mxu0 %v2999
        %3460 = vmatprep.subr.bf16.mxu0 0
        %3461 = vmatpush1.bf16.xpose.msra.mxu0 %v3000
        %3462 = vmatprep.subr.bf16.mxu0 0
        %3463 = vmatpush1.bf16.xpose.msra.mxu0 %v3001
        %3464 = vmatprep.subr.bf16.mxu0 0
        %3465 = vmatpush1.bf16.xpose.msra.mxu0 %v3002
        %3466 = vmatprep.subr.bf16.mxu0 0
        %3467 = vmatpush1.bf16.xpose.msra.mxu0 %v3003
        %3468 = vmatprep.subr.bf16.mxu0 0
        %3469 = vmatpush1.bf16.xpose.msra.mxu0 %v3004
        %3470 = vmatprep.subr.bf16.mxu0 0
        %3471 = vmatpush1.bf16.xpose.msra.mxu0 %v3005
        %3472 = vmatprep.subr.bf16.mxu0 0
        %3473 = vmatpush1.bf16.xpose.msra.mxu0 %v3006
        %3474 = vmatprep.subr.bf16.mxu0 0
        %3475 = vmatpush1.bf16.xpose.msra.mxu0 %v3007
        %3476 = vmatprep.subr.bf16.mxu0 0
        %3477 = vmatpush1.bf16.xpose.msra.mxu0 %v3008
        %3478 = vmatprep.subr.bf16.mxu0 0
        %3479 = vmatpush1.bf16.xpose.msra.mxu0 %v3009
        %3480 = vmatprep.subr.bf16.mxu0 0
        %3481 = vmatpush1.bf16.xpose.msra.mxu0 %v3010
        %3482 = vmatprep.subr.bf16.mxu0 0
        %3483 = vmatpush1.bf16.xpose.msra.mxu0 %v3011
        %3484 = vmatprep.subr.bf16.mxu0 0
        %3485 = vmatpush1.bf16.xpose.msra.mxu0 %v3012
        %3486 = vmatprep.mubr.bf16.mxu0 0
        %3487 = vmatmul.mubr.bf16.gmra.mrb[0].mxu0 %v3183
        %v3488 = vpop.f32.mrb[0].mxu0
        %v3489 = vadd.f32 0.0, %v3488
        %v3490 = vpop.f32.mrb[0].mxu0
        %v3491 = vadd.f32 0.0, %v3490
        %v3492 = vpop.f32.mrb[0].mxu0
        %v3493 = vadd.f32 0.0, %v3492
        %v3494 = vpop.f32.mrb[0].mxu0
        %v3495 = vadd.f32 0.0, %v3494
        %3496 = vmatprep.mubr.bf16.mxu0 0
        %3497 = vmatmul.mubr.bf16.gmra.mrb[0].mxu0 %v3184
        %v3498 = vpop.f32.mrb[0].mxu0
        %v3499 = vadd.f32 0.0, %v3498
        %v3500 = vpop.f32.mrb[0].mxu0
        %v3501 = vadd.f32 0.0, %v3500
        %v3502 = vpop.f32.mrb[0].mxu0
        %v3503 = vadd.f32 0.0, %v3502
        %v3504 = vpop.f32.mrb[0].mxu0
        %v3505 = vadd.f32 0.0, %v3504
        %3506 = vdwg.mxu0
        %3507 = vmatprep.subr.bf16.mxu0 0
        %3508 = vmatpush1.bf16.xpose.msra.mxu0 %v3013
        %3509 = vmatprep.subr.bf16.mxu0 0
        %3510 = vmatpush1.bf16.xpose.msra.mxu0 %v3014
        %3511 = vmatprep.subr.bf16.mxu0 0
        %3512 = vmatpush1.bf16.xpose.msra.mxu0 %v3015
        %3513 = vmatprep.subr.bf16.mxu0 0
        %3514 = vmatpush1.bf16.xpose.msra.mxu0 %v3016
        %3515 = vmatprep.subr.bf16.mxu0 0
        %3516 = vmatpush1.bf16.xpose.msra.mxu0 %v3017
        %3517 = vmatprep.subr.bf16.mxu0 0
        %3518 = vmatpush1.bf16.xpose.msra.mxu0 %v3018
        %3519 = vmatprep.subr.bf16.mxu0 0
        %3520 = vmatpush1.bf16.xpose.msra.mxu0 %v3019
        %3521 = vmatprep.subr.bf16.mxu0 0
        %3522 = vmatpush1.bf16.xpose.msra.mxu0 %v3020
        %3523 = vmatprep.subr.bf16.mxu0 0
        %3524 = vmatpush1.bf16.xpose.msra.mxu0 %v3021
        %3525 = vmatprep.subr.bf16.mxu0 0
        %3526 = vmatpush1.bf16.xpose.msra.mxu0 %v3022
        %3527 = vmatprep.subr.bf16.mxu0 0
        %3528 = vmatpush1.bf16.xpose.msra.mxu0 %v3023
        %3529 = vmatprep.subr.bf16.mxu0 0
        %3530 = vmatpush1.bf16.xpose.msra.mxu0 %v3024
        %3531 = vmatprep.subr.bf16.mxu0 0
        %3532 = vmatpush1.bf16.xpose.msra.mxu0 %v3025
        %3533 = vmatprep.subr.bf16.mxu0 0
        %3534 = vmatpush1.bf16.xpose.msra.mxu0 %v3026
        %3535 = vmatprep.subr.bf16.mxu0 0
        %3536 = vmatpush1.bf16.xpose.msra.mxu0 %v3027
        %3537 = vmatprep.subr.bf16.mxu0 0
        %3538 = vmatpush1.bf16.xpose.msra.mxu0 %v3028
        %3539 = vmatprep.mubr.bf16.mxu0 0
        %3540 = vmatmul.mubr.bf16.gmra.mrb[0].mxu0 %v3185
        %v3541 = vpop.f32.mrb[0].mxu0
        %v3542 = vadd.f32 0.0, %v3541
        %v3543 = vpop.f32.mrb[0].mxu0
        %v3544 = vadd.f32 0.0, %v3543
        %v3545 = vpop.f32.mrb[0].mxu0
        %v3546 = vadd.f32 0.0, %v3545
        %v3547 = vpop.f32.mrb[0].mxu0
        %v3548 = vadd.f32 0.0, %v3547
        %3549 = vmatprep.mubr.bf16.mxu0 0
        %3550 = vmatmul.mubr.bf16.gmra.mrb[0].mxu0 %v3186
        %v3551 = vpop.f32.mrb[0].mxu0
        %v3552 = vadd.f32 0.0, %v3551
        %v3553 = vpop.f32.mrb[0].mxu0
        %v3554 = vadd.f32 0.0, %v3553
        %v3555 = vpop.f32.mrb[0].mxu0
        %v3556 = vadd.f32 0.0, %v3555
        %v3557 = vpop.f32.mrb[0].mxu0
        %v3558 = vadd.f32 0.0, %v3557
        %3559 = vdwg.mxu0
        %3560 = vmatprep.subr.bf16.mxu0 0
        %3561 = vmatpush1.bf16.xpose.msra.mxu0 %v3029
        %3562 = vmatprep.subr.bf16.mxu0 0
        %3563 = vmatpush1.bf16.xpose.msra.mxu0 %v3030
        %3564 = vmatprep.subr.bf16.mxu0 0
        %3565 = vmatpush1.bf16.xpose.msra.mxu0 %v3031
        %3566 = vmatprep.subr.bf16.mxu0 0
        %3567 = vmatpush1.bf16.xpose.msra.mxu0 %v3032
        %3568 = vmatprep.subr.bf16.mxu0 0
        %3569 = vmatpush1.bf16.xpose.msra.mxu0 %v3033
        %3570 = vmatprep.subr.bf16.mxu0 0
        %3571 = vmatpush1.bf16.xpose.msra.mxu0 %v3034
        %3572 = vmatprep.subr.bf16.mxu0 0
        %3573 = vmatpush1.bf16.xpose.msra.mxu0 %v3035
        %3574 = vmatprep.subr.bf16.mxu0 0
        %3575 = vmatpush1.bf16.xpose.msra.mxu0 %v3036
        %3576 = vmatprep.subr.bf16.mxu0 0
        %3577 = vmatpush1.bf16.xpose.msra.mxu0 %v3037
        %3578 = vmatprep.subr.bf16.mxu0 0
        %3579 = vmatpush1.bf16.xpose.msra.mxu0 %v3038
        %3580 = vmatprep.subr.bf16.mxu0 0
        %3581 = vmatpush1.bf16.xpose.msra.mxu0 %v3039
        %3582 = vmatprep.subr.bf16.mxu0 0
        %3583 = vmatpush1.bf16.xpose.msra.mxu0 %v3040
        %3584 = vmatprep.subr.bf16.mxu0 0
        %3585 = vmatpush1.bf16.xpose.msra.mxu0 %v3041
        %3586 = vmatprep.subr.bf16.mxu0 0
        %3587 = vmatpush1.bf16.xpose.msra.mxu0 %v3042
        %3588 = vmatprep.subr.bf16.mxu0 0
        %3589 = vmatpush1.bf16.xpose.msra.mxu0 %v3043
        %3590 = vmatprep.subr.bf16.mxu0 0
        %3591 = vmatpush1.bf16.xpose.msra.mxu0 %v3044
        %3592 = vmatprep.mubr.bf16.mxu0 0
        %3593 = vmatmul.mubr.bf16.gmra.mrb[0].mxu0 %v3187
        %v3594 = vpop.f32.mrb[0].mxu0
        %v3595 = vadd.f32 0.0, %v3594
        %v3596 = vpop.f32.mrb[0].mxu0
        %v3597 = vadd.f32 0.0, %v3596
        %v3598 = vpop.f32.mrb[0].mxu0
        %v3599 = vadd.f32 0.0, %v3598
        %v3600 = vpop.f32.mrb[0].mxu0
        %v3601 = vadd.f32 0.0, %v3600
        %3602 = vmatprep.mubr.bf16.mxu0 0
        %3603 = vmatmul.mubr.bf16.gmra.mrb[0].mxu0 %v3188
        %v3604 = vpop.f32.mrb[0].mxu0
        %v3605 = vadd.f32 0.0, %v3604
        %v3606 = vpop.f32.mrb[0].mxu0
        %v3607 = vadd.f32 0.0, %v3606
        %v3608 = vpop.f32.mrb[0].mxu0
        %v3609 = vadd.f32 0.0, %v3608
        %v3610 = vpop.f32.mrb[0].mxu0
        %v3611 = vadd.f32 0.0, %v3610
        %3612 = vdwg.mxu0
        %v3613 = vsub.f32 %v3224, %v1760
        %v3614 = vsub.f32 %v3226, %v1760
        %v3615 = vsub.f32 %v3228, %v1760
        %v3616 = vsub.f32 %v3230, %v1760
        %v3617 = vsub.f32 %v3234, %v1760
        %v3618 = vsub.f32 %v3236, %v1760
        %v3619 = vsub.f32 %v3238, %v1760
        %v3620 = vsub.f32 %v3240, %v1760
        %v3621 = vsub.f32 %v3277, %v1760
        %v3622 = vsub.f32 %v3279, %v1760
        %v3623 = vsub.f32 %v3281, %v1760
        %v3624 = vsub.f32 %v3283, %v1760
        %v3625 = vsub.f32 %v3287, %v1760
        %v3626 = vsub.f32 %v3289, %v1760
        %v3627 = vsub.f32 %v3291, %v1760
        %v3628 = vsub.f32 %v3293, %v1760
        %v3629 = vsub.f32 %v3330, %v1760
        %v3630 = vsub.f32 %v3332, %v1760
        %v3631 = vsub.f32 %v3334, %v1760
        %v3632 = vsub.f32 %v3336, %v1760
        %v3633 = vsub.f32 %v3340, %v1760
        %v3634 = vsub.f32 %v3342, %v1760
        %v3635 = vsub.f32 %v3344, %v1760
        %v3636 = vsub.f32 %v3346, %v1760
        %v3637 = vsub.f32 %v3383, %v1760
        %v3638 = vsub.f32 %v3385, %v1760
        %v3639 = vsub.f32 %v3387, %v1760
        %v3640 = vsub.f32 %v3389, %v1760
        %v3641 = vsub.f32 %v3393, %v1760
        %v3642 = vsub.f32 %v3395, %v1760
        %v3643 = vsub.f32 %v3397, %v1760
        %v3644 = vsub.f32 %v3399, %v1760
        %v3645 = vsub.f32 %v3436, %v1760
        %v3646 = vsub.f32 %v3438, %v1760
        %v3647 = vsub.f32 %v3440, %v1760
        %v3648 = vsub.f32 %v3442, %v1760
        %v3649 = vsub.f32 %v3446, %v1760
        %v3650 = vsub.f32 %v3448, %v1760
        %v3651 = vsub.f32 %v3450, %v1760
        %v3652 = vsub.f32 %v3452, %v1760
        %v3653 = vsub.f32 %v3489, %v1760
        %v3654 = vsub.f32 %v3491, %v1760
        %v3655 = vsub.f32 %v3493, %v1760
        %v3656 = vsub.f32 %v3495, %v1760
        %v3657 = vsub.f32 %v3499, %v1760
        %v3658 = vsub.f32 %v3501, %v1760
        %v3659 = vsub.f32 %v3503, %v1760
        %v3660 = vsub.f32 %v3505, %v1760
        %v3661 = vsub.f32 %v3542, %v1760
        %v3662 = vsub.f32 %v3544, %v1760
        %v3663 = vsub.f32 %v3546, %v1760
        %v3664 = vsub.f32 %v3548, %v1760
        %v3665 = vsub.f32 %v3552, %v1760
        %v3666 = vsub.f32 %v3554, %v1760
        %v3667 = vsub.f32 %v3556, %v1760
        %v3668 = vsub.f32 %v3558, %v1760
        %v3669 = vsub.f32 %v3595, %v1760
        %v3670 = vsub.f32 %v3597, %v1760
        %v3671 = vsub.f32 %v3599, %v1760
        %v3672 = vsub.f32 %v3601, %v1760
        %v3673 = vsub.f32 %v3605, %v1760
        %v3674 = vsub.f32 %v3607, %v1760
        %v3675 = vsub.f32 %v3609, %v1760
        %v3676 = vsub.f32 %v3611, %v1760
        %v3677 = vmul.f32 %v3613, 1.442695
        %v3678 = vpow.pop %v3677
        %v3679 = vmul.f32 %v3614, 1.442695
        %v3680 = vpow.pop %v3679
        %v3681 = vmul.f32 %v3615, 1.442695
        %v3682 = vpow.pop %v3681
        %v3683 = vmul.f32 %v3616, 1.442695
        %v3684 = vpow.pop %v3683
        %v3685 = vmul.f32 %v3617, 1.442695
        %v3686 = vpow.pop %v3685
        %v3687 = vmul.f32 %v3618, 1.442695
        %v3688 = vpow.pop %v3687
        %v3689 = vmul.f32 %v3619, 1.442695
        %v3690 = vpow.pop %v3689
        %v3691 = vmul.f32 %v3620, 1.442695
        %v3692 = vpow.pop %v3691
        %v3693 = vmul.f32 %v3621, 1.442695
        %v3694 = vpow.pop %v3693
        %v3695 = vmul.f32 %v3622, 1.442695
        %v3696 = vpow.pop %v3695
        %v3697 = vmul.f32 %v3623, 1.442695
        %v3698 = vpow.pop %v3697
        %v3699 = vmul.f32 %v3624, 1.442695
        %v3700 = vpow.pop %v3699
        %v3701 = vmul.f32 %v3625, 1.442695
        %v3702 = vpow.pop %v3701
        %v3703 = vmul.f32 %v3626, 1.442695
        %v3704 = vpow.pop %v3703
        %v3705 = vmul.f32 %v3627, 1.442695
        %v3706 = vpow.pop %v3705
        %v3707 = vmul.f32 %v3628, 1.442695
        %v3708 = vpow.pop %v3707
        %v3709 = vmul.f32 %v3629, 1.442695
        %v3710 = vpow.pop %v3709
        %v3711 = vmul.f32 %v3630, 1.442695
        %v3712 = vpow.pop %v3711
        %v3713 = vmul.f32 %v3631, 1.442695
        %v3714 = vpow.pop %v3713
        %v3715 = vmul.f32 %v3632, 1.442695
        %v3716 = vpow.pop %v3715
        %v3717 = vmul.f32 %v3633, 1.442695
        %v3718 = vpow.pop %v3717
        %v3719 = vmul.f32 %v3634, 1.442695
        %v3720 = vpow.pop %v3719
        %v3721 = vmul.f32 %v3635, 1.442695
        %v3722 = vpow.pop %v3721
        %v3723 = vmul.f32 %v3636, 1.442695
        %v3724 = vpow.pop %v3723
        %v3725 = vmul.f32 %v3637, 1.442695
        %v3726 = vpow.pop %v3725
        %v3727 = vmul.f32 %v3638, 1.442695
        %v3728 = vpow.pop %v3727
        %v3729 = vmul.f32 %v3639, 1.442695
        %v3730 = vpow.pop %v3729
        %v3731 = vmul.f32 %v3640, 1.442695
        %v3732 = vpow.pop %v3731
        %v3733 = vmul.f32 %v3641, 1.442695
        %v3734 = vpow.pop %v3733
        %v3735 = vmul.f32 %v3642, 1.442695
        %v3736 = vpow.pop %v3735
        %v3737 = vmul.f32 %v3643, 1.442695
        %v3738 = vpow.pop %v3737
        %v3739 = vmul.f32 %v3644, 1.442695
        %v3740 = vpow.pop %v3739
        %v3741 = vmul.f32 %v3645, 1.442695
        %v3742 = vpow.pop %v3741
        %v3743 = vmul.f32 %v3646, 1.442695
        %v3744 = vpow.pop %v3743
        %v3745 = vmul.f32 %v3647, 1.442695
        %v3746 = vpow.pop %v3745
        %v3747 = vmul.f32 %v3648, 1.442695
        %v3748 = vpow.pop %v3747
        %v3749 = vmul.f32 %v3649, 1.442695
        %v3750 = vpow.pop %v3749
        %v3751 = vmul.f32 %v3650, 1.442695
        %v3752 = vpow.pop %v3751
        %v3753 = vmul.f32 %v3651, 1.442695
        %v3754 = vpow.pop %v3753
        %v3755 = vmul.f32 %v3652, 1.442695
        %v3756 = vpow.pop %v3755
        %v3757 = vmul.f32 %v3653, 1.442695
        %v3758 = vpow.pop %v3757
        %v3759 = vmul.f32 %v3654, 1.442695
        %v3760 = vpow.pop %v3759
        %v3761 = vmul.f32 %v3655, 1.442695
        %v3762 = vpow.pop %v3761
        %v3763 = vmul.f32 %v3656, 1.442695
        %v3764 = vpow.pop %v3763
        %v3765 = vmul.f32 %v3657, 1.442695
        %v3766 = vpow.pop %v3765
        %v3767 = vmul.f32 %v3658, 1.442695
        %v3768 = vpow.pop %v3767
        %v3769 = vmul.f32 %v3659, 1.442695
        %v3770 = vpow.pop %v3769
        %v3771 = vmul.f32 %v3660, 1.442695
        %v3772 = vpow.pop %v3771
        %v3773 = vmul.f32 %v3661, 1.442695
        %v3774 = vpow.pop %v3773
        %v3775 = vmul.f32 %v3662, 1.442695
        %v3776 = vpow.pop %v3775
        %v3777 = vmul.f32 %v3663, 1.442695
        %v3778 = vpow.pop %v3777
        %v3779 = vmul.f32 %v3664, 1.442695
        %v3780 = vpow.pop %v3779
        %v3781 = vmul.f32 %v3665, 1.442695
        %v3782 = vpow.pop %v3781
        %v3783 = vmul.f32 %v3666, 1.442695
        %v3784 = vpow.pop %v3783
        %v3785 = vmul.f32 %v3667, 1.442695
        %v3786 = vpow.pop %v3785
        %v3787 = vmul.f32 %v3668, 1.442695
        %v3788 = vpow.pop %v3787
        %v3789 = vmul.f32 %v3669, 1.442695
        %v3790 = vpow.pop %v3789
        %v3791 = vmul.f32 %v3670, 1.442695
        %v3792 = vpow.pop %v3791
        %v3793 = vmul.f32 %v3671, 1.442695
        %v3794 = vpow.pop %v3793
        %v3795 = vmul.f32 %v3672, 1.442695
        %v3796 = vpow.pop %v3795
        %v3797 = vmul.f32 %v3673, 1.442695
        %v3798 = vpow.pop %v3797
        %v3799 = vmul.f32 %v3674, 1.442695
        %v3800 = vpow.pop %v3799
        %v3801 = vmul.f32 %v3675, 1.442695
        %v3802 = vpow.pop %v3801
        %v3803 = vmul.f32 %v3676, 1.442695
        %v3804 = vpow.pop %v3803
        %v3805 = vld [vmem:[%s533] sm:$0x3]
        %v3806 = vld [vmem:[%s533 + $0x2] sm:$0x3]
        %v3807 = vld [vmem:[%s533 + $0x4] sm:$0x3]
        %v3808 = vld [vmem:[%s533 + $0x6] sm:$0x3]
        %v3809 = vld [vmem:[%s533 + $0x8] sm:$0x3]
        %v3810 = vld [vmem:[%s533 + $0xa] sm:$0x3]
        %v3811 = vld [vmem:[%s533 + $0xc] sm:$0x3]
        %v3812 = vld [vmem:[%s533 + $0xe] sm:$0x3]
        %v3821 = vlaneseq
        %v3822 = vshrl.u32 %v3821, 7
        %v3823 = vsub.s32 0, %v3822
        %v3824 = vrot.slane %v3805, %v3823
        %v3825 = vlaneseq
        %v3826 = vshrl.u32 %v3825, 7
        %v3827 = vsub.s32 1, %v3826
        %v3828 = vrot.slane %v3805, %v3827
        %v3829 = vlaneseq
        %v3830 = vshrl.u32 %v3829, 7
        %v3831 = vsub.s32 0, %v3830
        %v3832 = vrot.slane %v3806, %v3831
        %v3833 = vlaneseq
        %v3834 = vshrl.u32 %v3833, 7
        %v3835 = vsub.s32 1, %v3834
        %v3836 = vrot.slane %v3806, %v3835
        %v3837 = vlaneseq
        %v3838 = vshrl.u32 %v3837, 7
        %v3839 = vsub.s32 0, %v3838
        %v3840 = vrot.slane %v3807, %v3839
        %v3841 = vlaneseq
        %v3842 = vshrl.u32 %v3841, 7
        %v3843 = vsub.s32 1, %v3842
        %v3844 = vrot.slane %v3807, %v3843
        %v3845 = vlaneseq
        %v3846 = vshrl.u32 %v3845, 7
        %v3847 = vsub.s32 0, %v3846
        %v3848 = vrot.slane %v3808, %v3847
        %v3849 = vlaneseq
        %v3850 = vshrl.u32 %v3849, 7
        %v3851 = vsub.s32 1, %v3850
        %v3852 = vrot.slane %v3808, %v3851
        %v3853 = vlaneseq
        %v3854 = vshrl.u32 %v3853, 7
        %v3855 = vsub.s32 0, %v3854
        %v3856 = vrot.slane %v3809, %v3855
        %v3857 = vlaneseq
        %v3858 = vshrl.u32 %v3857, 7
        %v3859 = vsub.s32 1, %v3858
        %v3860 = vrot.slane %v3809, %v3859
        %v3861 = vlaneseq
        %v3862 = vshrl.u32 %v3861, 7
        %v3863 = vsub.s32 0, %v3862
        %v3864 = vrot.slane %v3810, %v3863
        %v3865 = vlaneseq
        %v3866 = vshrl.u32 %v3865, 7
        %v3867 = vsub.s32 1, %v3866
        %v3868 = vrot.slane %v3810, %v3867
        %v3869 = vlaneseq
        %v3870 = vshrl.u32 %v3869, 7
        %v3871 = vsub.s32 0, %v3870
        %v3872 = vrot.slane %v3811, %v3871
        %v3873 = vlaneseq
        %v3874 = vshrl.u32 %v3873, 7
        %v3875 = vsub.s32 1, %v3874
        %v3876 = vrot.slane %v3811, %v3875
        %v3877 = vlaneseq
        %v3878 = vshrl.u32 %v3877, 7
        %v3879 = vsub.s32 0, %v3878
        %v3880 = vrot.slane %v3812, %v3879
        %v3881 = vlaneseq
        %v3882 = vshrl.u32 %v3881, 7
        %v3883 = vsub.s32 1, %v3882
        %v3884 = vrot.slane %v3812, %v3883
        %v3901 = vmul.f32 %v3678, %v3824
        %v3902 = vmul.f32 %v3680, %v3828
        %v3903 = vmul.f32 %v3682, %v3824
        %v3904 = vmul.f32 %v3684, %v3828
        %v3905 = vmul.f32 %v3686, %v3824
        %v3906 = vmul.f32 %v3688, %v3828
        %v3907 = vmul.f32 %v3690, %v3824
        %v3908 = vmul.f32 %v3692, %v3828
        %v3909 = vmul.f32 %v3694, %v3832
        %v3910 = vmul.f32 %v3696, %v3836
        %v3911 = vmul.f32 %v3698, %v3832
        %v3912 = vmul.f32 %v3700, %v3836
        %v3913 = vmul.f32 %v3702, %v3832
        %v3914 = vmul.f32 %v3704, %v3836
        %v3915 = vmul.f32 %v3706, %v3832
        %v3916 = vmul.f32 %v3708, %v3836
        %v3917 = vmul.f32 %v3710, %v3840
        %v3918 = vmul.f32 %v3712, %v3844
        %v3919 = vmul.f32 %v3714, %v3840
        %v3920 = vmul.f32 %v3716, %v3844
        %v3921 = vmul.f32 %v3718, %v3840
        %v3922 = vmul.f32 %v3720, %v3844
        %v3923 = vmul.f32 %v3722, %v3840
        %v3924 = vmul.f32 %v3724, %v3844
        %v3925 = vmul.f32 %v3726, %v3848
        %v3926 = vmul.f32 %v3728, %v3852
        %v3927 = vmul.f32 %v3730, %v3848
        %v3928 = vmul.f32 %v3732, %v3852
        %v3929 = vmul.f32 %v3734, %v3848
        %v3930 = vmul.f32 %v3736, %v3852
        %v3931 = vmul.f32 %v3738, %v3848
        %v3932 = vmul.f32 %v3740, %v3852
        %v3933 = vmul.f32 %v3742, %v3856
        %v3934 = vmul.f32 %v3744, %v3860
        %v3935 = vmul.f32 %v3746, %v3856
        %v3936 = vmul.f32 %v3748, %v3860
        %v3937 = vmul.f32 %v3750, %v3856
        %v3938 = vmul.f32 %v3752, %v3860
        %v3939 = vmul.f32 %v3754, %v3856
        %v3940 = vmul.f32 %v3756, %v3860
        %v3941 = vmul.f32 %v3758, %v3864
        %v3942 = vmul.f32 %v3760, %v3868
        %v3943 = vmul.f32 %v3762, %v3864
        %v3944 = vmul.f32 %v3764, %v3868
        %v3945 = vmul.f32 %v3766, %v3864
        %v3946 = vmul.f32 %v3768, %v3868
        %v3947 = vmul.f32 %v3770, %v3864
        %v3948 = vmul.f32 %v3772, %v3868
        %v3949 = vmul.f32 %v3774, %v3872
        %v3950 = vmul.f32 %v3776, %v3876
        %v3951 = vmul.f32 %v3778, %v3872
        %v3952 = vmul.f32 %v3780, %v3876
        %v3953 = vmul.f32 %v3782, %v3872
        %v3954 = vmul.f32 %v3784, %v3876
        %v3955 = vmul.f32 %v3786, %v3872
        %v3956 = vmul.f32 %v3788, %v3876
        %v3957 = vmul.f32 %v3790, %v3880
        %v3958 = vmul.f32 %v3792, %v3884
        %v3959 = vmul.f32 %v3794, %v3880
        %v3960 = vmul.f32 %v3796, %v3884
        %v3961 = vmul.f32 %v3798, %v3880
        %v3962 = vmul.f32 %v3800, %v3884
        %v3963 = vmul.f32 %v3802, %v3880
        %v3964 = vmul.f32 %v3804, %v3884
        %v3965 = vpack.c.bf16 %v3903, %v3901
        %v3966 = vpack.c.bf16 %v3904, %v3902
        %v3967 = vpack.c.bf16 %v3907, %v3905
        %v3968 = vpack.c.bf16 %v3908, %v3906
        %v3969 = vpack.c.bf16 %v3911, %v3909
        %v3970 = vpack.c.bf16 %v3912, %v3910
        %v3971 = vpack.c.bf16 %v3915, %v3913
        %v3972 = vpack.c.bf16 %v3916, %v3914
        %v3973 = vpack.c.bf16 %v3919, %v3917
        %v3974 = vpack.c.bf16 %v3920, %v3918
        %v3975 = vpack.c.bf16 %v3923, %v3921
        %v3976 = vpack.c.bf16 %v3924, %v3922
        %v3977 = vpack.c.bf16 %v3927, %v3925
        %v3978 = vpack.c.bf16 %v3928, %v3926
        %v3979 = vpack.c.bf16 %v3931, %v3929
        %v3980 = vpack.c.bf16 %v3932, %v3930
        %v3981 = vpack.c.bf16 %v3935, %v3933
        %v3982 = vpack.c.bf16 %v3936, %v3934
        %v3983 = vpack.c.bf16 %v3939, %v3937
        %v3984 = vpack.c.bf16 %v3940, %v3938
        %v3985 = vpack.c.bf16 %v3943, %v3941
        %v3986 = vpack.c.bf16 %v3944, %v3942
        %v3987 = vpack.c.bf16 %v3947, %v3945
        %v3988 = vpack.c.bf16 %v3948, %v3946
        %v3989 = vpack.c.bf16 %v3951, %v3949
        %v3990 = vpack.c.bf16 %v3952, %v3950
        %v3991 = vpack.c.bf16 %v3955, %v3953
        %v3992 = vpack.c.bf16 %v3956, %v3954
        %v3993 = vpack.c.bf16 %v3959, %v3957
        %v3994 = vpack.c.bf16 %v3960, %v3958
        %v3995 = vpack.c.bf16 %v3963, %v3961
        %v3996 = vpack.c.bf16 %v3964, %v3962
        %v3997 = vld [vmem:[%s12] sm:$0xf]
        %v3998 = vld [vmem:[%s12 + $0x4] sm:$0xf]
        %v3999 = vld [vmem:[%s12 + $0x8] sm:$0xf]
        %v4000 = vld [vmem:[%s12 + $0xc] sm:$0xf]
        %v4001 = vld [vmem:[%s12 + $0x10] sm:$0xf]
        %v4002 = vld [vmem:[%s12 + $0x14] sm:$0xf]
        %v4003 = vld [vmem:[%s12 + $0x18] sm:$0xf]
        %v4004 = vld [vmem:[%s12 + $0x1c] sm:$0xf]
        %v4005 = vld [vmem:[%s12 + $0x20] sm:$0xf]
        %v4006 = vld [vmem:[%s12 + $0x24] sm:$0xf]
        %v4007 = vld [vmem:[%s12 + $0x28] sm:$0xf]
        %v4008 = vld [vmem:[%s12 + $0x2c] sm:$0xf]
        %v4009 = vld [vmem:[%s12 + $0x30] sm:$0xf]
        %v4010 = vld [vmem:[%s12 + $0x34] sm:$0xf]
        %v4011 = vld [vmem:[%s12 + $0x38] sm:$0xf]
        %v4012 = vld [vmem:[%s12 + $0x3c] sm:$0xf]
        %v4013 = vld [vmem:[%s12 + $0x40] sm:$0xf]
        %v4014 = vld [vmem:[%s12 + $0x44] sm:$0xf]
        %v4015 = vld [vmem:[%s12 + $0x48] sm:$0xf]
        %v4016 = vld [vmem:[%s12 + $0x4c] sm:$0xf]
        %v4017 = vld [vmem:[%s12 + $0x50] sm:$0xf]
        %v4018 = vld [vmem:[%s12 + $0x54] sm:$0xf]
        %v4019 = vld [vmem:[%s12 + $0x58] sm:$0xf]
        %v4020 = vld [vmem:[%s12 + $0x5c] sm:$0xf]
        %v4021 = vld [vmem:[%s12 + $0x60] sm:$0xf]
        %v4022 = vld [vmem:[%s12 + $0x64] sm:$0xf]
        %v4023 = vld [vmem:[%s12 + $0x68] sm:$0xf]
        %v4024 = vld [vmem:[%s12 + $0x6c] sm:$0xf]
        %v4025 = vld [vmem:[%s12 + $0x70] sm:$0xf]
        %v4026 = vld [vmem:[%s12 + $0x74] sm:$0xf]
        %v4027 = vld [vmem:[%s12 + $0x78] sm:$0xf]
        %v4028 = vld [vmem:[%s12 + $0x7c] sm:$0xf]
        %v4061 = vunpack.c.l.b16 %v3997
        %v4062 = vunpack.c.l.b16 %v3998
        %v4063 = vunpack.c.l.b16 %v3999
        %v4064 = vunpack.c.l.b16 %v4000
        %v4065 = vunpack.c.l.b16 %v4001
        %v4066 = vunpack.c.l.b16 %v4002
        %v4067 = vunpack.c.l.b16 %v4003
        %v4068 = vunpack.c.l.b16 %v4004
        %v4069 = vunpack.c.l.b16 %v4005
        %v4070 = vunpack.c.l.b16 %v4006
        %v4071 = vunpack.c.l.b16 %v4007
        %v4072 = vunpack.c.l.b16 %v4008
        %v4073 = vunpack.c.l.b16 %v4009
        %v4074 = vunpack.c.l.b16 %v4010
        %v4075 = vunpack.c.l.b16 %v4011
        %v4076 = vunpack.c.l.b16 %v4012
        %v4077 = vunpack.c.l.b16 %v4013
        %v4078 = vunpack.c.l.b16 %v4014
        %v4079 = vunpack.c.l.b16 %v4015
        %v4080 = vunpack.c.l.b16 %v4016
        %v4081 = vunpack.c.l.b16 %v4017
        %v4082 = vunpack.c.l.b16 %v4018
        %v4083 = vunpack.c.l.b16 %v4019
        %v4084 = vunpack.c.l.b16 %v4020
        %v4085 = vunpack.c.l.b16 %v4021
        %v4086 = vunpack.c.l.b16 %v4022
        %v4087 = vunpack.c.l.b16 %v4023
        %v4088 = vunpack.c.l.b16 %v4024
        %v4089 = vunpack.c.l.b16 %v4025
        %v4090 = vunpack.c.l.b16 %v4026
        %v4091 = vunpack.c.l.b16 %v4027
        %v4092 = vunpack.c.l.b16 %v4028
        %v4093 = vpack.c.b16 %v4062, %v4061
        %v4094 = vpack.c.b16 %v4064, %v4063
        %v4095 = vpack.c.b16 %v4066, %v4065
        %v4096 = vpack.c.b16 %v4068, %v4067
        %v4097 = vpack.c.b16 %v4070, %v4069
        %v4098 = vpack.c.b16 %v4072, %v4071
        %v4099 = vpack.c.b16 %v4074, %v4073
        %v4100 = vpack.c.b16 %v4076, %v4075
        %v4101 = vpack.c.b16 %v4078, %v4077
        %v4102 = vpack.c.b16 %v4080, %v4079
        %v4103 = vpack.c.b16 %v4082, %v4081
        %v4104 = vpack.c.b16 %v4084, %v4083
        %v4105 = vpack.c.b16 %v4086, %v4085
        %v4106 = vpack.c.b16 %v4088, %v4087
        %v4107 = vpack.c.b16 %v4090, %v4089
        %v4108 = vpack.c.b16 %v4092, %v4091
        %4125 = vmatprep.subr.bf16.mxu0 0
        %4126 = vmatpush1.bf16.msra.mxu0 %v4093
        %4127 = vmatprep.subr.bf16.mxu0 0
        %4128 = vmatpush1.bf16.msra.mxu0 %v4094
        %4129 = vmatprep.subr.bf16.mxu0 0
        %4130 = vmatpush1.bf16.msra.mxu0 %v4095
        %4131 = vmatprep.subr.bf16.mxu0 0
        %4132 = vmatpush1.bf16.msra.mxu0 %v4096
        %4133 = vmatprep.subr.bf16.mxu0 0
        %4134 = vmatpush1.bf16.msra.mxu0 %v4097
        %4135 = vmatprep.subr.bf16.mxu0 0
        %4136 = vmatpush1.bf16.msra.mxu0 %v4098
        %4137 = vmatprep.subr.bf16.mxu0 0
        %4138 = vmatpush1.bf16.msra.mxu0 %v4099
        %4139 = vmatprep.subr.bf16.mxu0 0
        %4140 = vmatpush1.bf16.msra.mxu0 %v4100
        %4141 = vmatprep.subr.bf16.mxu0 0
        %4142 = vmatpush1.bf16.msra.mxu0 %v4101
        %4143 = vmatprep.subr.bf16.mxu0 0
        %4144 = vmatpush1.bf16.msra.mxu0 %v4102
        %4145 = vmatprep.subr.bf16.mxu0 0
        %4146 = vmatpush1.bf16.msra.mxu0 %v4103
        %4147 = vmatprep.subr.bf16.mxu0 0
        %4148 = vmatpush1.bf16.msra.mxu0 %v4104
        %4149 = vmatprep.subr.bf16.mxu0 0
        %4150 = vmatpush1.bf16.msra.mxu0 %v4105
        %4151 = vmatprep.subr.bf16.mxu0 0
        %4152 = vmatpush1.bf16.msra.mxu0 %v4106
        %4153 = vmatprep.subr.bf16.mxu0 0
        %4154 = vmatpush1.bf16.msra.mxu0 %v4107
        %4155 = vmatprep.subr.bf16.mxu0 0
        %4156 = vmatpush1.bf16.msra.mxu0 %v4108
        %4157 = vmatprep.mubr.bf16.mxu0 %v3966
        %4158 = vmatmul.mubr.bf16.gmra.mrb[0].mxu0 %v3965
        %v4159 = vpop.f32.mrb[0].mxu0
        %v4160 = vadd.f32 1e-20, %v4159
        %v4161 = vpop.f32.mrb[0].mxu0
        %v4162 = vpop.f32.mrb[0].mxu0
        %v4163 = vadd.f32 1e-20, %v4162
        %v4164 = vpop.f32.mrb[0].mxu0
        %4165 = vmatprep.mubr.bf16.mxu0 %v3968
        %4166 = vmatmul.mubr.bf16.gmra.mrb[0].mxu0 %v3967
        %v4167 = vpop.f32.mrb[0].mxu0
        %v4168 = vadd.f32 1e-20, %v4167
        %v4169 = vpop.f32.mrb[0].mxu0
        %v4170 = vpop.f32.mrb[0].mxu0
        %v4171 = vadd.f32 1e-20, %v4170
        %v4172 = vpop.f32.mrb[0].mxu0
        %4173 = vmatprep.mubr.bf16.mxu0 %v3970
        %4174 = vmatmul.mubr.bf16.gmra.mrb[0].mxu0 %v3969
        %v4175 = vpop.f32.mrb[0].mxu0
        %v4176 = vadd.f32 1e-20, %v4175
        %v4177 = vpop.f32.mrb[0].mxu0
        %v4178 = vpop.f32.mrb[0].mxu0
        %v4179 = vadd.f32 1e-20, %v4178
        %v4180 = vpop.f32.mrb[0].mxu0
        %4181 = vmatprep.mubr.bf16.mxu0 %v3972
        %4182 = vmatmul.mubr.bf16.gmra.mrb[0].mxu0 %v3971
        %v4183 = vpop.f32.mrb[0].mxu0
        %v4184 = vadd.f32 1e-20, %v4183
        %v4185 = vpop.f32.mrb[0].mxu0
        %v4186 = vpop.f32.mrb[0].mxu0
        %v4187 = vadd.f32 1e-20, %v4186
        %v4188 = vpop.f32.mrb[0].mxu0
        %4189 = vmatprep.mubr.bf16.mxu0 %v3974
        %4190 = vmatmul.mubr.bf16.gmra.mrb[0].mxu0 %v3973
        %v4191 = vpop.f32.mrb[0].mxu0
        %v4192 = vadd.f32 1e-20, %v4191
        %v4193 = vpop.f32.mrb[0].mxu0
        %v4194 = vpop.f32.mrb[0].mxu0
        %v4195 = vadd.f32 1e-20, %v4194
        %v4196 = vpop.f32.mrb[0].mxu0
        %4197 = vmatprep.mubr.bf16.mxu0 %v3976
        %4198 = vmatmul.mubr.bf16.gmra.mrb[0].mxu0 %v3975
        %v4199 = vpop.f32.mrb[0].mxu0
        %v4200 = vadd.f32 1e-20, %v4199
        %v4201 = vpop.f32.mrb[0].mxu0
        %v4202 = vpop.f32.mrb[0].mxu0
        %v4203 = vadd.f32 1e-20, %v4202
        %v4204 = vpop.f32.mrb[0].mxu0
        %4205 = vmatprep.mubr.bf16.mxu0 %v3978
        %4206 = vmatmul.mubr.bf16.gmra.mrb[0].mxu0 %v3977
        %v4207 = vpop.f32.mrb[0].mxu0
        %v4208 = vadd.f32 1e-20, %v4207
        %v4209 = vpop.f32.mrb[0].mxu0
        %v4210 = vpop.f32.mrb[0].mxu0
        %v4211 = vadd.f32 1e-20, %v4210
        %v4212 = vpop.f32.mrb[0].mxu0
        %4213 = vmatprep.mubr.bf16.mxu0 %v3980
        %4214 = vmatmul.mubr.bf16.gmra.mrb[0].mxu0 %v3979
        %v4215 = vpop.f32.mrb[0].mxu0
        %v4216 = vadd.f32 1e-20, %v4215
        %v4217 = vpop.f32.mrb[0].mxu0
        %v4218 = vpop.f32.mrb[0].mxu0
        %v4219 = vadd.f32 1e-20, %v4218
        %v4220 = vpop.f32.mrb[0].mxu0
        %4221 = vmatprep.mubr.bf16.mxu0 %v3982
        %4222 = vmatmul.mubr.bf16.gmra.mrb[0].mxu0 %v3981
        %v4223 = vpop.f32.mrb[0].mxu0
        %v4224 = vadd.f32 1e-20, %v4223
        %v4225 = vpop.f32.mrb[0].mxu0
        %v4226 = vpop.f32.mrb[0].mxu0
        %v4227 = vadd.f32 1e-20, %v4226
        %v4228 = vpop.f32.mrb[0].mxu0
        %4229 = vmatprep.mubr.bf16.mxu0 %v3984
        %4230 = vmatmul.mubr.bf16.gmra.mrb[0].mxu0 %v3983
        %v4231 = vpop.f32.mrb[0].mxu0
        %v4232 = vadd.f32 1e-20, %v4231
        %v4233 = vpop.f32.mrb[0].mxu0
        %v4234 = vpop.f32.mrb[0].mxu0
        %v4235 = vadd.f32 1e-20, %v4234
        %v4236 = vpop.f32.mrb[0].mxu0
        %4237 = vmatprep.mubr.bf16.mxu0 %v3986
        %4238 = vmatmul.mubr.bf16.gmra.mrb[0].mxu0 %v3985
        %v4239 = vpop.f32.mrb[0].mxu0
        %v4240 = vadd.f32 1e-20, %v4239
        %v4241 = vpop.f32.mrb[0].mxu0
        %v4242 = vpop.f32.mrb[0].mxu0
        %v4243 = vadd.f32 1e-20, %v4242
        %v4244 = vpop.f32.mrb[0].mxu0
        %4245 = vmatprep.mubr.bf16.mxu0 %v3988
        %4246 = vmatmul.mubr.bf16.gmra.mrb[0].mxu0 %v3987
        %v4247 = vpop.f32.mrb[0].mxu0
        %v4248 = vadd.f32 1e-20, %v4247
        %v4249 = vpop.f32.mrb[0].mxu0
        %v4250 = vpop.f32.mrb[0].mxu0
        %v4251 = vadd.f32 1e-20, %v4250
        %v4252 = vpop.f32.mrb[0].mxu0
        %4253 = vmatprep.mubr.bf16.mxu0 %v3990
        %4254 = vmatmul.mubr.bf16.gmra.mrb[0].mxu0 %v3989
        %v4255 = vpop.f32.mrb[0].mxu0
        %v4256 = vadd.f32 1e-20, %v4255
        %v4257 = vpop.f32.mrb[0].mxu0
        %v4258 = vpop.f32.mrb[0].mxu0
        %v4259 = vadd.f32 1e-20, %v4258
        %v4260 = vpop.f32.mrb[0].mxu0
        %4261 = vmatprep.mubr.bf16.mxu0 %v3992
        %4262 = vmatmul.mubr.bf16.gmra.mrb[0].mxu0 %v3991
        %v4263 = vpop.f32.mrb[0].mxu0
        %v4264 = vadd.f32 1e-20, %v4263
        %v4265 = vpop.f32.mrb[0].mxu0
        %v4266 = vpop.f32.mrb[0].mxu0
        %v4267 = vadd.f32 1e-20, %v4266
        %v4268 = vpop.f32.mrb[0].mxu0
        %4269 = vmatprep.mubr.bf16.mxu0 %v3994
        %4270 = vmatmul.mubr.bf16.gmra.mrb[0].mxu0 %v3993
        %v4271 = vpop.f32.mrb[0].mxu0
        %v4272 = vadd.f32 1e-20, %v4271
        %v4273 = vpop.f32.mrb[0].mxu0
        %v4274 = vpop.f32.mrb[0].mxu0
        %v4275 = vadd.f32 1e-20, %v4274
        %v4276 = vpop.f32.mrb[0].mxu0
        %4277 = vmatprep.mubr.bf16.mxu0 %v3996
        %4278 = vmatmul.mubr.bf16.gmra.mrb[0].mxu0 %v3995
        %v4279 = vpop.f32.mrb[0].mxu0
        %v4280 = vadd.f32 1e-20, %v4279
        %v4281 = vpop.f32.mrb[0].mxu0
        %v4282 = vpop.f32.mrb[0].mxu0
        %v4283 = vadd.f32 1e-20, %v4282
        %v4284 = vpop.f32.mrb[0].mxu0
        %4285 = vdwg.mxu0
        %v4286 = vrcp.pop %v4160
        %v4287 = vmul.f32 1.0, %v4286
        %v4288 = vrcp.pop %v4163
        %v4289 = vmul.f32 1.0, %v4288
        %v4290 = vrcp.pop %v4168
        %v4291 = vmul.f32 1.0, %v4290
        %v4292 = vrcp.pop %v4171
        %v4293 = vmul.f32 1.0, %v4292
        %v4294 = vrcp.pop %v4176
        %v4295 = vmul.f32 1.0, %v4294
        %v4296 = vrcp.pop %v4179
        %v4297 = vmul.f32 1.0, %v4296
        %v4298 = vrcp.pop %v4184
        %v4299 = vmul.f32 1.0, %v4298
        %v4300 = vrcp.pop %v4187
        %v4301 = vmul.f32 1.0, %v4300
        %v4302 = vrcp.pop %v4192
        %v4303 = vmul.f32 1.0, %v4302
        %v4304 = vrcp.pop %v4195
        %v4305 = vmul.f32 1.0, %v4304
        %v4306 = vrcp.pop %v4200
        %v4307 = vmul.f32 1.0, %v4306
        %v4308 = vrcp.pop %v4203
        %v4309 = vmul.f32 1.0, %v4308
        %v4310 = vrcp.pop %v4208
        %v4311 = vmul.f32 1.0, %v4310
        %v4312 = vrcp.pop %v4211
        %v4313 = vmul.f32 1.0, %v4312
        %v4314 = vrcp.pop %v4216
        %v4315 = vmul.f32 1.0, %v4314
        %v4316 = vrcp.pop %v4219
        %v4317 = vmul.f32 1.0, %v4316
        %v4318 = vrcp.pop %v4224
        %v4319 = vmul.f32 1.0, %v4318
        %v4320 = vrcp.pop %v4227
        %v4321 = vmul.f32 1.0, %v4320
        %v4322 = vrcp.pop %v4232
        %v4323 = vmul.f32 1.0, %v4322
        %v4324 = vrcp.pop %v4235
        %v4325 = vmul.f32 1.0, %v4324
        %v4326 = vrcp.pop %v4240
        %v4327 = vmul.f32 1.0, %v4326
        %v4328 = vrcp.pop %v4243
        %v4329 = vmul.f32 1.0, %v4328
        %v4330 = vrcp.pop %v4248
        %v4331 = vmul.f32 1.0, %v4330
        %v4332 = vrcp.pop %v4251
        %v4333 = vmul.f32 1.0, %v4332
        %v4334 = vrcp.pop %v4256
        %v4335 = vmul.f32 1.0, %v4334
        %v4336 = vrcp.pop %v4259
        %v4337 = vmul.f32 1.0, %v4336
        %v4338 = vrcp.pop %v4264
        %v4339 = vmul.f32 1.0, %v4338
        %v4340 = vrcp.pop %v4267
        %v4341 = vmul.f32 1.0, %v4340
        %v4342 = vrcp.pop %v4272
        %v4343 = vmul.f32 1.0, %v4342
        %v4344 = vrcp.pop %v4275
        %v4345 = vmul.f32 1.0, %v4344
        %v4346 = vrcp.pop %v4280
        %v4347 = vmul.f32 1.0, %v4346
        %v4348 = vrcp.pop %v4283
        %v4349 = vmul.f32 1.0, %v4348
        %4350 = vmatprep.subr.bf16.mxu0 0
        %4351 = vmatpush1.bf16.msra.mxu0 %v3045
        %4352 = vmatprep.subr.bf16.mxu0 0
        %4353 = vmatpush1.bf16.msra.mxu0 %v3046
        %4354 = vmatprep.subr.bf16.mxu0 0
        %4355 = vmatpush1.bf16.msra.mxu0 %v3047
        %4356 = vmatprep.subr.bf16.mxu0 0
        %4357 = vmatpush1.bf16.msra.mxu0 %v3048
        %4358 = vmatprep.subr.bf16.mxu0 0
        %4359 = vmatpush1.bf16.msra.mxu0 %v3049
        %4360 = vmatprep.subr.bf16.mxu0 0
        %4361 = vmatpush1.bf16.msra.mxu0 %v3050
        %4362 = vmatprep.subr.bf16.mxu0 0
        %4363 = vmatpush1.bf16.msra.mxu0 %v3051
        %4364 = vmatprep.subr.bf16.mxu0 0
        %4365 = vmatpush1.bf16.msra.mxu0 %v3052
        %4366 = vmatprep.subr.bf16.mxu0 0
        %4367 = vmatpush1.bf16.msra.mxu0 %v3053
        %4368 = vmatprep.subr.bf16.mxu0 0
        %4369 = vmatpush1.bf16.msra.mxu0 %v3054
        %4370 = vmatprep.subr.bf16.mxu0 0
        %4371 = vmatpush1.bf16.msra.mxu0 %v3055
        %4372 = vmatprep.subr.bf16.mxu0 0
        %4373 = vmatpush1.bf16.msra.mxu0 %v3056
        %4374 = vmatprep.subr.bf16.mxu0 0
        %4375 = vmatpush1.bf16.msra.mxu0 %v3057
        %4376 = vmatprep.subr.bf16.mxu0 0
        %4377 = vmatpush1.bf16.msra.mxu0 %v3058
        %4378 = vmatprep.subr.bf16.mxu0 0
        %4379 = vmatpush1.bf16.msra.mxu0 %v3059
        %4380 = vmatprep.subr.bf16.mxu0 0
        %4381 = vmatpush1.bf16.msra.mxu0 %v3060
        %4382 = vmatprep.mubr.bf16.mxu0 %v3966
        %4383 = vmatmul.mubr.bf16.gmra.mrb[0].mxu0 %v3965
        %v4384 = vpop.f32.mrb[0].mxu0
        %v4385 = vadd.f32 0.0, %v4384
        %v4386 = vpop.f32.mrb[0].mxu0
        %v4387 = vpop.f32.mrb[0].mxu0
        %v4388 = vadd.f32 0.0, %v4387
        %v4389 = vpop.f32.mrb[0].mxu0
        %4390 = vmatprep.mubr.bf16.mxu0 %v3968
        %4391 = vmatmul.mubr.bf16.gmra.mrb[0].mxu0 %v3967
        %v4392 = vpop.f32.mrb[0].mxu0
        %v4393 = vadd.f32 0.0, %v4392
        %v4394 = vpop.f32.mrb[0].mxu0
        %v4395 = vpop.f32.mrb[0].mxu0
        %v4396 = vadd.f32 0.0, %v4395
        %v4397 = vpop.f32.mrb[0].mxu0
        %4398 = vdwg.mxu0
        %4399 = vmatprep.subr.bf16.mxu0 0
        %4400 = vmatpush1.bf16.msra.mxu0 %v3061
        %4401 = vmatprep.subr.bf16.mxu0 0
        %4402 = vmatpush1.bf16.msra.mxu0 %v3062
        %4403 = vmatprep.subr.bf16.mxu0 0
        %4404 = vmatpush1.bf16.msra.mxu0 %v3063
        %4405 = vmatprep.subr.bf16.mxu0 0
        %4406 = vmatpush1.bf16.msra.mxu0 %v3064
        %4407 = vmatprep.subr.bf16.mxu0 0
        %4408 = vmatpush1.bf16.msra.mxu0 %v3065
        %4409 = vmatprep.subr.bf16.mxu0 0
        %4410 = vmatpush1.bf16.msra.mxu0 %v3066
        %4411 = vmatprep.subr.bf16.mxu0 0
        %4412 = vmatpush1.bf16.msra.mxu0 %v3067
        %4413 = vmatprep.subr.bf16.mxu0 0
        %4414 = vmatpush1.bf16.msra.mxu0 %v3068
        %4415 = vmatprep.subr.bf16.mxu0 0
        %4416 = vmatpush1.bf16.msra.mxu0 %v3069
        %4417 = vmatprep.subr.bf16.mxu0 0
        %4418 = vmatpush1.bf16.msra.mxu0 %v3070
        %4419 = vmatprep.subr.bf16.mxu0 0
        %4420 = vmatpush1.bf16.msra.mxu0 %v3071
        %4421 = vmatprep.subr.bf16.mxu0 0
        %4422 = vmatpush1.bf16.msra.mxu0 %v3072
        %4423 = vmatprep.subr.bf16.mxu0 0
        %4424 = vmatpush1.bf16.msra.mxu0 %v3073
        %4425 = vmatprep.subr.bf16.mxu0 0
        %4426 = vmatpush1.bf16.msra.mxu0 %v3074
        %4427 = vmatprep.subr.bf16.mxu0 0
        %4428 = vmatpush1.bf16.msra.mxu0 %v3075
        %4429 = vmatprep.subr.bf16.mxu0 0
        %4430 = vmatpush1.bf16.msra.mxu0 %v3076
        %4431 = vmatprep.mubr.bf16.mxu0 %v3970
        %4432 = vmatmul.mubr.bf16.gmra.mrb[0].mxu0 %v3969
        %v4433 = vpop.f32.mrb[0].mxu0
        %v4434 = vadd.f32 0.0, %v4433
        %v4435 = vpop.f32.mrb[0].mxu0
        %v4436 = vpop.f32.mrb[0].mxu0
        %v4437 = vadd.f32 0.0, %v4436
        %v4438 = vpop.f32.mrb[0].mxu0
        %4439 = vmatprep.mubr.bf16.mxu0 %v3972
        %4440 = vmatmul.mubr.bf16.gmra.mrb[0].mxu0 %v3971
        %v4441 = vpop.f32.mrb[0].mxu0
        %v4442 = vadd.f32 0.0, %v4441
        %v4443 = vpop.f32.mrb[0].mxu0
        %v4444 = vpop.f32.mrb[0].mxu0
        %v4445 = vadd.f32 0.0, %v4444
        %v4446 = vpop.f32.mrb[0].mxu0
        %4447 = vdwg.mxu0
        %4448 = vmatprep.subr.bf16.mxu0 0
        %4449 = vmatpush1.bf16.msra.mxu0 %v3077
        %4450 = vmatprep.subr.bf16.mxu0 0
        %4451 = vmatpush1.bf16.msra.mxu0 %v3078
        %4452 = vmatprep.subr.bf16.mxu0 0
        %4453 = vmatpush1.bf16.msra.mxu0 %v3079
        %4454 = vmatprep.subr.bf16.mxu0 0
        %4455 = vmatpush1.bf16.msra.mxu0 %v3080
        %4456 = vmatprep.subr.bf16.mxu0 0
        %4457 = vmatpush1.bf16.msra.mxu0 %v3081
        %4458 = vmatprep.subr.bf16.mxu0 0
        %4459 = vmatpush1.bf16.msra.mxu0 %v3082
        %4460 = vmatprep.subr.bf16.mxu0 0
        %4461 = vmatpush1.bf16.msra.mxu0 %v3083
        %4462 = vmatprep.subr.bf16.mxu0 0
        %4463 = vmatpush1.bf16.msra.mxu0 %v3084
        %4464 = vmatprep.subr.bf16.mxu0 0
        %4465 = vmatpush1.bf16.msra.mxu0 %v3085
        %4466 = vmatprep.subr.bf16.mxu0 0
        %4467 = vmatpush1.bf16.msra.mxu0 %v3086
        %4468 = vmatprep.subr.bf16.mxu0 0
        %4469 = vmatpush1.bf16.msra.mxu0 %v3087
        %4470 = vmatprep.subr.bf16.mxu0 0
        %4471 = vmatpush1.bf16.msra.mxu0 %v3088
        %4472 = vmatprep.subr.bf16.mxu0 0
        %4473 = vmatpush1.bf16.msra.mxu0 %v3089
        %4474 = vmatprep.subr.bf16.mxu0 0
        %4475 = vmatpush1.bf16.msra.mxu0 %v3090
        %4476 = vmatprep.subr.bf16.mxu0 0
        %4477 = vmatpush1.bf16.msra.mxu0 %v3091
        %4478 = vmatprep.subr.bf16.mxu0 0
        %4479 = vmatpush1.bf16.msra.mxu0 %v3092
        %4480 = vmatprep.mubr.bf16.mxu0 %v3974
        %4481 = vmatmul.mubr.bf16.gmra.mrb[0].mxu0 %v3973
        %v4482 = vpop.f32.mrb[0].mxu0
        %v4483 = vadd.f32 0.0, %v4482
        %v4484 = vpop.f32.mrb[0].mxu0
        %v4485 = vpop.f32.mrb[0].mxu0
        %v4486 = vadd.f32 0.0, %v4485
        %v4487 = vpop.f32.mrb[0].mxu0
        %4488 = vmatprep.mubr.bf16.mxu0 %v3976
        %4489 = vmatmul.mubr.bf16.gmra.mrb[0].mxu0 %v3975
        %v4490 = vpop.f32.mrb[0].mxu0
        %v4491 = vadd.f32 0.0, %v4490
        %v4492 = vpop.f32.mrb[0].mxu0
        %v4493 = vpop.f32.mrb[0].mxu0
        %v4494 = vadd.f32 0.0, %v4493
        %v4495 = vpop.f32.mrb[0].mxu0
        %4496 = vdwg.mxu0
        %4497 = vmatprep.subr.bf16.mxu0 0
        %4498 = vmatpush1.bf16.msra.mxu0 %v3093
        %4499 = vmatprep.subr.bf16.mxu0 0
        %4500 = vmatpush1.bf16.msra.mxu0 %v3094
        %4501 = vmatprep.subr.bf16.mxu0 0
        %4502 = vmatpush1.bf16.msra.mxu0 %v3095
        %4503 = vmatprep.subr.bf16.mxu0 0
        %4504 = vmatpush1.bf16.msra.mxu0 %v3096
        %4505 = vmatprep.subr.bf16.mxu0 0
        %4506 = vmatpush1.bf16.msra.mxu0 %v3097
        %4507 = vmatprep.subr.bf16.mxu0 0
        %4508 = vmatpush1.bf16.msra.mxu0 %v3098
        %4509 = vmatprep.subr.bf16.mxu0 0
        %4510 = vmatpush1.bf16.msra.mxu0 %v3099
        %4511 = vmatprep.subr.bf16.mxu0 0
        %4512 = vmatpush1.bf16.msra.mxu0 %v3100
        %4513 = vmatprep.subr.bf16.mxu0 0
        %4514 = vmatpush1.bf16.msra.mxu0 %v3101
        %4515 = vmatprep.subr.bf16.mxu0 0
        %4516 = vmatpush1.bf16.msra.mxu0 %v3102
        %4517 = vmatprep.subr.bf16.mxu0 0
        %4518 = vmatpush1.bf16.msra.mxu0 %v3103
        %4519 = vmatprep.subr.bf16.mxu0 0
        %4520 = vmatpush1.bf16.msra.mxu0 %v3104
        %4521 = vmatprep.subr.bf16.mxu0 0
        %4522 = vmatpush1.bf16.msra.mxu0 %v3105
        %4523 = vmatprep.subr.bf16.mxu0 0
        %4524 = vmatpush1.bf16.msra.mxu0 %v3106
        %4525 = vmatprep.subr.bf16.mxu0 0
        %4526 = vmatpush1.bf16.msra.mxu0 %v3107
        %4527 = vmatprep.subr.bf16.mxu0 0
        %4528 = vmatpush1.bf16.msra.mxu0 %v3108
        %4529 = vmatprep.mubr.bf16.mxu0 %v3978
        %4530 = vmatmul.mubr.bf16.gmra.mrb[0].mxu0 %v3977
        %v4531 = vpop.f32.mrb[0].mxu0
        %v4532 = vadd.f32 0.0, %v4531
        %v4533 = vpop.f32.mrb[0].mxu0
        %v4534 = vpop.f32.mrb[0].mxu0
        %v4535 = vadd.f32 0.0, %v4534
        %v4536 = vpop.f32.mrb[0].mxu0
        %4537 = vmatprep.mubr.bf16.mxu0 %v3980
        %4538 = vmatmul.mubr.bf16.gmra.mrb[0].mxu0 %v3979
        %v4539 = vpop.f32.mrb[0].mxu0
        %v4540 = vadd.f32 0.0, %v4539
        %v4541 = vpop.f32.mrb[0].mxu0
        %v4542 = vpop.f32.mrb[0].mxu0
        %v4543 = vadd.f32 0.0, %v4542
        %v4544 = vpop.f32.mrb[0].mxu0
        %4545 = vdwg.mxu0
        %4546 = vmatprep.subr.bf16.mxu0 0
        %4547 = vmatpush1.bf16.msra.mxu0 %v3109
        %4548 = vmatprep.subr.bf16.mxu0 0
        %4549 = vmatpush1.bf16.msra.mxu0 %v3110
        %4550 = vmatprep.subr.bf16.mxu0 0
        %4551 = vmatpush1.bf16.msra.mxu0 %v3111
        %4552 = vmatprep.subr.bf16.mxu0 0
        %4553 = vmatpush1.bf16.msra.mxu0 %v3112
        %4554 = vmatprep.subr.bf16.mxu0 0
        %4555 = vmatpush1.bf16.msra.mxu0 %v3113
        %4556 = vmatprep.subr.bf16.mxu0 0
        %4557 = vmatpush1.bf16.msra.mxu0 %v3114
        %4558 = vmatprep.subr.bf16.mxu0 0
        %4559 = vmatpush1.bf16.msra.mxu0 %v3115
        %4560 = vmatprep.subr.bf16.mxu0 0
        %4561 = vmatpush1.bf16.msra.mxu0 %v3116
        %4562 = vmatprep.subr.bf16.mxu0 0
        %4563 = vmatpush1.bf16.msra.mxu0 %v3117
        %4564 = vmatprep.subr.bf16.mxu0 0
        %4565 = vmatpush1.bf16.msra.mxu0 %v3118
        %4566 = vmatprep.subr.bf16.mxu0 0
        %4567 = vmatpush1.bf16.msra.mxu0 %v3119
        %4568 = vmatprep.subr.bf16.mxu0 0
        %4569 = vmatpush1.bf16.msra.mxu0 %v3120
        %4570 = vmatprep.subr.bf16.mxu0 0
        %4571 = vmatpush1.bf16.msra.mxu0 %v3121
        %4572 = vmatprep.subr.bf16.mxu0 0
        %4573 = vmatpush1.bf16.msra.mxu0 %v3122
        %4574 = vmatprep.subr.bf16.mxu0 0
        %4575 = vmatpush1.bf16.msra.mxu0 %v3123
        %4576 = vmatprep.subr.bf16.mxu0 0
        %4577 = vmatpush1.bf16.msra.mxu0 %v3124
        %4578 = vmatprep.mubr.bf16.mxu0 %v3982
        %4579 = vmatmul.mubr.bf16.gmra.mrb[0].mxu0 %v3981
        %v4580 = vpop.f32.mrb[0].mxu0
        %v4581 = vadd.f32 0.0, %v4580
        %v4582 = vpop.f32.mrb[0].mxu0
        %v4583 = vpop.f32.mrb[0].mxu0
        %v4584 = vadd.f32 0.0, %v4583
        %v4585 = vpop.f32.mrb[0].mxu0
        %4586 = vmatprep.mubr.bf16.mxu0 %v3984
        %4587 = vmatmul.mubr.bf16.gmra.mrb[0].mxu0 %v3983
        %v4588 = vpop.f32.mrb[0].mxu0
        %v4589 = vadd.f32 0.0, %v4588
        %v4590 = vpop.f32.mrb[0].mxu0
        %v4591 = vpop.f32.mrb[0].mxu0
        %v4592 = vadd.f32 0.0, %v4591
        %v4593 = vpop.f32.mrb[0].mxu0
        %4594 = vdwg.mxu0
        %4595 = vmatprep.subr.bf16.mxu0 0
        %4596 = vmatpush1.bf16.msra.mxu0 %v3125
        %4597 = vmatprep.subr.bf16.mxu0 0
        %4598 = vmatpush1.bf16.msra.mxu0 %v3126
        %4599 = vmatprep.subr.bf16.mxu0 0
        %4600 = vmatpush1.bf16.msra.mxu0 %v3127
        %4601 = vmatprep.subr.bf16.mxu0 0
        %4602 = vmatpush1.bf16.msra.mxu0 %v3128
        %4603 = vmatprep.subr.bf16.mxu0 0
        %4604 = vmatpush1.bf16.msra.mxu0 %v3129
        %4605 = vmatprep.subr.bf16.mxu0 0
        %4606 = vmatpush1.bf16.msra.mxu0 %v3130
        %4607 = vmatprep.subr.bf16.mxu0 0
        %4608 = vmatpush1.bf16.msra.mxu0 %v3131
        %4609 = vmatprep.subr.bf16.mxu0 0
        %4610 = vmatpush1.bf16.msra.mxu0 %v3132
        %4611 = vmatprep.subr.bf16.mxu0 0
        %4612 = vmatpush1.bf16.msra.mxu0 %v3133
        %4613 = vmatprep.subr.bf16.mxu0 0
        %4614 = vmatpush1.bf16.msra.mxu0 %v3134
        %4615 = vmatprep.subr.bf16.mxu0 0
        %4616 = vmatpush1.bf16.msra.mxu0 %v3135
        %4617 = vmatprep.subr.bf16.mxu0 0
        %4618 = vmatpush1.bf16.msra.mxu0 %v3136
        %4619 = vmatprep.subr.bf16.mxu0 0
        %4620 = vmatpush1.bf16.msra.mxu0 %v3137
        %4621 = vmatprep.subr.bf16.mxu0 0
        %4622 = vmatpush1.bf16.msra.mxu0 %v3138
        %4623 = vmatprep.subr.bf16.mxu0 0
        %4624 = vmatpush1.bf16.msra.mxu0 %v3139
        %4625 = vmatprep.subr.bf16.mxu0 0
        %4626 = vmatpush1.bf16.msra.mxu0 %v3140
        %4627 = vmatprep.mubr.bf16.mxu0 %v3986
        %4628 = vmatmul.mubr.bf16.gmra.mrb[0].mxu0 %v3985
        %v4629 = vpop.f32.mrb[0].mxu0
        %v4630 = vadd.f32 0.0, %v4629
        %v4631 = vpop.f32.mrb[0].mxu0
        %v4632 = vpop.f32.mrb[0].mxu0
        %v4633 = vadd.f32 0.0, %v4632
        %v4634 = vpop.f32.mrb[0].mxu0
        %4635 = vmatprep.mubr.bf16.mxu0 %v3988
        %4636 = vmatmul.mubr.bf16.gmra.mrb[0].mxu0 %v3987
        %v4637 = vpop.f32.mrb[0].mxu0
        %v4638 = vadd.f32 0.0, %v4637
        %v4639 = vpop.f32.mrb[0].mxu0
        %v4640 = vpop.f32.mrb[0].mxu0
        %v4641 = vadd.f32 0.0, %v4640
        %v4642 = vpop.f32.mrb[0].mxu0
        %4643 = vdwg.mxu0
        %4644 = vmatprep.subr.bf16.mxu0 0
        %4645 = vmatpush1.bf16.msra.mxu0 %v3141
        %4646 = vmatprep.subr.bf16.mxu0 0
        %4647 = vmatpush1.bf16.msra.mxu0 %v3142
        %4648 = vmatprep.subr.bf16.mxu0 0
        %4649 = vmatpush1.bf16.msra.mxu0 %v3143
        %4650 = vmatprep.subr.bf16.mxu0 0
        %4651 = vmatpush1.bf16.msra.mxu0 %v3144
        %4652 = vmatprep.subr.bf16.mxu0 0
        %4653 = vmatpush1.bf16.msra.mxu0 %v3145
        %4654 = vmatprep.subr.bf16.mxu0 0
        %4655 = vmatpush1.bf16.msra.mxu0 %v3146
        %4656 = vmatprep.subr.bf16.mxu0 0
        %4657 = vmatpush1.bf16.msra.mxu0 %v3147
        %4658 = vmatprep.subr.bf16.mxu0 0
        %4659 = vmatpush1.bf16.msra.mxu0 %v3148
        %4660 = vmatprep.subr.bf16.mxu0 0
        %4661 = vmatpush1.bf16.msra.mxu0 %v3149
        %4662 = vmatprep.subr.bf16.mxu0 0
        %4663 = vmatpush1.bf16.msra.mxu0 %v3150
        %4664 = vmatprep.subr.bf16.mxu0 0
        %4665 = vmatpush1.bf16.msra.mxu0 %v3151
        %4666 = vmatprep.subr.bf16.mxu0 0
        %4667 = vmatpush1.bf16.msra.mxu0 %v3152
        %4668 = vmatprep.subr.bf16.mxu0 0
        %4669 = vmatpush1.bf16.msra.mxu0 %v3153
        %4670 = vmatprep.subr.bf16.mxu0 0
        %4671 = vmatpush1.bf16.msra.mxu0 %v3154
        %4672 = vmatprep.subr.bf16.mxu0 0
        %4673 = vmatpush1.bf16.msra.mxu0 %v3155
        %4674 = vmatprep.subr.bf16.mxu0 0
        %4675 = vmatpush1.bf16.msra.mxu0 %v3156
        %4676 = vmatprep.mubr.bf16.mxu0 %v3990
        %4677 = vmatmul.mubr.bf16.gmra.mrb[0].mxu0 %v3989
        %v4678 = vpop.f32.mrb[0].mxu0
        %v4679 = vadd.f32 0.0, %v4678
        %v4680 = vpop.f32.mrb[0].mxu0
        %v4681 = vpop.f32.mrb[0].mxu0
        %v4682 = vadd.f32 0.0, %v4681
        %v4683 = vpop.f32.mrb[0].mxu0
        %4684 = vmatprep.mubr.bf16.mxu0 %v3992
        %4685 = vmatmul.mubr.bf16.gmra.mrb[0].mxu0 %v3991
        %v4686 = vpop.f32.mrb[0].mxu0
        %v4687 = vadd.f32 0.0, %v4686
        %v4688 = vpop.f32.mrb[0].mxu0
        %v4689 = vpop.f32.mrb[0].mxu0
        %v4690 = vadd.f32 0.0, %v4689
        %v4691 = vpop.f32.mrb[0].mxu0
        %4692 = vdwg.mxu0
        %4693 = vmatprep.subr.bf16.mxu0 0
        %4694 = vmatpush1.bf16.msra.mxu0 %v3157
        %4695 = vmatprep.subr.bf16.mxu0 0
        %4696 = vmatpush1.bf16.msra.mxu0 %v3158
        %4697 = vmatprep.subr.bf16.mxu0 0
        %4698 = vmatpush1.bf16.msra.mxu0 %v3159
        %4699 = vmatprep.subr.bf16.mxu0 0
        %4700 = vmatpush1.bf16.msra.mxu0 %v3160
        %4701 = vmatprep.subr.bf16.mxu0 0
        %4702 = vmatpush1.bf16.msra.mxu0 %v3161
        %4703 = vmatprep.subr.bf16.mxu0 0
        %4704 = vmatpush1.bf16.msra.mxu0 %v3162
        %4705 = vmatprep.subr.bf16.mxu0 0
        %4706 = vmatpush1.bf16.msra.mxu0 %v3163
        %4707 = vmatprep.subr.bf16.mxu0 0
        %4708 = vmatpush1.bf16.msra.mxu0 %v3164
        %4709 = vmatprep.subr.bf16.mxu0 0
        %4710 = vmatpush1.bf16.msra.mxu0 %v3165
        %4711 = vmatprep.subr.bf16.mxu0 0
        %4712 = vmatpush1.bf16.msra.mxu0 %v3166
        %4713 = vmatprep.subr.bf16.mxu0 0
        %4714 = vmatpush1.bf16.msra.mxu0 %v3167
        %4715 = vmatprep.subr.bf16.mxu0 0
        %4716 = vmatpush1.bf16.msra.mxu0 %v3168
        %4717 = vmatprep.subr.bf16.mxu0 0
        %4718 = vmatpush1.bf16.msra.mxu0 %v3169
        %4719 = vmatprep.subr.bf16.mxu0 0
        %4720 = vmatpush1.bf16.msra.mxu0 %v3170
        %4721 = vmatprep.subr.bf16.mxu0 0
        %4722 = vmatpush1.bf16.msra.mxu0 %v3171
        %4723 = vmatprep.subr.bf16.mxu0 0
        %4724 = vmatpush1.bf16.msra.mxu0 %v3172
        %4725 = vmatprep.mubr.bf16.mxu0 %v3994
        %4726 = vmatmul.mubr.bf16.gmra.mrb[0].mxu0 %v3993
        %v4727 = vpop.f32.mrb[0].mxu0
        %v4728 = vadd.f32 0.0, %v4727
        %v4729 = vpop.f32.mrb[0].mxu0
        %v4730 = vpop.f32.mrb[0].mxu0
        %v4731 = vadd.f32 0.0, %v4730
        %v4732 = vpop.f32.mrb[0].mxu0
        %4733 = vmatprep.mubr.bf16.mxu0 %v3996
        %4734 = vmatmul.mubr.bf16.gmra.mrb[0].mxu0 %v3995
        %v4735 = vpop.f32.mrb[0].mxu0
        %v4736 = vadd.f32 0.0, %v4735
        %v4737 = vpop.f32.mrb[0].mxu0
        %v4738 = vpop.f32.mrb[0].mxu0
        %v4739 = vadd.f32 0.0, %v4738
        %v4740 = vpop.f32.mrb[0].mxu0
        %4741 = vdwg.mxu0
        %v4743 = vsel %vm2050, %v4287, 0
        %v4746 = vsel %vm2050, %v4289, 0
        %v4749 = vsel %vm2050, %v4291, 0
        %v4752 = vsel %vm2050, %v4293, 0
        %v4755 = vsel %vm2050, %v4295, 0
        %v4758 = vsel %vm2050, %v4297, 0
        %v4761 = vsel %vm2050, %v4299, 0
        %v4764 = vsel %vm2050, %v4301, 0
        %v4767 = vsel %vm2050, %v4303, 0
        %v4770 = vsel %vm2050, %v4305, 0
        %v4773 = vsel %vm2050, %v4307, 0
        %v4776 = vsel %vm2050, %v4309, 0
        %v4779 = vsel %vm2050, %v4311, 0
        %v4782 = vsel %vm2050, %v4313, 0
        %v4785 = vsel %vm2050, %v4315, 0
        %v4788 = vsel %vm2050, %v4317, 0
        %v4791 = vsel %vm2050, %v4319, 0
        %v4794 = vsel %vm2050, %v4321, 0
        %v4797 = vsel %vm2050, %v4323, 0
        %v4800 = vsel %vm2050, %v4325, 0
        %v4803 = vsel %vm2050, %v4327, 0
        %v4806 = vsel %vm2050, %v4329, 0
        %v4809 = vsel %vm2050, %v4331, 0
        %v4812 = vsel %vm2050, %v4333, 0
        %v4815 = vsel %vm2050, %v4335, 0
        %v4818 = vsel %vm2050, %v4337, 0
        %v4821 = vsel %vm2050, %v4339, 0
        %v4824 = vsel %vm2050, %v4341, 0
        %v4827 = vsel %vm2050, %v4343, 0
        %v4830 = vsel %vm2050, %v4345, 0
        %v4833 = vsel %vm2050, %v4347, 0
        %v4836 = vsel %vm2050, %v4349, 0
        %4838 = vmatprep.subr.mxu0 0.0
        %4839 = vmatpush1.msra.mxu0 %v1437
        %4840 = vmatprep.subr.mxu0 0.0
        %4841 = vmatpush1.msra.mxu0 0.0
        %4842 = vmatprep.subr.mxu0 0.0
        %4843 = vmatpush1.msra.mxu0 0.0
        %4844 = vmatprep.subr.mxu0 0.0
        %4845 = vmatpush1.msra.mxu0 0.0
        %4846 = vmatprep.subr.mxu0 0.0
        %4847 = vmatpush1.msra.mxu0 0.0
        %4848 = vmatprep.subr.mxu0 0.0
        %4849 = vmatpush1.msra.mxu0 0.0
        %4850 = vmatprep.subr.mxu0 0.0
        %4851 = vmatpush1.msra.mxu0 0.0
        %4852 = vmatprep.subr.mxu0 0.0
        %4853 = vmatpush1.msra.mxu0 0.0
        %4854 = vmatprep.subr.mxu0 0.0
        %4855 = vmatpush1.msra.mxu0 0.0
        %4856 = vmatprep.subr.mxu0 0.0
        %4857 = vmatpush1.msra.mxu0 0.0
        %4858 = vmatprep.subr.mxu0 0.0
        %4859 = vmatpush1.msra.mxu0 0.0
        %4860 = vmatprep.subr.mxu0 0.0
        %4861 = vmatpush1.msra.mxu0 0.0
        %4862 = vmatprep.subr.mxu0 0.0
        %4863 = vmatpush1.msra.mxu0 0.0
        %4864 = vmatprep.subr.mxu0 0.0
        %4865 = vmatpush1.msra.mxu0 0.0
        %4866 = vmatprep.subr.mxu0 0.0
        %4867 = vmatpush1.msra.mxu0 0.0
        %4868 = vmatprep.subr.mxu0 0.0
        %4869 = vmatpush1.msra.mxu0 0.0
        %4870 = vmatprep.subr.mxu0 0.0
        %4871 = vmatpush1.msra.mxu0 0.0
        %4872 = vmatprep.subr.mxu0 0.0
        %4873 = vmatpush1.msra.mxu0 0.0
        %4874 = vmatprep.subr.mxu0 0.0
        %4875 = vmatpush1.msra.mxu0 0.0
        %4876 = vmatprep.subr.mxu0 0.0
        %4877 = vmatpush1.msra.mxu0 0.0
        %4878 = vmatprep.subr.mxu0 0.0
        %4879 = vmatpush1.msra.mxu0 0.0
        %4880 = vmatprep.subr.mxu0 0.0
        %4881 = vmatpush1.msra.mxu0 0.0
        %4882 = vmatprep.subr.mxu0 0.0
        %4883 = vmatpush1.msra.mxu0 0.0
        %4884 = vmatprep.subr.mxu0 0.0
        %4885 = vmatpush1.msra.mxu0 0.0
        %4886 = vmatprep.subr.mxu0 0.0
        %4887 = vmatpush1.msra.mxu0 0.0
        %4888 = vmatprep.subr.mxu0 0.0
        %4889 = vmatpush1.msra.mxu0 0.0
        %4890 = vmatprep.subr.mxu0 0.0
        %4891 = vmatpush1.msra.mxu0 0.0
        %4892 = vmatprep.subr.mxu0 0.0
        %4893 = vmatpush1.msra.mxu0 0.0
        %4894 = vmatprep.subr.mxu0 0.0
        %4895 = vmatpush1.msra.mxu0 0.0
        %4896 = vmatprep.subr.mxu0 0.0
        %4897 = vmatpush1.msra.mxu0 0.0
        %4898 = vmatprep.subr.mxu0 0.0
        %4899 = vmatpush1.msra.mxu0 0.0
        %4900 = vmatprep.subr.mxu0 0.0
        %4901 = vmatpush1.msra.mxu0 0.0
        %4902 = vmatprep.mubr.f32.mxu0 0.0
        %4903 = vmatmul.mubr.f32.gmra.mrb[0].mxu0 %v4743
        %v4904 = vpop.f32.mrb[0].mxu0
        %v4905 = vadd.f32 0.0, %v4904
        %v4906 = vpop.f32.mrb[0].mxu0
        %4907 = vmatprep.mubr.f32.mxu0 0.0
        %4908 = vmatmul.mubr.f32.gmra.mrb[0].mxu0 %v4746
        %v4909 = vpop.f32.mrb[0].mxu0
        %v4910 = vadd.f32 0.0, %v4909
        %v4911 = vpop.f32.mrb[0].mxu0
        %4912 = vmatprep.mubr.f32.mxu0 0.0
        %4913 = vmatmul.mubr.f32.gmra.mrb[0].mxu0 %v4749
        %v4914 = vpop.f32.mrb[0].mxu0
        %v4915 = vadd.f32 0.0, %v4914
        %v4916 = vpop.f32.mrb[0].mxu0
        %4917 = vmatprep.mubr.f32.mxu0 0.0
        %4918 = vmatmul.mubr.f32.gmra.mrb[0].mxu0 %v4752
        %v4919 = vpop.f32.mrb[0].mxu0
        %v4920 = vadd.f32 0.0, %v4919
        %v4921 = vpop.f32.mrb[0].mxu0
        %4922 = vmatprep.mubr.f32.mxu0 0.0
        %4923 = vmatmul.mubr.f32.gmra.mrb[0].mxu0 %v4755
        %v4924 = vpop.f32.mrb[0].mxu0
        %v4925 = vadd.f32 0.0, %v4924
        %v4926 = vpop.f32.mrb[0].mxu0
        %4927 = vmatprep.mubr.f32.mxu0 0.0
        %4928 = vmatmul.mubr.f32.gmra.mrb[0].mxu0 %v4758
        %v4929 = vpop.f32.mrb[0].mxu0
        %v4930 = vadd.f32 0.0, %v4929
        %v4931 = vpop.f32.mrb[0].mxu0
        %4932 = vmatprep.mubr.f32.mxu0 0.0
        %4933 = vmatmul.mubr.f32.gmra.mrb[0].mxu0 %v4761
        %v4934 = vpop.f32.mrb[0].mxu0
        %v4935 = vadd.f32 0.0, %v4934
        %v4936 = vpop.f32.mrb[0].mxu0
        %4937 = vmatprep.mubr.f32.mxu0 0.0
        %4938 = vmatmul.mubr.f32.gmra.mrb[0].mxu0 %v4764
        %v4939 = vpop.f32.mrb[0].mxu0
        %v4940 = vadd.f32 0.0, %v4939
        %v4941 = vpop.f32.mrb[0].mxu0
        %4942 = vmatprep.mubr.f32.mxu0 0.0
        %4943 = vmatmul.mubr.f32.gmra.mrb[0].mxu0 %v4767
        %v4944 = vpop.f32.mrb[0].mxu0
        %v4945 = vadd.f32 0.0, %v4944
        %v4946 = vpop.f32.mrb[0].mxu0
        %4947 = vmatprep.mubr.f32.mxu0 0.0
        %4948 = vmatmul.mubr.f32.gmra.mrb[0].mxu0 %v4770
        %v4949 = vpop.f32.mrb[0].mxu0
        %v4950 = vadd.f32 0.0, %v4949
        %v4951 = vpop.f32.mrb[0].mxu0
        %4952 = vmatprep.mubr.f32.mxu0 0.0
        %4953 = vmatmul.mubr.f32.gmra.mrb[0].mxu0 %v4773
        %v4954 = vpop.f32.mrb[0].mxu0
        %v4955 = vadd.f32 0.0, %v4954
        %v4956 = vpop.f32.mrb[0].mxu0
        %4957 = vmatprep.mubr.f32.mxu0 0.0
        %4958 = vmatmul.mubr.f32.gmra.mrb[0].mxu0 %v4776
        %v4959 = vpop.f32.mrb[0].mxu0
        %v4960 = vadd.f32 0.0, %v4959
        %v4961 = vpop.f32.mrb[0].mxu0
        %4962 = vmatprep.mubr.f32.mxu0 0.0
        %4963 = vmatmul.mubr.f32.gmra.mrb[0].mxu0 %v4779
        %v4964 = vpop.f32.mrb[0].mxu0
        %v4965 = vadd.f32 0.0, %v4964
        %v4966 = vpop.f32.mrb[0].mxu0
        %4967 = vmatprep.mubr.f32.mxu0 0.0
        %4968 = vmatmul.mubr.f32.gmra.mrb[0].mxu0 %v4782
        %v4969 = vpop.f32.mrb[0].mxu0
        %v4970 = vadd.f32 0.0, %v4969
        %v4971 = vpop.f32.mrb[0].mxu0
        %4972 = vmatprep.mubr.f32.mxu0 0.0
        %4973 = vmatmul.mubr.f32.gmra.mrb[0].mxu0 %v4785
        %v4974 = vpop.f32.mrb[0].mxu0
        %v4975 = vadd.f32 0.0, %v4974
        %v4976 = vpop.f32.mrb[0].mxu0
        %4977 = vmatprep.mubr.f32.mxu0 0.0
        %4978 = vmatmul.mubr.f32.gmra.mrb[0].mxu0 %v4788
        %v4979 = vpop.f32.mrb[0].mxu0
        %v4980 = vadd.f32 0.0, %v4979
        %v4981 = vpop.f32.mrb[0].mxu0
        %4982 = vmatprep.mubr.f32.mxu0 0.0
        %4983 = vmatmul.mubr.f32.gmra.mrb[0].mxu0 %v4791
        %v4984 = vpop.f32.mrb[0].mxu0
        %v4985 = vadd.f32 0.0, %v4984
        %v4986 = vpop.f32.mrb[0].mxu0
        %4987 = vmatprep.mubr.f32.mxu0 0.0
        %4988 = vmatmul.mubr.f32.gmra.mrb[0].mxu0 %v4794
        %v4989 = vpop.f32.mrb[0].mxu0
        %v4990 = vadd.f32 0.0, %v4989
        %v4991 = vpop.f32.mrb[0].mxu0
        %4992 = vmatprep.mubr.f32.mxu0 0.0
        %4993 = vmatmul.mubr.f32.gmra.mrb[0].mxu0 %v4797
        %v4994 = vpop.f32.mrb[0].mxu0
        %v4995 = vadd.f32 0.0, %v4994
        %v4996 = vpop.f32.mrb[0].mxu0
        %4997 = vmatprep.mubr.f32.mxu0 0.0
        %4998 = vmatmul.mubr.f32.gmra.mrb[0].mxu0 %v4800
        %v4999 = vpop.f32.mrb[0].mxu0
        %v5000 = vadd.f32 0.0, %v4999
        %v5001 = vpop.f32.mrb[0].mxu0
        %5002 = vmatprep.mubr.f32.mxu0 0.0
        %5003 = vmatmul.mubr.f32.gmra.mrb[0].mxu0 %v4803
        %v5004 = vpop.f32.mrb[0].mxu0
        %v5005 = vadd.f32 0.0, %v5004
        %v5006 = vpop.f32.mrb[0].mxu0
        %5007 = vmatprep.mubr.f32.mxu0 0.0
        %5008 = vmatmul.mubr.f32.gmra.mrb[0].mxu0 %v4806
        %v5009 = vpop.f32.mrb[0].mxu0
        %v5010 = vadd.f32 0.0, %v5009
        %v5011 = vpop.f32.mrb[0].mxu0
        %5012 = vmatprep.mubr.f32.mxu0 0.0
        %5013 = vmatmul.mubr.f32.gmra.mrb[0].mxu0 %v4809
        %v5014 = vpop.f32.mrb[0].mxu0
        %v5015 = vadd.f32 0.0, %v5014
        %v5016 = vpop.f32.mrb[0].mxu0
        %5017 = vmatprep.mubr.f32.mxu0 0.0
        %5018 = vmatmul.mubr.f32.gmra.mrb[0].mxu0 %v4812
        %v5019 = vpop.f32.mrb[0].mxu0
        %v5020 = vadd.f32 0.0, %v5019
        %v5021 = vpop.f32.mrb[0].mxu0
        %5022 = vmatprep.mubr.f32.mxu0 0.0
        %5023 = vmatmul.mubr.f32.gmra.mrb[0].mxu0 %v4815
        %v5024 = vpop.f32.mrb[0].mxu0
        %v5025 = vadd.f32 0.0, %v5024
        %v5026 = vpop.f32.mrb[0].mxu0
        %5027 = vmatprep.mubr.f32.mxu0 0.0
        %5028 = vmatmul.mubr.f32.gmra.mrb[0].mxu0 %v4818
        %v5029 = vpop.f32.mrb[0].mxu0
        %v5030 = vadd.f32 0.0, %v5029
        %v5031 = vpop.f32.mrb[0].mxu0
        %5032 = vmatprep.mubr.f32.mxu0 0.0
        %5033 = vmatmul.mubr.f32.gmra.mrb[0].mxu0 %v4821
        %v5034 = vpop.f32.mrb[0].mxu0
        %v5035 = vadd.f32 0.0, %v5034
        %v5036 = vpop.f32.mrb[0].mxu0
        %5037 = vmatprep.mubr.f32.mxu0 0.0
        %5038 = vmatmul.mubr.f32.gmra.mrb[0].mxu0 %v4824
        %v5039 = vpop.f32.mrb[0].mxu0
        %v5040 = vadd.f32 0.0, %v5039
        %v5041 = vpop.f32.mrb[0].mxu0
        %5042 = vmatprep.mubr.f32.mxu0 0.0
        %5043 = vmatmul.mubr.f32.gmra.mrb[0].mxu0 %v4827
        %v5044 = vpop.f32.mrb[0].mxu0
        %v5045 = vadd.f32 0.0, %v5044
        %v5046 = vpop.f32.mrb[0].mxu0
        %5047 = vmatprep.mubr.f32.mxu0 0.0
        %5048 = vmatmul.mubr.f32.gmra.mrb[0].mxu0 %v4830
        %v5049 = vpop.f32.mrb[0].mxu0
        %v5050 = vadd.f32 0.0, %v5049
        %v5051 = vpop.f32.mrb[0].mxu0
        %5052 = vmatprep.mubr.f32.mxu0 0.0
        %5053 = vmatmul.mubr.f32.gmra.mrb[0].mxu0 %v4833
        %v5054 = vpop.f32.mrb[0].mxu0
        %v5055 = vadd.f32 0.0, %v5054
        %v5056 = vpop.f32.mrb[0].mxu0
        %5057 = vmatprep.mubr.f32.mxu0 0.0
        %5058 = vmatmul.mubr.f32.gmra.mrb[0].mxu0 %v4836
        %v5059 = vpop.f32.mrb[0].mxu0
        %v5060 = vadd.f32 0.0, %v5059
        %v5061 = vpop.f32.mrb[0].mxu0
        %5062 = vdwg.mxu0
        %v5063 = vmul.f32 %v4385, %v4905
        %v5064 = vmul.f32 %v4388, %v4910
        %v5065 = vmul.f32 %v4393, %v4915
        %v5066 = vmul.f32 %v4396, %v4920
        %v5067 = vmul.f32 %v4434, %v4925
        %v5068 = vmul.f32 %v4437, %v4930
        %v5069 = vmul.f32 %v4442, %v4935
        %v5070 = vmul.f32 %v4445, %v4940
        %v5071 = vmul.f32 %v4483, %v4945
        %v5072 = vmul.f32 %v4486, %v4950
        %v5073 = vmul.f32 %v4491, %v4955
        %v5074 = vmul.f32 %v4494, %v4960
        %v5075 = vmul.f32 %v4532, %v4965
        %v5076 = vmul.f32 %v4535, %v4970
        %v5077 = vmul.f32 %v4540, %v4975
        %v5078 = vmul.f32 %v4543, %v4980
        %v5079 = vmul.f32 %v4581, %v4985
        %v5080 = vmul.f32 %v4584, %v4990
        %v5081 = vmul.f32 %v4589, %v4995
        %v5082 = vmul.f32 %v4592, %v5000
        %v5083 = vmul.f32 %v4630, %v5005
        %v5084 = vmul.f32 %v4633, %v5010
        %v5085 = vmul.f32 %v4638, %v5015
        %v5086 = vmul.f32 %v4641, %v5020
        %v5087 = vmul.f32 %v4679, %v5025
        %v5088 = vmul.f32 %v4682, %v5030
        %v5089 = vmul.f32 %v4687, %v5035
        %v5090 = vmul.f32 %v4690, %v5040
        %v5091 = vmul.f32 %v4728, %v5045
        %v5092 = vmul.f32 %v4731, %v5050
        %v5093 = vmul.f32 %v4736, %v5055
        %v5094 = vmul.f32 %v4739, %v5060
        %v5095 = vpack.c.bf16 %v5064, %v5063
        %v5096 = vpack.c.bf16 %v5066, %v5065
        %v5097 = vpack.c.bf16 %v5068, %v5067
        %v5098 = vpack.c.bf16 %v5070, %v5069
        %v5099 = vpack.c.bf16 %v5072, %v5071
        %v5100 = vpack.c.bf16 %v5074, %v5073
        %v5101 = vpack.c.bf16 %v5076, %v5075
        %v5102 = vpack.c.bf16 %v5078, %v5077
        %v5103 = vpack.c.bf16 %v5080, %v5079
        %v5104 = vpack.c.bf16 %v5082, %v5081
        %v5105 = vpack.c.bf16 %v5084, %v5083
        %v5106 = vpack.c.bf16 %v5086, %v5085
        %v5107 = vpack.c.bf16 %v5088, %v5087
        %v5108 = vpack.c.bf16 %v5090, %v5089
        %v5109 = vpack.c.bf16 %v5092, %v5091
        %v5110 = vpack.c.bf16 %v5094, %v5093
        %v5111 = vld [vmem:[#allocation11] sm:$0xf]
        %v5112 = vld [vmem:[#allocation11 + $0x4] sm:$0xf]
        %v5113 = vld [vmem:[#allocation11 + $0x8] sm:$0xf]
        %v5114 = vld [vmem:[#allocation11 + $0xc] sm:$0xf]
        %v5115 = vld [vmem:[#allocation11 + $0x10] sm:$0xf]
        %v5116 = vld [vmem:[#allocation11 + $0x14] sm:$0xf]
        %v5117 = vld [vmem:[#allocation11 + $0x18] sm:$0xf]
        %v5118 = vld [vmem:[#allocation11 + $0x1c] sm:$0xf]
        %v5119 = vld [vmem:[#allocation11 + $0x20] sm:$0xf]
        %v5120 = vld [vmem:[#allocation11 + $0x24] sm:$0xf]
        %v5121 = vld [vmem:[#allocation11 + $0x28] sm:$0xf]
        %v5122 = vld [vmem:[#allocation11 + $0x2c] sm:$0xf]
        %v5123 = vld [vmem:[#allocation11 + $0x30] sm:$0xf]
        %v5124 = vld [vmem:[#allocation11 + $0x34] sm:$0xf]
        %v5125 = vld [vmem:[#allocation11 + $0x38] sm:$0xf]
        %v5126 = vld [vmem:[#allocation11 + $0x3c] sm:$0xf]
        %v5127 = vld [vmem:[%s8] sm:$0x1]
        %v5129 = vlaneseq
        %v5130 = vshrl.u32 %v5129, 7
        %v5131 = vsub.s32 0, %v5130
        %v5132 = vrot.slane %v5127, %v5131
        %v5150 = vunpack.c.l.b16 %v5111
        %v5151 = vunpack.c.l.b16 %v5112
        %v5152 = vunpack.c.l.b16 %v5113
        %v5153 = vunpack.c.l.b16 %v5114
        %v5154 = vunpack.c.l.b16 %v5115
        %v5155 = vunpack.c.l.b16 %v5116
        %v5156 = vunpack.c.l.b16 %v5117
        %v5157 = vunpack.c.l.b16 %v5118
        %v5158 = vunpack.c.l.b16 %v5119
        %v5159 = vunpack.c.l.b16 %v5120
        %v5160 = vunpack.c.l.b16 %v5121
        %v5161 = vunpack.c.l.b16 %v5122
        %v5162 = vunpack.c.l.b16 %v5123
        %v5163 = vunpack.c.l.b16 %v5124
        %v5164 = vunpack.c.l.b16 %v5125
        %v5165 = vunpack.c.l.b16 %v5126
        %v5166 = vpack.c.b16 %v5151, %v5150
        %v5167 = vpack.c.b16 %v5153, %v5152
        %v5168 = vpack.c.b16 %v5155, %v5154
        %v5169 = vpack.c.b16 %v5157, %v5156
        %v5170 = vpack.c.b16 %v5159, %v5158
        %v5171 = vpack.c.b16 %v5161, %v5160
        %v5172 = vpack.c.b16 %v5163, %v5162
        %v5173 = vpack.c.b16 %v5165, %v5164
        %5182 = vmatprep.subr.bf16.mxu0 0
        %5183 = vmatpush1.bf16.msra.mxu0 %v5166
        %5184 = vmatprep.subr.bf16.mxu0 0
        %5185 = vmatpush1.bf16.msra.mxu0 %v5167
        %5186 = vmatprep.subr.bf16.mxu0 0
        %5187 = vmatpush1.bf16.msra.mxu0 %v5168
        %5188 = vmatprep.subr.bf16.mxu0 0
        %5189 = vmatpush1.bf16.msra.mxu0 %v5169
        %5190 = vmatprep.subr.bf16.mxu0 0
        %5191 = vmatpush1.bf16.msra.mxu0 %v5170
        %5192 = vmatprep.subr.bf16.mxu0 0
        %5193 = vmatpush1.bf16.msra.mxu0 %v5171
        %5194 = vmatprep.subr.bf16.mxu0 0
        %5195 = vmatpush1.bf16.msra.mxu0 %v5172
        %5196 = vmatprep.subr.bf16.mxu0 0
        %5197 = vmatpush1.bf16.msra.mxu0 %v5173
        %5198 = vmatprep.subr.bf16.mxu0 0
        %5199 = vmatpush1.bf16.msra.mxu0 0
        %5200 = vmatprep.subr.bf16.mxu0 0
        %5201 = vmatpush1.bf16.msra.mxu0 0
        %5202 = vmatprep.subr.bf16.mxu0 0
        %5203 = vmatpush1.bf16.msra.mxu0 0
        %5204 = vmatprep.subr.bf16.mxu0 0
        %5205 = vmatpush1.bf16.msra.mxu0 0
        %5206 = vmatprep.subr.bf16.mxu0 0
        %5207 = vmatpush1.bf16.msra.mxu0 0
        %5208 = vmatprep.subr.bf16.mxu0 0
        %5209 = vmatpush1.bf16.msra.mxu0 0
        %5210 = vmatprep.subr.bf16.mxu0 0
        %5211 = vmatpush1.bf16.msra.mxu0 0
        %5212 = vmatprep.subr.bf16.mxu0 0
        %5213 = vmatpush1.bf16.msra.mxu0 0
        %5214 = vmatprep.mubr.bf16.mxu0 0
        %5215 = vmatmul.mubr.bf16.gmra.mrb[0].mxu0 %v5095
        %v5216 = vpop.f32.mrb[0].mxu0
        %v5217 = vadd.f32 %v5132, %v5216
        %v5218 = vpop.f32.mrb[0].mxu0
        %v5219 = vpop.f32.mrb[0].mxu0
        %v5220 = vadd.f32 %v5132, %v5219
        %v5221 = vpop.f32.mrb[0].mxu0
        %5222 = vmatprep.mubr.bf16.mxu0 0
        %5223 = vmatmul.mubr.bf16.gmra.mrb[0].mxu0 %v5096
        %v5224 = vpop.f32.mrb[0].mxu0
        %v5225 = vadd.f32 %v5132, %v5224
        %v5226 = vpop.f32.mrb[0].mxu0
        %v5227 = vpop.f32.mrb[0].mxu0
        %v5228 = vadd.f32 %v5132, %v5227
        %v5229 = vpop.f32.mrb[0].mxu0
        %5230 = vmatprep.mubr.bf16.mxu0 0
        %5231 = vmatmul.mubr.bf16.gmra.mrb[0].mxu0 %v5097
        %v5232 = vpop.f32.mrb[0].mxu0
        %v5233 = vadd.f32 %v5132, %v5232
        %v5234 = vpop.f32.mrb[0].mxu0
        %v5235 = vpop.f32.mrb[0].mxu0
        %v5236 = vadd.f32 %v5132, %v5235
        %v5237 = vpop.f32.mrb[0].mxu0
        %5238 = vmatprep.mubr.bf16.mxu0 0
        %5239 = vmatmul.mubr.bf16.gmra.mrb[0].mxu0 %v5098
        %v5240 = vpop.f32.mrb[0].mxu0
        %v5241 = vadd.f32 %v5132, %v5240
        %v5242 = vpop.f32.mrb[0].mxu0
        %v5243 = vpop.f32.mrb[0].mxu0
        %v5244 = vadd.f32 %v5132, %v5243
        %v5245 = vpop.f32.mrb[0].mxu0
        %5246 = vmatprep.mubr.bf16.mxu0 0
        %5247 = vmatmul.mubr.bf16.gmra.mrb[0].mxu0 %v5099
        %v5248 = vpop.f32.mrb[0].mxu0
        %v5249 = vadd.f32 %v5132, %v5248
        %v5250 = vpop.f32.mrb[0].mxu0
        %v5251 = vpop.f32.mrb[0].mxu0
        %v5252 = vadd.f32 %v5132, %v5251
        %v5253 = vpop.f32.mrb[0].mxu0
        %5254 = vmatprep.mubr.bf16.mxu0 0
        %5255 = vmatmul.mubr.bf16.gmra.mrb[0].mxu0 %v5100
        %v5256 = vpop.f32.mrb[0].mxu0
        %v5257 = vadd.f32 %v5132, %v5256
        %v5258 = vpop.f32.mrb[0].mxu0
        %v5259 = vpop.f32.mrb[0].mxu0
        %v5260 = vadd.f32 %v5132, %v5259
        %v5261 = vpop.f32.mrb[0].mxu0
        %5262 = vmatprep.mubr.bf16.mxu0 0
        %5263 = vmatmul.mubr.bf16.gmra.mrb[0].mxu0 %v5101
        %v5264 = vpop.f32.mrb[0].mxu0
        %v5265 = vadd.f32 %v5132, %v5264
        %v5266 = vpop.f32.mrb[0].mxu0
        %v5267 = vpop.f32.mrb[0].mxu0
        %v5268 = vadd.f32 %v5132, %v5267
        %v5269 = vpop.f32.mrb[0].mxu0
        %5270 = vmatprep.mubr.bf16.mxu0 0
        %5271 = vmatmul.mubr.bf16.gmra.mrb[0].mxu0 %v5102
        %v5272 = vpop.f32.mrb[0].mxu0
        %v5273 = vadd.f32 %v5132, %v5272
        %v5274 = vpop.f32.mrb[0].mxu0
        %v5275 = vpop.f32.mrb[0].mxu0
        %v5276 = vadd.f32 %v5132, %v5275
        %v5277 = vpop.f32.mrb[0].mxu0
        %5278 = vmatprep.mubr.bf16.mxu0 0
        %5279 = vmatmul.mubr.bf16.gmra.mrb[0].mxu0 %v5103
        %v5280 = vpop.f32.mrb[0].mxu0
        %v5281 = vadd.f32 %v5132, %v5280
        %v5282 = vpop.f32.mrb[0].mxu0
        %v5283 = vpop.f32.mrb[0].mxu0
        %v5284 = vadd.f32 %v5132, %v5283
        %v5285 = vpop.f32.mrb[0].mxu0
        %5286 = vmatprep.mubr.bf16.mxu0 0
        %5287 = vmatmul.mubr.bf16.gmra.mrb[0].mxu0 %v5104
        %v5288 = vpop.f32.mrb[0].mxu0
        %v5289 = vadd.f32 %v5132, %v5288
        %v5290 = vpop.f32.mrb[0].mxu0
        %v5291 = vpop.f32.mrb[0].mxu0
        %v5292 = vadd.f32 %v5132, %v5291
        %v5293 = vpop.f32.mrb[0].mxu0
        %5294 = vmatprep.mubr.bf16.mxu0 0
        %5295 = vmatmul.mubr.bf16.gmra.mrb[0].mxu0 %v5105
        %v5296 = vpop.f32.mrb[0].mxu0
        %v5297 = vadd.f32 %v5132, %v5296
        %v5298 = vpop.f32.mrb[0].mxu0
        %v5299 = vpop.f32.mrb[0].mxu0
        %v5300 = vadd.f32 %v5132, %v5299
        %v5301 = vpop.f32.mrb[0].mxu0
        %5302 = vmatprep.mubr.bf16.mxu0 0
        %5303 = vmatmul.mubr.bf16.gmra.mrb[0].mxu0 %v5106
        %v5304 = vpop.f32.mrb[0].mxu0
        %v5305 = vadd.f32 %v5132, %v5304
        %v5306 = vpop.f32.mrb[0].mxu0
        %v5307 = vpop.f32.mrb[0].mxu0
        %v5308 = vadd.f32 %v5132, %v5307
        %v5309 = vpop.f32.mrb[0].mxu0
        %5310 = vmatprep.mubr.bf16.mxu0 0
        %5311 = vmatmul.mubr.bf16.gmra.mrb[0].mxu0 %v5107
        %v5312 = vpop.f32.mrb[0].mxu0
        %v5313 = vadd.f32 %v5132, %v5312
        %v5314 = vpop.f32.mrb[0].mxu0
        %v5315 = vpop.f32.mrb[0].mxu0
        %v5316 = vadd.f32 %v5132, %v5315
        %v5317 = vpop.f32.mrb[0].mxu0
        %5318 = vmatprep.mubr.bf16.mxu0 0
        %5319 = vmatmul.mubr.bf16.gmra.mrb[0].mxu0 %v5108
        %v5320 = vpop.f32.mrb[0].mxu0
        %v5321 = vadd.f32 %v5132, %v5320
        %v5322 = vpop.f32.mrb[0].mxu0
        %v5323 = vpop.f32.mrb[0].mxu0
        %v5324 = vadd.f32 %v5132, %v5323
        %v5325 = vpop.f32.mrb[0].mxu0
        %5326 = vmatprep.mubr.bf16.mxu0 0
        %5327 = vmatmul.mubr.bf16.gmra.mrb[0].mxu0 %v5109
        %v5328 = vpop.f32.mrb[0].mxu0
        %v5329 = vadd.f32 %v5132, %v5328
        %v5330 = vpop.f32.mrb[0].mxu0
        %v5331 = vpop.f32.mrb[0].mxu0
        %v5332 = vadd.f32 %v5132, %v5331
        %v5333 = vpop.f32.mrb[0].mxu0
        %5334 = vmatprep.mubr.bf16.mxu0 0
        %5335 = vmatmul.mubr.bf16.gmra.mrb[0].mxu0 %v5110
        %v5336 = vpop.f32.mrb[0].mxu0
        %v5337 = vadd.f32 %v5132, %v5336
        %v5338 = vpop.f32.mrb[0].mxu0
        %v5339 = vpop.f32.mrb[0].mxu0
        %v5340 = vadd.f32 %v5132, %v5339
        %v5341 = vpop.f32.mrb[0].mxu0
        %5342 = vdwg.mxu0
        %5343 = vst [vmem:[%s604] sm:$0xff] %v5217
        %5344 = vst [vmem:[%s604 + $0x8] sm:$0xff] %v5220
        %5345 = vst [vmem:[%s604 + $0x10] sm:$0xff] %v5225
        %5346 = vst [vmem:[%s604 + $0x18] sm:$0xff] %v5228
        %5347 = vst [vmem:[%s604 + $0x20] sm:$0xff] %v5233
        %5348 = vst [vmem:[%s604 + $0x28] sm:$0xff] %v5236
        %5349 = vst [vmem:[%s604 + $0x30] sm:$0xff] %v5241
        %5350 = vst [vmem:[%s604 + $0x38] sm:$0xff] %v5244
        %5351 = vst [vmem:[%s604 + $0x40] sm:$0xff] %v5249
        %5352 = vst [vmem:[%s604 + $0x48] sm:$0xff] %v5252
        %5353 = vst [vmem:[%s604 + $0x50] sm:$0xff] %v5257
        %5354 = vst [vmem:[%s604 + $0x58] sm:$0xff] %v5260
        %5355 = vst [vmem:[%s604 + $0x60] sm:$0xff] %v5265
        %5356 = vst [vmem:[%s604 + $0x68] sm:$0xff] %v5268
        %5357 = vst [vmem:[%s604 + $0x70] sm:$0xff] %v5273
        %5358 = vst [vmem:[%s604 + $0x78] sm:$0xff] %v5276
        %5359 = vst [vmem:[%s604 + $0x80] sm:$0xff] %v5281
        %5360 = vst [vmem:[%s604 + $0x88] sm:$0xff] %v5284
        %5361 = vst [vmem:[%s604 + $0x90] sm:$0xff] %v5289
        %5362 = vst [vmem:[%s604 + $0x98] sm:$0xff] %v5292
        %5363 = vst [vmem:[%s604 + $0xa0] sm:$0xff] %v5297
        %5364 = vst [vmem:[%s604 + $0xa8] sm:$0xff] %v5300
        %5365 = vst [vmem:[%s604 + $0xb0] sm:$0xff] %v5305
        %5366 = vst [vmem:[%s604 + $0xb8] sm:$0xff] %v5308
        %5367 = vst [vmem:[%s604 + $0xc0] sm:$0xff] %v5313
        %5368 = vst [vmem:[%s604 + $0xc8] sm:$0xff] %v5316
        %5369 = vst [vmem:[%s604 + $0xd0] sm:$0xff] %v5321
        %5370 = vst [vmem:[%s604 + $0xd8] sm:$0xff] %v5324
        %5371 = vst [vmem:[%s604 + $0xe0] sm:$0xff] %v5329
        %5372 = vst [vmem:[%s604 + $0xe8] sm:$0xff] %v5332
        %5373 = vst [vmem:[%s604 + $0xf0] sm:$0xff] %v5337
        %5374 = vst [vmem:[%s604 + $0xf8] sm:$0xff] %v5340
        %s5375 = sand.u32 %s354, 1
        %s5376 = scalar_lea.sflag [#allocation5], %s5375
        %s5377 = sand.u32 %s354, 1
        %s5378 = smul.addr %s5377, 256
        %s5379 = scalar_lea.vmem [#allocation14], %s5378
        // Predicated region
        $region101: #{tpu_custom_call.1} parent=75 // pred_check
          %p5380 = pneg %p364
        $region102: #{tpu_custom_call.1} parent=75 // pred_check_branch
          %5382 = sbr.rel (%p5380) target = $region104
        $region103: #{tpu_custom_call.1} parent=75 // pred_region
          %s5383 = smul.u32 8, %s37
          %s5385 = ssub.s32 4096, 4096
          %5386 = vsyncadd %s5376, %s5385
          %s5387 = smul.addr %s5383, 4
          %s5388 = smul.addr %s5387, 128
          %s5389 = scalar_lea.hbm %s14, %s5388
          %s5390 = sshll.u32 %s5379, 4
          %s5391 = int_to_ptr.vmem [resolvable:$true] %s5390
          %5396 = dma.vmem_to_hbm [thread:$0]  %s5391, 4096, %s5389, %s5376, 128, 128, 8
        $region104: #{tpu_custom_call.1} parent=75 // pred_fallthru
          _
      $region76: #{tpu_custom_call.1} parent=5 // pred_fallthru
        _
      %p5397 = scmp.le.s32.totalorder 2, %s32
      // Predicated region
      $region105: #{tpu_custom_call.1} parent=5 // pred_check
        %p5398 = pneg %p5397
      $region106: #{tpu_custom_call.1} parent=5 // pred_check_branch
        %5400 = sbr.rel (%p5398) target = $region108
      $region107: #{tpu_custom_call.1} parent=5 // pred_region
        %s5401 = ssub.s32 %s32, 2
        // Predicated region
        $region109: #{tpu_custom_call.1} parent=107 // pred_check
          %p5402 = pneg %p370
        $region110: #{tpu_custom_call.1} parent=107 // pred_check_branch
          %5404 = sbr.rel (%p5402) target = $region112
        $region111: #{tpu_custom_call.1} parent=107 // pred_region
          %s5405 = sand.u32 %s355, 1
          %s5406 = scalar_lea.sflag [#allocation5], %s5405
          %s5407 = sand.u32 %s355, 1
          %s5408 = smul.addr %s5407, 256
          %s5409 = scalar_lea.vmem [#allocation14], %s5408
          %5410 = dma.done %s5406, 4096
        $region112: #{tpu_custom_call.1} parent=107 // pred_fallthru
          _
      $region108: #{tpu_custom_call.1} parent=5 // pred_fallthru
        _
    $region6: #{tpu_custom_call.1} parent=1 // loop_footer
      %s36 = sadd.s32 1, %s32
    $region7: #{tpu_custom_call.1} parent=1 // loop_footer_branch
      %31 = sbr.rel target = $region3
    $region8: #{tpu_custom_call.1} parent=1 // loop_exit
      _
    %5411 = vsyncpa [#allocation4], 1
    %s5412 = scalar_lea.sflag [#allocation4], 1
    %5413 = vsyncpa %s5412, 1
    %5414 = vsyncpa [#allocation7], 1
    %s5415 = scalar_lea.sflag [#allocation7], 1
    %5416 = vsyncpa %s5415, 1
    %5417 = vsyncpa [#allocation10], 1
    %5418 = vsyncpa [#allocation13], 1
    %5419 = vsyncpa [#allocation5], 1
    %s5420 = scalar_lea.sflag [#allocation5], 1
    %5421 = vsyncpa %s5420, 1

</llo_original>
